<compile_context>
chip_gen: v7x
topology: tpu7x:2x2x1
jax: 0.10.0
libtpu: 0.0.40
codegen_flags: <defaults>
</compile_context>

<pallas_src>
import functools

import jax
import jax.numpy as jnp
from jax.experimental import pallas as pl
from jax.experimental.pallas import tpu as pltpu


def _spatial_attn_kernel(w_ref, x_ref, o_ref, pad_ref, gate_ref, *, NB, C, H, W, K, P):
    """Processes one block of NB batch elements per grid step.

    w_ref    : SMEM (2*K*K,) f32          conv weight flattened as [in_ch, ky, kx]
    x_ref    : VMEM (NB, C, H*W)          lane-dense input block
    o_ref    : VMEM (NB, C, H*W)          lane-dense output block
    pad_ref  : VMEM (2*NB, H+2P, W+2P) f32  zero-padded [avg | max] maps
    gate_ref : VMEM (NB, 1, H*W) f32      flattened (1 + sigmoid(conv)) gate
    """
    x = x_ref[...].astype(jnp.float32)                    # (NB, C, HW) lane-dense loads

    # Channel-wise mean / max (PyTorch dim=1).
    avg = jnp.mean(x, axis=1)                             # (NB, HW)
    mx = jnp.max(x, axis=1)                               # (NB, HW)

    # Zero the padded scratch (tiny; keeps the conv halo at exactly zero).
    pad_ref[...] = jnp.zeros_like(pad_ref)

    # Write the (H, W)-shaped interiors row by row (static slicing only; this
    # relayout touches only the small maps, never the full tensor).
    for r in range(H):
        row = avg[:, r * W:(r + 1) * W]                   # (NB, W)
        pad_ref[0:NB, P + r, P:P + W] = row
        row = mx[:, r * W:(r + 1) * W]
        pad_ref[NB:2 * NB, P + r, P:P + W] = row

    # KxK "same" conv, 2 -> 1 channels, no bias.  Fully unrolled (K is 3 or 7).
    acc = jnp.zeros((NB, H, W), jnp.float32)
    for c in range(2):
        base = c * NB
        for dy in range(K):
            for dx in range(K):
                wgt = w_ref[c * K * K + dy * K + dx]
                acc = acc + wgt * pad_ref[base:base + NB, dy:dy + H, dx:dx + W]

    # Gate = 1 + sigmoid(conv);  out = gate * x  ==  sigmoid(conv) * x + x.
    y = 1.0 + jax.nn.sigmoid(acc)                         # (NB, H, W)

    # Re-flatten the gate to lane-dense (NB, 1, HW) via a small scratch.
    for r in range(H):
        gate_ref[:, 0, r * W:(r + 1) * W] = y[:, r, :]

    # Lane-dense gating multiply + store (re-read x from VMEM to keep its
    # vreg live range bounded for larger blocks).
    xg = x_ref[...].astype(jnp.float32)
    o_ref[...] = (gate_ref[...] * xg).astype(o_ref.dtype)


def spatial_attention(x, weight, kernel_size=7):
    """Pallas implementation of SpatialAttention.forward.

    x:      (N, C, H, W)  float32 or bfloat16
    weight: (1, 2, kernel_size, kernel_size) float32
    """
    assert kernel_size in (3, 7), "kernel size must be 3 or 7"
    N, C, H, W = x.shape
    K = kernel_size
    P = 3 if K == 7 else 1
    HW = H * W
    Hp, Wp = H + 2 * P, W + 2 * P

    # Lane-dense layout for the heavy I/O (free reshape in HBM).
    x3 = x.reshape(N, C, HW)

    # Pick NB = largest divisor of N whose block is <= ~1 MiB: amortizes the
    # ~0.35us/step overhead and fattens DMAs without stressing vregs / VMEM.
    itemsize = jnp.dtype(x.dtype).itemsize
    elem_bytes = C * HW * itemsize
    budget = 1 << 20
    NB = 1
    for d in range(1, N + 1):
        if N % d == 0 and d * elem_bytes <= budget:
            NB = d
    # TODO(synk): for very large C*H*W (single-image block >> VMEM budget on
    # v7x) tile H with a P-row halo instead of taking the whole image per step.

    w_flat = weight.reshape(-1).astype(jnp.float32)       # (2*K*K,) [in_ch, ky, kx]

    # VMEM budget: 2x in block + 2x out block (double buffering) + scratch.
    block_bytes = NB * elem_bytes
    scratch_bytes = (2 * NB * Hp * Wp + NB * HW) * 4
    vmem_need = 4 * block_bytes + scratch_bytes + (2 << 20)
    vmem_limit = int(min(max(vmem_need, 32 << 20), 60 << 20))

    kernel = functools.partial(_spatial_attn_kernel, NB=NB, C=C, H=H, W=W, K=K, P=P)

    out3 = pl.pallas_call(
        kernel,
        out_shape=jax.ShapeDtypeStruct((N, C, HW), x.dtype),
        grid_spec=pltpu.PrefetchScalarGridSpec(
            num_scalar_prefetch=0,
            grid=(N // NB,),
            in_specs=[
                # Conv weight: tiny scalar table -> SMEM (scalar reads only).
                pl.BlockSpec(memory_space=pltpu.MemorySpace.SMEM),
                # NB batch elements per step, lane-dense last dim.
                pl.BlockSpec((NB, C, HW), lambda n: (n, 0, 0)),
            ],
            out_specs=pl.BlockSpec((NB, C, HW), lambda n: (n, 0, 0)),
            scratch_shapes=[
                pltpu.VMEM((2 * NB, Hp, Wp), jnp.float32),   # padded [avg|max] maps
                pltpu.VMEM((NB, 1, HW), jnp.float32),        # flattened gate
            ],
        ),
        compiler_params=pltpu.CompilerParams(
            dimension_semantics=("parallel",),
            vmem_limit_bytes=vmem_limit,
        ),
    )(w_flat, x3)

    return out3.reshape(N, C, H, W)


def spatial_attention_ref(x, weight):
    """Pure-JAX reference mirroring the PyTorch forward."""
    avg = jnp.mean(x, axis=1, keepdims=True)
    mx = jnp.max(x, axis=1, keepdims=True)
    x1 = jnp.concatenate([avg, mx], axis=1)
    pad = weight.shape[-1] // 2
    x2 = jax.lax.conv_general_dilated(
        x1, weight, window_strides=(1, 1),
        padding=((pad, pad), (pad, pad)),
        dimension_numbers=("NCHW", "OIHW", "NCHW"),
    )
    y = jax.nn.sigmoid(x2)
    return y * x + x


if __name__ == "__main__":
    key = jax.random.PRNGKey(0)
    kx, kw = jax.random.split(key)

    N, C, H, W = 2, 4, 16, 16
    KSIZE = 7

    x = jax.random.normal(kx, (N, C, H, W), dtype=jnp.float32)
    # Deterministic synthetic conv weight, matches nn.Conv2d(2, 1, 7, bias=False).
    weight = 0.05 * jax.random.normal(kw, (1, 2, KSIZE, KSIZE), dtype=jnp.float32)

    out = spatial_attention(x, weight, kernel_size=KSIZE)
    out = jax.block_until_ready(out)

    ref = spatial_attention_ref(x, weight)
    assert out.shape == ref.shape == (N, C, H, W)
    assert jnp.allclose(out, ref, atol=1e-5, rtol=1e-5), "mismatch vs JAX reference"

    print("KERNEL_OK")
</pallas_src>

<mosaic_0001>
module attributes {stable_mosaic.version = 11 : i64} {
  func.func @_spatial_attn_kernel(%arg0: i32, %arg1: memref<98xf32, #tpu.memory_space<smem>>, %arg2: memref<2x4x256xf32, #tpu.memory_space<vmem>>, %arg3: memref<2x4x256xf32, #tpu.memory_space<vmem>>, %arg4: memref<4x22x22xf32, #tpu.memory_space<vmem>>, %arg5: memref<2x1x256xf32, #tpu.memory_space<vmem>>) attributes {dimension_semantics = [#tpu.dimension_semantics<parallel>], iteration_bounds = array<i64: 1>, scalar_prefetch = 0 : i64, scratch_operands = 2 : i64, tpu.core_type = #tpu.core_type<tc>, window_params = [{transform_indices = @transform_0, window_bounds = array<i64: 98>}, {transform_indices = @transform_1, window_bounds = array<i64: 2, 4, 256>}, {transform_indices = @transform_2, window_bounds = array<i64: 2, 4, 256>}]} {
    %c0 = arith.constant 0 : index
    %c0_0 = arith.constant 0 : index
    %c0_1 = arith.constant 0 : index
    %0 = vector.load %arg2[%c0, %c0_0, %c0_1] : memref<2x4x256xf32, #tpu.memory_space<vmem>>, vector<2x4x256xf32>
    %cst = arith.constant dense<0.000000e+00> : vector<2x256xf32>
    %1 = vector.multi_reduction <add>, %0, %cst [1] : vector<2x4x256xf32> to vector<2x256xf32>
    %cst_2 = arith.constant 4.000000e+00 : f32
    %2 = vector.broadcast %cst_2 : f32 to vector<2x256xf32>
    %3 = arith.divf %1, %2 : vector<2x256xf32>
    %cst_3 = arith.constant dense<0xFF800000> : vector<2x256xf32>
    %4 = vector.multi_reduction <maximumf>, %0, %cst_3 [1] : vector<2x4x256xf32> to vector<2x256xf32>
    %cst_4 = arith.constant 0.000000e+00 : f32
    %5 = vector.broadcast %cst_4 : f32 to vector<4x22x22xf32>
    %c0_5 = arith.constant 0 : index
    %c0_6 = arith.constant 0 : index
    %c0_7 = arith.constant 0 : index
    %6 = vector.load %arg4[%c0_5, %c0_6, %c0_7] : memref<4x22x22xf32, #tpu.memory_space<vmem>>, vector<4x22x22xf32>
    tpu.vector_store %arg4[%c0_5, %c0_6, %c0_7], %5 {strides = array<i32>} : memref<4x22x22xf32, #tpu.memory_space<vmem>>, vector<4x22x22xf32>,
    %7 = vector.extract_strided_slice %3 {offsets = [0, 0], sizes = [2, 16], strides = [1, 1]} : vector<2x256xf32> to vector<2x16xf32>
    %c0_8 = arith.constant 0 : index
    %c3 = arith.constant 3 : index
    %c3_9 = arith.constant 3 : index
    %8 = vector.load %arg4[%c0_8, %c3, %c3_9] : memref<4x22x22xf32, #tpu.memory_space<vmem>>, vector<2x1x16xf32>
    %9 = vector.shape_cast %8 : vector<2x1x16xf32> to vector<2x16xf32>
    %10 = vector.shape_cast %7 : vector<2x16xf32> to vector<2x1x16xf32>
    tpu.vector_store %arg4[%c0_8, %c3, %c3_9], %10 {strides = array<i32>} : memref<4x22x22xf32, #tpu.memory_space<vmem>>, vector<2x1x16xf32>,
    %11 = vector.extract_strided_slice %4 {offsets = [0, 0], sizes = [2, 16], strides = [1, 1]} : vector<2x256xf32> to vector<2x16xf32>
    %c2 = arith.constant 2 : index
    %c3_10 = arith.constant 3 : index
    %c3_11 = arith.constant 3 : index
    %12 = vector.load %arg4[%c2, %c3_10, %c3_11] : memref<4x22x22xf32, #tpu.memory_space<vmem>>, vector<2x1x16xf32>
    %13 = vector.shape_cast %12 : vector<2x1x16xf32> to vector<2x16xf32>
    %14 = vector.shape_cast %11 : vector<2x16xf32> to vector<2x1x16xf32>
    tpu.vector_store %arg4[%c2, %c3_10, %c3_11], %14 {strides = array<i32>} : memref<4x22x22xf32, #tpu.memory_space<vmem>>, vector<2x1x16xf32>,
    %15 = vector.extract_strided_slice %3 {offsets = [0, 16], sizes = [2, 16], strides = [1, 1]} : vector<2x256xf32> to vector<2x16xf32>
    %c0_12 = arith.constant 0 : index
    %c4 = arith.constant 4 : index
    %c3_13 = arith.constant 3 : index
    %16 = vector.load %arg4[%c0_12, %c4, %c3_13] : memref<4x22x22xf32, #tpu.memory_space<vmem>>, vector<2x1x16xf32>
    %17 = vector.shape_cast %16 : vector<2x1x16xf32> to vector<2x16xf32>
    %18 = vector.shape_cast %15 : vector<2x16xf32> to vector<2x1x16xf32>
    tpu.vector_store %arg4[%c0_12, %c4, %c3_13], %18 {strides = array<i32>} : memref<4x22x22xf32, #tpu.memory_space<vmem>>, vector<2x1x16xf32>,
    %19 = vector.extract_strided_slice %4 {offsets = [0, 16], sizes = [2, 16], strides = [1, 1]} : vector<2x256xf32> to vector<2x16xf32>
    %c2_14 = arith.constant 2 : index
    %c4_15 = arith.constant 4 : index
    %c3_16 = arith.constant 3 : index
    %20 = vector.load %arg4[%c2_14, %c4_15, %c3_16] : memref<4x22x22xf32, #tpu.memory_space<vmem>>, vector<2x1x16xf32>
    %21 = vector.shape_cast %20 : vector<2x1x16xf32> to vector<2x16xf32>
    %22 = vector.shape_cast %19 : vector<2x16xf32> to vector<2x1x16xf32>
    tpu.vector_store %arg4[%c2_14, %c4_15, %c3_16], %22 {strides = array<i32>} : memref<4x22x22xf32, #tpu.memory_space<vmem>>, vector<2x1x16xf32>,
    %23 = vector.extract_strided_slice %3 {offsets = [0, 32], sizes = [2, 16], strides = [1, 1]} : vector<2x256xf32> to vector<2x16xf32>
    %c0_17 = arith.constant 0 : index
    %c5 = arith.constant 5 : index
    %c3_18 = arith.constant 3 : index
    %24 = vector.load %arg4[%c0_17, %c5, %c3_18] : memref<4x22x22xf32, #tpu.memory_space<vmem>>, vector<2x1x16xf32>
    %25 = vector.shape_cast %24 : vector<2x1x16xf32> to vector<2x16xf32>
    %26 = vector.shape_cast %23 : vector<2x16xf32> to vector<2x1x16xf32>
    tpu.vector_store %arg4[%c0_17, %c5, %c3_18], %26 {strides = array<i32>} : memref<4x22x22xf32, #tpu.memory_space<vmem>>, vector<2x1x16xf32>,
    %27 = vector.extract_strided_slice %4 {offsets = [0, 32], sizes = [2, 16], strides = [1, 1]} : vector<2x256xf32> to vector<2x16xf32>
    %c2_19 = arith.constant 2 : index
    %c5_20 = arith.constant 5 : index
    %c3_21 = arith.constant 3 : index
    %28 = vector.load %arg4[%c2_19, %c5_20, %c3_21] : memref<4x22x22xf32, #tpu.memory_space<vmem>>, vector<2x1x16xf32>
    %29 = vector.shape_cast %28 : vector<2x1x16xf32> to vector<2x16xf32>
    %30 = vector.shape_cast %27 : vector<2x16xf32> to vector<2x1x16xf32>
    tpu.vector_store %arg4[%c2_19, %c5_20, %c3_21], %30 {strides = array<i32>} : memref<4x22x22xf32, #tpu.memory_space<vmem>>, vector<2x1x16xf32>,
    %31 = vector.extract_strided_slice %3 {offsets = [0, 48], sizes = [2, 16], strides = [1, 1]} : vector<2x256xf32> to vector<2x16xf32>
    %c0_22 = arith.constant 0 : index
    %c6 = arith.constant 6 : index
    %c3_23 = arith.constant 3 : index
    %32 = vector.load %arg4[%c0_22, %c6, %c3_23] : memref<4x22x22xf32, #tpu.memory_space<vmem>>, vector<2x1x16xf32>
    %33 = vector.shape_cast %32 : vector<2x1x16xf32> to vector<2x16xf32>
    %34 = vector.shape_cast %31 : vector<2x16xf32> to vector<2x1x16xf32>
    tpu.vector_store %arg4[%c0_22, %c6, %c3_23], %34 {strides = array<i32>} : memref<4x22x22xf32, #tpu.memory_space<vmem>>, vector<2x1x16xf32>,
    %35 = vector.extract_strided_slice %4 {offsets = [0, 48], sizes = [2, 16], strides = [1, 1]} : vector<2x256xf32> to vector<2x16xf32>
    %c2_24 = arith.constant 2 : index
    %c6_25 = arith.constant 6 : index
    %c3_26 = arith.constant 3 : index
    %36 = vector.load %arg4[%c2_24, %c6_25, %c3_26] : memref<4x22x22xf32, #tpu.memory_space<vmem>>, vector<2x1x16xf32>
    %37 = vector.shape_cast %36 : vector<2x1x16xf32> to vector<2x16xf32>
    %38 = vector.shape_cast %35 : vector<2x16xf32> to vector<2x1x16xf32>
    tpu.vector_store %arg4[%c2_24, %c6_25, %c3_26], %38 {strides = array<i32>} : memref<4x22x22xf32, #tpu.memory_space<vmem>>, vector<2x1x16xf32>,
    %39 = vector.extract_strided_slice %3 {offsets = [0, 64], sizes = [2, 16], strides = [1, 1]} : vector<2x256xf32> to vector<2x16xf32>
    %c0_27 = arith.constant 0 : index
    %c7 = arith.constant 7 : index
    %c3_28 = arith.constant 3 : index
    %40 = vector.load %arg4[%c0_27, %c7, %c3_28] : memref<4x22x22xf32, #tpu.memory_space<vmem>>, vector<2x1x16xf32>
    %41 = vector.shape_cast %40 : vector<2x1x16xf32> to vector<2x16xf32>
    %42 = vector.shape_cast %39 : vector<2x16xf32> to vector<2x1x16xf32>
    tpu.vector_store %arg4[%c0_27, %c7, %c3_28], %42 {strides = array<i32>} : memref<4x22x22xf32, #tpu.memory_space<vmem>>, vector<2x1x16xf32>,
    %43 = vector.extract_strided_slice %4 {offsets = [0, 64], sizes = [2, 16], strides = [1, 1]} : vector<2x256xf32> to vector<2x16xf32>
    %c2_29 = arith.constant 2 : index
    %c7_30 = arith.constant 7 : index
    %c3_31 = arith.constant 3 : index
    %44 = vector.load %arg4[%c2_29, %c7_30, %c3_31] : memref<4x22x22xf32, #tpu.memory_space<vmem>>, vector<2x1x16xf32>
    %45 = vector.shape_cast %44 : vector<2x1x16xf32> to vector<2x16xf32>
    %46 = vector.shape_cast %43 : vector<2x16xf32> to vector<2x1x16xf32>
    tpu.vector_store %arg4[%c2_29, %c7_30, %c3_31], %46 {strides = array<i32>} : memref<4x22x22xf32, #tpu.memory_space<vmem>>, vector<2x1x16xf32>,
    %47 = vector.extract_strided_slice %3 {offsets = [0, 80], sizes = [2, 16], strides = [1, 1]} : vector<2x256xf32> to vector<2x16xf32>
    %c0_32 = arith.constant 0 : index
    %c8 = arith.constant 8 : index
    %c3_33 = arith.constant 3 : index
    %48 = vector.load %arg4[%c0_32, %c8, %c3_33] : memref<4x22x22xf32, #tpu.memory_space<vmem>>, vector<2x1x16xf32>
    %49 = vector.shape_cast %48 : vector<2x1x16xf32> to vector<2x16xf32>
    %50 = vector.shape_cast %47 : vector<2x16xf32> to vector<2x1x16xf32>
    tpu.vector_store %arg4[%c0_32, %c8, %c3_33], %50 {strides = array<i32>} : memref<4x22x22xf32, #tpu.memory_space<vmem>>, vector<2x1x16xf32>,
    %51 = vector.extract_strided_slice %4 {offsets = [0, 80], sizes = [2, 16], strides = [1, 1]} : vector<2x256xf32> to vector<2x16xf32>
    %c2_34 = arith.constant 2 : index
    %c8_35 = arith.constant 8 : index
    %c3_36 = arith.constant 3 : index
    %52 = vector.load %arg4[%c2_34, %c8_35, %c3_36] : memref<4x22x22xf32, #tpu.memory_space<vmem>>, vector<2x1x16xf32>
    %53 = vector.shape_cast %52 : vector<2x1x16xf32> to vector<2x16xf32>
    %54 = vector.shape_cast %51 : vector<2x16xf32> to vector<2x1x16xf32>
    tpu.vector_store %arg4[%c2_34, %c8_35, %c3_36], %54 {strides = array<i32>} : memref<4x22x22xf32, #tpu.memory_space<vmem>>, vector<2x1x16xf32>,
    %55 = vector.extract_strided_slice %3 {offsets = [0, 96], sizes = [2, 16], strides = [1, 1]} : vector<2x256xf32> to vector<2x16xf32>
    %c0_37 = arith.constant 0 : index
    %c9 = arith.constant 9 : index
    %c3_38 = arith.constant 3 : index
    %56 = vector.load %arg4[%c0_37, %c9, %c3_38] : memref<4x22x22xf32, #tpu.memory_space<vmem>>, vector<2x1x16xf32>
    %57 = vector.shape_cast %56 : vector<2x1x16xf32> to vector<2x16xf32>
    %58 = vector.shape_cast %55 : vector<2x16xf32> to vector<2x1x16xf32>
    tpu.vector_store %arg4[%c0_37, %c9, %c3_38], %58 {strides = array<i32>} : memref<4x22x22xf32, #tpu.memory_space<vmem>>, vector<2x1x16xf32>,
    %59 = vector.extract_strided_slice %4 {offsets = [0, 96], sizes = [2, 16], strides = [1, 1]} : vector<2x256xf32> to vector<2x16xf32>
    %c2_39 = arith.constant 2 : index
    %c9_40 = arith.constant 9 : index
    %c3_41 = arith.constant 3 : index
    %60 = vector.load %arg4[%c2_39, %c9_40, %c3_41] : memref<4x22x22xf32, #tpu.memory_space<vmem>>, vector<2x1x16xf32>
    %61 = vector.shape_cast %60 : vector<2x1x16xf32> to vector<2x16xf32>
    %62 = vector.shape_cast %59 : vector<2x16xf32> to vector<2x1x16xf32>
    tpu.vector_store %arg4[%c2_39, %c9_40, %c3_41], %62 {strides = array<i32>} : memref<4x22x22xf32, #tpu.memory_space<vmem>>, vector<2x1x16xf32>,
    %63 = vector.extract_strided_slice %3 {offsets = [0, 112], sizes = [2, 16], strides = [1, 1]} : vector<2x256xf32> to vector<2x16xf32>
    %c0_42 = arith.constant 0 : index
    %c10 = arith.constant 10 : index
    %c3_43 = arith.constant 3 : index
    %64 = vector.load %arg4[%c0_42, %c10, %c3_43] : memref<4x22x22xf32, #tpu.memory_space<vmem>>, vector<2x1x16xf32>
    %65 = vector.shape_cast %64 : vector<2x1x16xf32> to vector<2x16xf32>
    %66 = vector.shape_cast %63 : vector<2x16xf32> to vector<2x1x16xf32>
    tpu.vector_store %arg4[%c0_42, %c10, %c3_43], %66 {strides = array<i32>} : memref<4x22x22xf32, #tpu.memory_space<vmem>>, vector<2x1x16xf32>,
    %67 = vector.extract_strided_slice %4 {offsets = [0, 112], sizes = [2, 16], strides = [1, 1]} : vector<2x256xf32> to vector<2x16xf32>
    %c2_44 = arith.constant 2 : index
    %c10_45 = arith.constant 10 : index
    %c3_46 = arith.constant 3 : index
    %68 = vector.load %arg4[%c2_44, %c10_45, %c3_46] : memref<4x22x22xf32, #tpu.memory_space<vmem>>, vector<2x1x16xf32>
    %69 = vector.shape_cast %68 : vector<2x1x16xf32> to vector<2x16xf32>
    %70 = vector.shape_cast %67 : vector<2x16xf32> to vector<2x1x16xf32>
    tpu.vector_store %arg4[%c2_44, %c10_45, %c3_46], %70 {strides = array<i32>} : memref<4x22x22xf32, #tpu.memory_space<vmem>>, vector<2x1x16xf32>,
    %71 = vector.extract_strided_slice %3 {offsets = [0, 128], sizes = [2, 16], strides = [1, 1]} : vector<2x256xf32> to vector<2x16xf32>
    %c0_47 = arith.constant 0 : index
    %c11 = arith.constant 11 : index
    %c3_48 = arith.constant 3 : index
    %72 = vector.load %arg4[%c0_47, %c11, %c3_48] : memref<4x22x22xf32, #tpu.memory_space<vmem>>, vector<2x1x16xf32>
    %73 = vector.shape_cast %72 : vector<2x1x16xf32> to vector<2x16xf32>
    %74 = vector.shape_cast %71 : vector<2x16xf32> to vector<2x1x16xf32>
    tpu.vector_store %arg4[%c0_47, %c11, %c3_48], %74 {strides = array<i32>} : memref<4x22x22xf32, #tpu.memory_space<vmem>>, vector<2x1x16xf32>,
    %75 = vector.extract_strided_slice %4 {offsets = [0, 128], sizes = [2, 16], strides = [1, 1]} : vector<2x256xf32> to vector<2x16xf32>
    %c2_49 = arith.constant 2 : index
    %c11_50 = arith.constant 11 : index
    %c3_51 = arith.constant 3 : index
    %76 = vector.load %arg4[%c2_49, %c11_50, %c3_51] : memref<4x22x22xf32, #tpu.memory_space<vmem>>, vector<2x1x16xf32>
    %77 = vector.shape_cast %76 : vector<2x1x16xf32> to vector<2x16xf32>
    %78 = vector.shape_cast %75 : vector<2x16xf32> to vector<2x1x16xf32>
    tpu.vector_store %arg4[%c2_49, %c11_50, %c3_51], %78 {strides = array<i32>} : memref<4x22x22xf32, #tpu.memory_space<vmem>>, vector<2x1x16xf32>,
    %79 = vector.extract_strided_slice %3 {offsets = [0, 144], sizes = [2, 16], strides = [1, 1]} : vector<2x256xf32> to vector<2x16xf32>
    %c0_52 = arith.constant 0 : index
    %c12 = arith.constant 12 : index
    %c3_53 = arith.constant 3 : index
    %80 = vector.load %arg4[%c0_52, %c12, %c3_53] : memref<4x22x22xf32, #tpu.memory_space<vmem>>, vector<2x1x16xf32>
    %81 = vector.shape_cast %80 : vector<2x1x16xf32> to vector<2x16xf32>
    %82 = vector.shape_cast %79 : vector<2x16xf32> to vector<2x1x16xf32>
    tpu.vector_store %arg4[%c0_52, %c12, %c3_53], %82 {strides = array<i32>} : memref<4x22x22xf32, #tpu.memory_space<vmem>>, vector<2x1x16xf32>,
    %83 = vector.extract_strided_slice %4 {offsets = [0, 144], sizes = [2, 16], strides = [1, 1]} : vector<2x256xf32> to vector<2x16xf32>
    %c2_54 = arith.constant 2 : index
    %c12_55 = arith.constant 12 : index
    %c3_56 = arith.constant 3 : index
    %84 = vector.load %arg4[%c2_54, %c12_55, %c3_56] : memref<4x22x22xf32, #tpu.memory_space<vmem>>, vector<2x1x16xf32>
    %85 = vector.shape_cast %84 : vector<2x1x16xf32> to vector<2x16xf32>
    %86 = vector.shape_cast %83 : vector<2x16xf32> to vector<2x1x16xf32>
    tpu.vector_store %arg4[%c2_54, %c12_55, %c3_56], %86 {strides = array<i32>} : memref<4x22x22xf32, #tpu.memory_space<vmem>>, vector<2x1x16xf32>,
    %87 = vector.extract_strided_slice %3 {offsets = [0, 160], sizes = [2, 16], strides = [1, 1]} : vector<2x256xf32> to vector<2x16xf32>
    %c0_57 = arith.constant 0 : index
    %c13 = arith.constant 13 : index
    %c3_58 = arith.constant 3 : index
    %88 = vector.load %arg4[%c0_57, %c13, %c3_58] : memref<4x22x22xf32, #tpu.memory_space<vmem>>, vector<2x1x16xf32>
    %89 = vector.shape_cast %88 : vector<2x1x16xf32> to vector<2x16xf32>
    %90 = vector.shape_cast %87 : vector<2x16xf32> to vector<2x1x16xf32>
    tpu.vector_store %arg4[%c0_57, %c13, %c3_58], %90 {strides = array<i32>} : memref<4x22x22xf32, #tpu.memory_space<vmem>>, vector<2x1x16xf32>,
    %91 = vector.extract_strided_slice %4 {offsets = [0, 160], sizes = [2, 16], strides = [1, 1]} : vector<2x256xf32> to vector<2x16xf32>
    %c2_59 = arith.constant 2 : index
    %c13_60 = arith.constant 13 : index
    %c3_61 = arith.constant 3 : index
    %92 = vector.load %arg4[%c2_59, %c13_60, %c3_61] : memref<4x22x22xf32, #tpu.memory_space<vmem>>, vector<2x1x16xf32>
    %93 = vector.shape_cast %92 : vector<2x1x16xf32> to vector<2x16xf32>
    %94 = vector.shape_cast %91 : vector<2x16xf32> to vector<2x1x16xf32>
    tpu.vector_store %arg4[%c2_59, %c13_60, %c3_61], %94 {strides = array<i32>} : memref<4x22x22xf32, #tpu.memory_space<vmem>>, vector<2x1x16xf32>,
    %95 = vector.extract_strided_slice %3 {offsets = [0, 176], sizes = [2, 16], strides = [1, 1]} : vector<2x256xf32> to vector<2x16xf32>
    %c0_62 = arith.constant 0 : index
    %c14 = arith.constant 14 : index
    %c3_63 = arith.constant 3 : index
    %96 = vector.load %arg4[%c0_62, %c14, %c3_63] : memref<4x22x22xf32, #tpu.memory_space<vmem>>, vector<2x1x16xf32>
    %97 = vector.shape_cast %96 : vector<2x1x16xf32> to vector<2x16xf32>
    %98 = vector.shape_cast %95 : vector<2x16xf32> to vector<2x1x16xf32>
    tpu.vector_store %arg4[%c0_62, %c14, %c3_63], %98 {strides = array<i32>} : memref<4x22x22xf32, #tpu.memory_space<vmem>>, vector<2x1x16xf32>,
    %99 = vector.extract_strided_slice %4 {offsets = [0, 176], sizes = [2, 16], strides = [1, 1]} : vector<2x256xf32> to vector<2x16xf32>
    %c2_64 = arith.constant 2 : index
    %c14_65 = arith.constant 14 : index
    %c3_66 = arith.constant 3 : index
    %100 = vector.load %arg4[%c2_64, %c14_65, %c3_66] : memref<4x22x22xf32, #tpu.memory_space<vmem>>, vector<2x1x16xf32>
    %101 = vector.shape_cast %100 : vector<2x1x16xf32> to vector<2x16xf32>
    %102 = vector.shape_cast %99 : vector<2x16xf32> to vector<2x1x16xf32>
    tpu.vector_store %arg4[%c2_64, %c14_65, %c3_66], %102 {strides = array<i32>} : memref<4x22x22xf32, #tpu.memory_space<vmem>>, vector<2x1x16xf32>,
    %103 = vector.extract_strided_slice %3 {offsets = [0, 192], sizes = [2, 16], strides = [1, 1]} : vector<2x256xf32> to vector<2x16xf32>
    %c0_67 = arith.constant 0 : index
    %c15 = arith.constant 15 : index
    %c3_68 = arith.constant 3 : index
    %104 = vector.load %arg4[%c0_67, %c15, %c3_68] : memref<4x22x22xf32, #tpu.memory_space<vmem>>, vector<2x1x16xf32>
    %105 = vector.shape_cast %104 : vector<2x1x16xf32> to vector<2x16xf32>
    %106 = vector.shape_cast %103 : vector<2x16xf32> to vector<2x1x16xf32>
    tpu.vector_store %arg4[%c0_67, %c15, %c3_68], %106 {strides = array<i32>} : memref<4x22x22xf32, #tpu.memory_space<vmem>>, vector<2x1x16xf32>,
    %107 = vector.extract_strided_slice %4 {offsets = [0, 192], sizes = [2, 16], strides = [1, 1]} : vector<2x256xf32> to vector<2x16xf32>
    %c2_69 = arith.constant 2 : index
    %c15_70 = arith.constant 15 : index
    %c3_71 = arith.constant 3 : index
    %108 = vector.load %arg4[%c2_69, %c15_70, %c3_71] : memref<4x22x22xf32, #tpu.memory_space<vmem>>, vector<2x1x16xf32>
    %109 = vector.shape_cast %108 : vector<2x1x16xf32> to vector<2x16xf32>
    %110 = vector.shape_cast %107 : vector<2x16xf32> to vector<2x1x16xf32>
    tpu.vector_store %arg4[%c2_69, %c15_70, %c3_71], %110 {strides = array<i32>} : memref<4x22x22xf32, #tpu.memory_space<vmem>>, vector<2x1x16xf32>,
    %111 = vector.extract_strided_slice %3 {offsets = [0, 208], sizes = [2, 16], strides = [1, 1]} : vector<2x256xf32> to vector<2x16xf32>
    %c0_72 = arith.constant 0 : index
    %c16 = arith.constant 16 : index
    %c3_73 = arith.constant 3 : index
    %112 = vector.load %arg4[%c0_72, %c16, %c3_73] : memref<4x22x22xf32, #tpu.memory_space<vmem>>, vector<2x1x16xf32>
    %113 = vector.shape_cast %112 : vector<2x1x16xf32> to vector<2x16xf32>
    %114 = vector.shape_cast %111 : vector<2x16xf32> to vector<2x1x16xf32>
    tpu.vector_store %arg4[%c0_72, %c16, %c3_73], %114 {strides = array<i32>} : memref<4x22x22xf32, #tpu.memory_space<vmem>>, vector<2x1x16xf32>,
    %115 = vector.extract_strided_slice %4 {offsets = [0, 208], sizes = [2, 16], strides = [1, 1]} : vector<2x256xf32> to vector<2x16xf32>
    %c2_74 = arith.constant 2 : index
    %c16_75 = arith.constant 16 : index
    %c3_76 = arith.constant 3 : index
    %116 = vector.load %arg4[%c2_74, %c16_75, %c3_76] : memref<4x22x22xf32, #tpu.memory_space<vmem>>, vector<2x1x16xf32>
    %117 = vector.shape_cast %116 : vector<2x1x16xf32> to vector<2x16xf32>
    %118 = vector.shape_cast %115 : vector<2x16xf32> to vector<2x1x16xf32>
    tpu.vector_store %arg4[%c2_74, %c16_75, %c3_76], %118 {strides = array<i32>} : memref<4x22x22xf32, #tpu.memory_space<vmem>>, vector<2x1x16xf32>,
    %119 = vector.extract_strided_slice %3 {offsets = [0, 224], sizes = [2, 16], strides = [1, 1]} : vector<2x256xf32> to vector<2x16xf32>
    %c0_77 = arith.constant 0 : index
    %c17 = arith.constant 17 : index
    %c3_78 = arith.constant 3 : index
    %120 = vector.load %arg4[%c0_77, %c17, %c3_78] : memref<4x22x22xf32, #tpu.memory_space<vmem>>, vector<2x1x16xf32>
    %121 = vector.shape_cast %120 : vector<2x1x16xf32> to vector<2x16xf32>
    %122 = vector.shape_cast %119 : vector<2x16xf32> to vector<2x1x16xf32>
    tpu.vector_store %arg4[%c0_77, %c17, %c3_78], %122 {strides = array<i32>} : memref<4x22x22xf32, #tpu.memory_space<vmem>>, vector<2x1x16xf32>,
    %123 = vector.extract_strided_slice %4 {offsets = [0, 224], sizes = [2, 16], strides = [1, 1]} : vector<2x256xf32> to vector<2x16xf32>
    %c2_79 = arith.constant 2 : index
    %c17_80 = arith.constant 17 : index
    %c3_81 = arith.constant 3 : index
    %124 = vector.load %arg4[%c2_79, %c17_80, %c3_81] : memref<4x22x22xf32, #tpu.memory_space<vmem>>, vector<2x1x16xf32>
    %125 = vector.shape_cast %124 : vector<2x1x16xf32> to vector<2x16xf32>
    %126 = vector.shape_cast %123 : vector<2x16xf32> to vector<2x1x16xf32>
    tpu.vector_store %arg4[%c2_79, %c17_80, %c3_81], %126 {strides = array<i32>} : memref<4x22x22xf32, #tpu.memory_space<vmem>>, vector<2x1x16xf32>,
    %127 = vector.extract_strided_slice %3 {offsets = [0, 240], sizes = [2, 16], strides = [1, 1]} : vector<2x256xf32> to vector<2x16xf32>
    %c0_82 = arith.constant 0 : index
    %c18 = arith.constant 18 : index
    %c3_83 = arith.constant 3 : index
    %128 = vector.load %arg4[%c0_82, %c18, %c3_83] : memref<4x22x22xf32, #tpu.memory_space<vmem>>, vector<2x1x16xf32>
    %129 = vector.shape_cast %128 : vector<2x1x16xf32> to vector<2x16xf32>
    %130 = vector.shape_cast %127 : vector<2x16xf32> to vector<2x1x16xf32>
    tpu.vector_store %arg4[%c0_82, %c18, %c3_83], %130 {strides = array<i32>} : memref<4x22x22xf32, #tpu.memory_space<vmem>>, vector<2x1x16xf32>,
    %131 = vector.extract_strided_slice %4 {offsets = [0, 240], sizes = [2, 16], strides = [1, 1]} : vector<2x256xf32> to vector<2x16xf32>
    %c2_84 = arith.constant 2 : index
    %c18_85 = arith.constant 18 : index
    %c3_86 = arith.constant 3 : index
    %132 = vector.load %arg4[%c2_84, %c18_85, %c3_86] : memref<4x22x22xf32, #tpu.memory_space<vmem>>, vector<2x1x16xf32>
    %133 = vector.shape_cast %132 : vector<2x1x16xf32> to vector<2x16xf32>
    %134 = vector.shape_cast %131 : vector<2x16xf32> to vector<2x1x16xf32>
    tpu.vector_store %arg4[%c2_84, %c18_85, %c3_86], %134 {strides = array<i32>} : memref<4x22x22xf32, #tpu.memory_space<vmem>>, vector<2x1x16xf32>,
    %cst_87 = arith.constant 0.000000e+00 : f32
    %135 = vector.broadcast %cst_87 : f32 to vector<2x16x16xf32>
    %c0_88 = arith.constant 0 : index
    %136 = memref.load %arg1[%c0_88] : memref<98xf32, #tpu.memory_space<smem>>
    %c0_89 = arith.constant 0 : index
    %c0_90 = arith.constant 0 : index
    %c0_91 = arith.constant 0 : index
    %137 = vector.load %arg4[%c0_89, %c0_90, %c0_91] : memref<4x22x22xf32, #tpu.memory_space<vmem>>, vector<2x16x16xf32>
    %138 = vector.broadcast %136 : f32 to vector<2x16x16xf32>
    %139 = arith.mulf %138, %137 : vector<2x16x16xf32>
    %140 = arith.addf %135, %139 : vector<2x16x16xf32>
    %c1 = arith.constant 1 : index
    %141 = memref.load %arg1[%c1] : memref<98xf32, #tpu.memory_space<smem>>
    %c0_92 = arith.constant 0 : index
    %c0_93 = arith.constant 0 : index
    %c1_94 = arith.constant 1 : index
    %142 = vector.load %arg4[%c0_92, %c0_93, %c1_94] : memref<4x22x22xf32, #tpu.memory_space<vmem>>, vector<2x16x16xf32>
    %143 = vector.broadcast %141 : f32 to vector<2x16x16xf32>
    %144 = arith.mulf %143, %142 : vector<2x16x16xf32>
    %145 = arith.addf %140, %144 : vector<2x16x16xf32>
    %c2_95 = arith.constant 2 : index
    %146 = memref.load %arg1[%c2_95] : memref<98xf32, #tpu.memory_space<smem>>
    %c0_96 = arith.constant 0 : index
    %c0_97 = arith.constant 0 : index
    %c2_98 = arith.constant 2 : index
    %147 = vector.load %arg4[%c0_96, %c0_97, %c2_98] : memref<4x22x22xf32, #tpu.memory_space<vmem>>, vector<2x16x16xf32>
    %148 = vector.broadcast %146 : f32 to vector<2x16x16xf32>
    %149 = arith.mulf %148, %147 : vector<2x16x16xf32>
    %150 = arith.addf %145, %149 : vector<2x16x16xf32>
    %c3_99 = arith.constant 3 : index
    %151 = memref.load %arg1[%c3_99] : memref<98xf32, #tpu.memory_space<smem>>
    %c0_100 = arith.constant 0 : index
    %c0_101 = arith.constant 0 : index
    %c3_102 = arith.constant 3 : index
    %152 = vector.load %arg4[%c0_100, %c0_101, %c3_102] : memref<4x22x22xf32, #tpu.memory_space<vmem>>, vector<2x16x16xf32>
    %153 = vector.broadcast %151 : f32 to vector<2x16x16xf32>
    %154 = arith.mulf %153, %152 : vector<2x16x16xf32>
    %155 = arith.addf %150, %154 : vector<2x16x16xf32>
    %c4_103 = arith.constant 4 : index
    %156 = memref.load %arg1[%c4_103] : memref<98xf32, #tpu.memory_space<smem>>
    %c0_104 = arith.constant 0 : index
    %c0_105 = arith.constant 0 : index
    %c4_106 = arith.constant 4 : index
    %157 = vector.load %arg4[%c0_104, %c0_105, %c4_106] : memref<4x22x22xf32, #tpu.memory_space<vmem>>, vector<2x16x16xf32>
    %158 = vector.broadcast %156 : f32 to vector<2x16x16xf32>
    %159 = arith.mulf %158, %157 : vector<2x16x16xf32>
    %160 = arith.addf %155, %159 : vector<2x16x16xf32>
    %c5_107 = arith.constant 5 : index
    %161 = memref.load %arg1[%c5_107] : memref<98xf32, #tpu.memory_space<smem>>
    %c0_108 = arith.constant 0 : index
    %c0_109 = arith.constant 0 : index
    %c5_110 = arith.constant 5 : index
    %162 = vector.load %arg4[%c0_108, %c0_109, %c5_110] : memref<4x22x22xf32, #tpu.memory_space<vmem>>, vector<2x16x16xf32>
    %163 = vector.broadcast %161 : f32 to vector<2x16x16xf32>
    %164 = arith.mulf %163, %162 : vector<2x16x16xf32>
    %165 = arith.addf %160, %164 : vector<2x16x16xf32>
    %c6_111 = arith.constant 6 : index
    %166 = memref.load %arg1[%c6_111] : memref<98xf32, #tpu.memory_space<smem>>
    %c0_112 = arith.constant 0 : index
    %c0_113 = arith.constant 0 : index
    %c6_114 = arith.constant 6 : index
    %167 = vector.load %arg4[%c0_112, %c0_113, %c6_114] : memref<4x22x22xf32, #tpu.memory_space<vmem>>, vector<2x16x16xf32>
    %168 = vector.broadcast %166 : f32 to vector<2x16x16xf32>
    %169 = arith.mulf %168, %167 : vector<2x16x16xf32>
    %170 = arith.addf %165, %169 : vector<2x16x16xf32>
    %c7_115 = arith.constant 7 : index
    %171 = memref.load %arg1[%c7_115] : memref<98xf32, #tpu.memory_space<smem>>
    %c0_116 = arith.constant 0 : index
    %c1_117 = arith.constant 1 : index
    %c0_118 = arith.constant 0 : index
    %172 = vector.load %arg4[%c0_116, %c1_117, %c0_118] : memref<4x22x22xf32, #tpu.memory_space<vmem>>, vector<2x16x16xf32>
    %173 = vector.broadcast %171 : f32 to vector<2x16x16xf32>
    %174 = arith.mulf %173, %172 : vector<2x16x16xf32>
    %175 = arith.addf %170, %174 : vector<2x16x16xf32>
    %c8_119 = arith.constant 8 : index
    %176 = memref.load %arg1[%c8_119] : memref<98xf32, #tpu.memory_space<smem>>
    %c0_120 = arith.constant 0 : index
    %c1_121 = arith.constant 1 : index
    %c1_122 = arith.constant 1 : index
    %177 = vector.load %arg4[%c0_120, %c1_121, %c1_122] : memref<4x22x22xf32, #tpu.memory_space<vmem>>, vector<2x16x16xf32>
    %178 = vector.broadcast %176 : f32 to vector<2x16x16xf32>
    %179 = arith.mulf %178, %177 : vector<2x16x16xf32>
    %180 = arith.addf %175, %179 : vector<2x16x16xf32>
    %c9_123 = arith.constant 9 : index
    %181 = memref.load %arg1[%c9_123] : memref<98xf32, #tpu.memory_space<smem>>
    %c0_124 = arith.constant 0 : index
    %c1_125 = arith.constant 1 : index
    %c2_126 = arith.constant 2 : index
    %182 = vector.load %arg4[%c0_124, %c1_125, %c2_126] : memref<4x22x22xf32, #tpu.memory_space<vmem>>, vector<2x16x16xf32>
    %183 = vector.broadcast %181 : f32 to vector<2x16x16xf32>
    %184 = arith.mulf %183, %182 : vector<2x16x16xf32>
    %185 = arith.addf %180, %184 : vector<2x16x16xf32>
    %c10_127 = arith.constant 10 : index
    %186 = memref.load %arg1[%c10_127] : memref<98xf32, #tpu.memory_space<smem>>
    %c0_128 = arith.constant 0 : index
    %c1_129 = arith.constant 1 : index
    %c3_130 = arith.constant 3 : index
    %187 = vector.load %arg4[%c0_128, %c1_129, %c3_130] : memref<4x22x22xf32, #tpu.memory_space<vmem>>, vector<2x16x16xf32>
    %188 = vector.broadcast %186 : f32 to vector<2x16x16xf32>
    %189 = arith.mulf %188, %187 : vector<2x16x16xf32>
    %190 = arith.addf %185, %189 : vector<2x16x16xf32>
    %c11_131 = arith.constant 11 : index
    %191 = memref.load %arg1[%c11_131] : memref<98xf32, #tpu.memory_space<smem>>
    %c0_132 = arith.constant 0 : index
    %c1_133 = arith.constant 1 : index
    %c4_134 = arith.constant 4 : index
    %192 = vector.load %arg4[%c0_132, %c1_133, %c4_134] : memref<4x22x22xf32, #tpu.memory_space<vmem>>, vector<2x16x16xf32>
    %193 = vector.broadcast %191 : f32 to vector<2x16x16xf32>
    %194 = arith.mulf %193, %192 : vector<2x16x16xf32>
    %195 = arith.addf %190, %194 : vector<2x16x16xf32>
    %c12_135 = arith.constant 12 : index
    %196 = memref.load %arg1[%c12_135] : memref<98xf32, #tpu.memory_space<smem>>
    %c0_136 = arith.constant 0 : index
    %c1_137 = arith.constant 1 : index
    %c5_138 = arith.constant 5 : index
    %197 = vector.load %arg4[%c0_136, %c1_137, %c5_138] : memref<4x22x22xf32, #tpu.memory_space<vmem>>, vector<2x16x16xf32>
    %198 = vector.broadcast %196 : f32 to vector<2x16x16xf32>
    %199 = arith.mulf %198, %197 : vector<2x16x16xf32>
    %200 = arith.addf %195, %199 : vector<2x16x16xf32>
    %c13_139 = arith.constant 13 : index
    %201 = memref.load %arg1[%c13_139] : memref<98xf32, #tpu.memory_space<smem>>
    %c0_140 = arith.constant 0 : index
    %c1_141 = arith.constant 1 : index
    %c6_142 = arith.constant 6 : index
    %202 = vector.load %arg4[%c0_140, %c1_141, %c6_142] : memref<4x22x22xf32, #tpu.memory_space<vmem>>, vector<2x16x16xf32>
    %203 = vector.broadcast %201 : f32 to vector<2x16x16xf32>
    %204 = arith.mulf %203, %202 : vector<2x16x16xf32>
    %205 = arith.addf %200, %204 : vector<2x16x16xf32>
    %c14_143 = arith.constant 14 : index
    %206 = memref.load %arg1[%c14_143] : memref<98xf32, #tpu.memory_space<smem>>
    %c0_144 = arith.constant 0 : index
    %c2_145 = arith.constant 2 : index
    %c0_146 = arith.constant 0 : index
    %207 = vector.load %arg4[%c0_144, %c2_145, %c0_146] : memref<4x22x22xf32, #tpu.memory_space<vmem>>, vector<2x16x16xf32>
    %208 = vector.broadcast %206 : f32 to vector<2x16x16xf32>
    %209 = arith.mulf %208, %207 : vector<2x16x16xf32>
    %210 = arith.addf %205, %209 : vector<2x16x16xf32>
    %c15_147 = arith.constant 15 : index
    %211 = memref.load %arg1[%c15_147] : memref<98xf32, #tpu.memory_space<smem>>
    %c0_148 = arith.constant 0 : index
    %c2_149 = arith.constant 2 : index
    %c1_150 = arith.constant 1 : index
    %212 = vector.load %arg4[%c0_148, %c2_149, %c1_150] : memref<4x22x22xf32, #tpu.memory_space<vmem>>, vector<2x16x16xf32>
    %213 = vector.broadcast %211 : f32 to vector<2x16x16xf32>
    %214 = arith.mulf %213, %212 : vector<2x16x16xf32>
    %215 = arith.addf %210, %214 : vector<2x16x16xf32>
    %c16_151 = arith.constant 16 : index
    %216 = memref.load %arg1[%c16_151] : memref<98xf32, #tpu.memory_space<smem>>
    %c0_152 = arith.constant 0 : index
    %c2_153 = arith.constant 2 : index
    %c2_154 = arith.constant 2 : index
    %217 = vector.load %arg4[%c0_152, %c2_153, %c2_154] : memref<4x22x22xf32, #tpu.memory_space<vmem>>, vector<2x16x16xf32>
    %218 = vector.broadcast %216 : f32 to vector<2x16x16xf32>
    %219 = arith.mulf %218, %217 : vector<2x16x16xf32>
    %220 = arith.addf %215, %219 : vector<2x16x16xf32>
    %c17_155 = arith.constant 17 : index
    %221 = memref.load %arg1[%c17_155] : memref<98xf32, #tpu.memory_space<smem>>
    %c0_156 = arith.constant 0 : index
    %c2_157 = arith.constant 2 : index
    %c3_158 = arith.constant 3 : index
    %222 = vector.load %arg4[%c0_156, %c2_157, %c3_158] : memref<4x22x22xf32, #tpu.memory_space<vmem>>, vector<2x16x16xf32>
    %223 = vector.broadcast %221 : f32 to vector<2x16x16xf32>
    %224 = arith.mulf %223, %222 : vector<2x16x16xf32>
    %225 = arith.addf %220, %224 : vector<2x16x16xf32>
    %c18_159 = arith.constant 18 : index
    %226 = memref.load %arg1[%c18_159] : memref<98xf32, #tpu.memory_space<smem>>
    %c0_160 = arith.constant 0 : index
    %c2_161 = arith.constant 2 : index
    %c4_162 = arith.constant 4 : index
    %227 = vector.load %arg4[%c0_160, %c2_161, %c4_162] : memref<4x22x22xf32, #tpu.memory_space<vmem>>, vector<2x16x16xf32>
    %228 = vector.broadcast %226 : f32 to vector<2x16x16xf32>
    %229 = arith.mulf %228, %227 : vector<2x16x16xf32>
    %230 = arith.addf %225, %229 : vector<2x16x16xf32>
    %c19 = arith.constant 19 : index
    %231 = memref.load %arg1[%c19] : memref<98xf32, #tpu.memory_space<smem>>
    %c0_163 = arith.constant 0 : index
    %c2_164 = arith.constant 2 : index
    %c5_165 = arith.constant 5 : index
    %232 = vector.load %arg4[%c0_163, %c2_164, %c5_165] : memref<4x22x22xf32, #tpu.memory_space<vmem>>, vector<2x16x16xf32>
    %233 = vector.broadcast %231 : f32 to vector<2x16x16xf32>
    %234 = arith.mulf %233, %232 : vector<2x16x16xf32>
    %235 = arith.addf %230, %234 : vector<2x16x16xf32>
    %c20 = arith.constant 20 : index
    %236 = memref.load %arg1[%c20] : memref<98xf32, #tpu.memory_space<smem>>
    %c0_166 = arith.constant 0 : index
    %c2_167 = arith.constant 2 : index
    %c6_168 = arith.constant 6 : index
    %237 = vector.load %arg4[%c0_166, %c2_167, %c6_168] : memref<4x22x22xf32, #tpu.memory_space<vmem>>, vector<2x16x16xf32>
    %238 = vector.broadcast %236 : f32 to vector<2x16x16xf32>
    %239 = arith.mulf %238, %237 : vector<2x16x16xf32>
    %240 = arith.addf %235, %239 : vector<2x16x16xf32>
    %c21 = arith.constant 21 : index
    %241 = memref.load %arg1[%c21] : memref<98xf32, #tpu.memory_space<smem>>
    %c0_169 = arith.constant 0 : index
    %c3_170 = arith.constant 3 : index
    %c0_171 = arith.constant 0 : index
    %242 = vector.load %arg4[%c0_169, %c3_170, %c0_171] : memref<4x22x22xf32, #tpu.memory_space<vmem>>, vector<2x16x16xf32>
    %243 = vector.broadcast %241 : f32 to vector<2x16x16xf32>
    %244 = arith.mulf %243, %242 : vector<2x16x16xf32>
    %245 = arith.addf %240, %244 : vector<2x16x16xf32>
    %c22 = arith.constant 22 : index
    %246 = memref.load %arg1[%c22] : memref<98xf32, #tpu.memory_space<smem>>
    %c0_172 = arith.constant 0 : index
    %c3_173 = arith.constant 3 : index
    %c1_174 = arith.constant 1 : index
    %247 = vector.load %arg4[%c0_172, %c3_173, %c1_174] : memref<4x22x22xf32, #tpu.memory_space<vmem>>, vector<2x16x16xf32>
    %248 = vector.broadcast %246 : f32 to vector<2x16x16xf32>
    %249 = arith.mulf %248, %247 : vector<2x16x16xf32>
    %250 = arith.addf %245, %249 : vector<2x16x16xf32>
    %c23 = arith.constant 23 : index
    %251 = memref.load %arg1[%c23] : memref<98xf32, #tpu.memory_space<smem>>
    %c0_175 = arith.constant 0 : index
    %c3_176 = arith.constant 3 : index
    %c2_177 = arith.constant 2 : index
    %252 = vector.load %arg4[%c0_175, %c3_176, %c2_177] : memref<4x22x22xf32, #tpu.memory_space<vmem>>, vector<2x16x16xf32>
    %253 = vector.broadcast %251 : f32 to vector<2x16x16xf32>
    %254 = arith.mulf %253, %252 : vector<2x16x16xf32>
    %255 = arith.addf %250, %254 : vector<2x16x16xf32>
    %c24 = arith.constant 24 : index
    %256 = memref.load %arg1[%c24] : memref<98xf32, #tpu.memory_space<smem>>
    %c0_178 = arith.constant 0 : index
    %c3_179 = arith.constant 3 : index
    %c3_180 = arith.constant 3 : index
    %257 = vector.load %arg4[%c0_178, %c3_179, %c3_180] : memref<4x22x22xf32, #tpu.memory_space<vmem>>, vector<2x16x16xf32>
    %258 = vector.broadcast %256 : f32 to vector<2x16x16xf32>
    %259 = arith.mulf %258, %257 : vector<2x16x16xf32>
    %260 = arith.addf %255, %259 : vector<2x16x16xf32>
    %c25 = arith.constant 25 : index
    %261 = memref.load %arg1[%c25] : memref<98xf32, #tpu.memory_space<smem>>
    %c0_181 = arith.constant 0 : index
    %c3_182 = arith.constant 3 : index
    %c4_183 = arith.constant 4 : index
    %262 = vector.load %arg4[%c0_181, %c3_182, %c4_183] : memref<4x22x22xf32, #tpu.memory_space<vmem>>, vector<2x16x16xf32>
    %263 = vector.broadcast %261 : f32 to vector<2x16x16xf32>
    %264 = arith.mulf %263, %262 : vector<2x16x16xf32>
    %265 = arith.addf %260, %264 : vector<2x16x16xf32>
    %c26 = arith.constant 26 : index
    %266 = memref.load %arg1[%c26] : memref<98xf32, #tpu.memory_space<smem>>
    %c0_184 = arith.constant 0 : index
    %c3_185 = arith.constant 3 : index
    %c5_186 = arith.constant 5 : index
    %267 = vector.load %arg4[%c0_184, %c3_185, %c5_186] : memref<4x22x22xf32, #tpu.memory_space<vmem>>, vector<2x16x16xf32>
    %268 = vector.broadcast %266 : f32 to vector<2x16x16xf32>
    %269 = arith.mulf %268, %267 : vector<2x16x16xf32>
    %270 = arith.addf %265, %269 : vector<2x16x16xf32>
    %c27 = arith.constant 27 : index
    %271 = memref.load %arg1[%c27] : memref<98xf32, #tpu.memory_space<smem>>
    %c0_187 = arith.constant 0 : index
    %c3_188 = arith.constant 3 : index
    %c6_189 = arith.constant 6 : index
    %272 = vector.load %arg4[%c0_187, %c3_188, %c6_189] : memref<4x22x22xf32, #tpu.memory_space<vmem>>, vector<2x16x16xf32>
    %273 = vector.broadcast %271 : f32 to vector<2x16x16xf32>
    %274 = arith.mulf %273, %272 : vector<2x16x16xf32>
    %275 = arith.addf %270, %274 : vector<2x16x16xf32>
    %c28 = arith.constant 28 : index
    %276 = memref.load %arg1[%c28] : memref<98xf32, #tpu.memory_space<smem>>
    %c0_190 = arith.constant 0 : index
    %c4_191 = arith.constant 4 : index
    %c0_192 = arith.constant 0 : index
    %277 = vector.load %arg4[%c0_190, %c4_191, %c0_192] : memref<4x22x22xf32, #tpu.memory_space<vmem>>, vector<2x16x16xf32>
    %278 = vector.broadcast %276 : f32 to vector<2x16x16xf32>
    %279 = arith.mulf %278, %277 : vector<2x16x16xf32>
    %280 = arith.addf %275, %279 : vector<2x16x16xf32>
    %c29 = arith.constant 29 : index
    %281 = memref.load %arg1[%c29] : memref<98xf32, #tpu.memory_space<smem>>
    %c0_193 = arith.constant 0 : index
    %c4_194 = arith.constant 4 : index
    %c1_195 = arith.constant 1 : index
    %282 = vector.load %arg4[%c0_193, %c4_194, %c1_195] : memref<4x22x22xf32, #tpu.memory_space<vmem>>, vector<2x16x16xf32>
    %283 = vector.broadcast %281 : f32 to vector<2x16x16xf32>
    %284 = arith.mulf %283, %282 : vector<2x16x16xf32>
    %285 = arith.addf %280, %284 : vector<2x16x16xf32>
    %c30 = arith.constant 30 : index
    %286 = memref.load %arg1[%c30] : memref<98xf32, #tpu.memory_space<smem>>
    %c0_196 = arith.constant 0 : index
    %c4_197 = arith.constant 4 : index
    %c2_198 = arith.constant 2 : index
    %287 = vector.load %arg4[%c0_196, %c4_197, %c2_198] : memref<4x22x22xf32, #tpu.memory_space<vmem>>, vector<2x16x16xf32>
    %288 = vector.broadcast %286 : f32 to vector<2x16x16xf32>
    %289 = arith.mulf %288, %287 : vector<2x16x16xf32>
    %290 = arith.addf %285, %289 : vector<2x16x16xf32>
    %c31 = arith.constant 31 : index
    %291 = memref.load %arg1[%c31] : memref<98xf32, #tpu.memory_space<smem>>
    %c0_199 = arith.constant 0 : index
    %c4_200 = arith.constant 4 : index
    %c3_201 = arith.constant 3 : index
    %292 = vector.load %arg4[%c0_199, %c4_200, %c3_201] : memref<4x22x22xf32, #tpu.memory_space<vmem>>, vector<2x16x16xf32>
    %293 = vector.broadcast %291 : f32 to vector<2x16x16xf32>
    %294 = arith.mulf %293, %292 : vector<2x16x16xf32>
    %295 = arith.addf %290, %294 : vector<2x16x16xf32>
    %c32 = arith.constant 32 : index
    %296 = memref.load %arg1[%c32] : memref<98xf32, #tpu.memory_space<smem>>
    %c0_202 = arith.constant 0 : index
    %c4_203 = arith.constant 4 : index
    %c4_204 = arith.constant 4 : index
    %297 = vector.load %arg4[%c0_202, %c4_203, %c4_204] : memref<4x22x22xf32, #tpu.memory_space<vmem>>, vector<2x16x16xf32>
    %298 = vector.broadcast %296 : f32 to vector<2x16x16xf32>
    %299 = arith.mulf %298, %297 : vector<2x16x16xf32>
    %300 = arith.addf %295, %299 : vector<2x16x16xf32>
    %c33 = arith.constant 33 : index
    %301 = memref.load %arg1[%c33] : memref<98xf32, #tpu.memory_space<smem>>
    %c0_205 = arith.constant 0 : index
    %c4_206 = arith.constant 4 : index
    %c5_207 = arith.constant 5 : index
    %302 = vector.load %arg4[%c0_205, %c4_206, %c5_207] : memref<4x22x22xf32, #tpu.memory_space<vmem>>, vector<2x16x16xf32>
    %303 = vector.broadcast %301 : f32 to vector<2x16x16xf32>
    %304 = arith.mulf %303, %302 : vector<2x16x16xf32>
    %305 = arith.addf %300, %304 : vector<2x16x16xf32>
    %c34 = arith.constant 34 : index
    %306 = memref.load %arg1[%c34] : memref<98xf32, #tpu.memory_space<smem>>
    %c0_208 = arith.constant 0 : index
    %c4_209 = arith.constant 4 : index
    %c6_210 = arith.constant 6 : index
    %307 = vector.load %arg4[%c0_208, %c4_209, %c6_210] : memref<4x22x22xf32, #tpu.memory_space<vmem>>, vector<2x16x16xf32>
    %308 = vector.broadcast %306 : f32 to vector<2x16x16xf32>
    %309 = arith.mulf %308, %307 : vector<2x16x16xf32>
    %310 = arith.addf %305, %309 : vector<2x16x16xf32>
    %c35 = arith.constant 35 : index
    %311 = memref.load %arg1[%c35] : memref<98xf32, #tpu.memory_space<smem>>
    %c0_211 = arith.constant 0 : index
    %c5_212 = arith.constant 5 : index
    %c0_213 = arith.constant 0 : index
    %312 = vector.load %arg4[%c0_211, %c5_212, %c0_213] : memref<4x22x22xf32, #tpu.memory_space<vmem>>, vector<2x16x16xf32>
    %313 = vector.broadcast %311 : f32 to vector<2x16x16xf32>
    %314 = arith.mulf %313, %312 : vector<2x16x16xf32>
    %315 = arith.addf %310, %314 : vector<2x16x16xf32>
    %c36 = arith.constant 36 : index
    %316 = memref.load %arg1[%c36] : memref<98xf32, #tpu.memory_space<smem>>
    %c0_214 = arith.constant 0 : index
    %c5_215 = arith.constant 5 : index
    %c1_216 = arith.constant 1 : index
    %317 = vector.load %arg4[%c0_214, %c5_215, %c1_216] : memref<4x22x22xf32, #tpu.memory_space<vmem>>, vector<2x16x16xf32>
    %318 = vector.broadcast %316 : f32 to vector<2x16x16xf32>
    %319 = arith.mulf %318, %317 : vector<2x16x16xf32>
    %320 = arith.addf %315, %319 : vector<2x16x16xf32>
    %c37 = arith.constant 37 : index
    %321 = memref.load %arg1[%c37] : memref<98xf32, #tpu.memory_space<smem>>
    %c0_217 = arith.constant 0 : index
    %c5_218 = arith.constant 5 : index
    %c2_219 = arith.constant 2 : index
    %322 = vector.load %arg4[%c0_217, %c5_218, %c2_219] : memref<4x22x22xf32, #tpu.memory_space<vmem>>, vector<2x16x16xf32>
    %323 = vector.broadcast %321 : f32 to vector<2x16x16xf32>
    %324 = arith.mulf %323, %322 : vector<2x16x16xf32>
    %325 = arith.addf %320, %324 : vector<2x16x16xf32>
    %c38 = arith.constant 38 : index
    %326 = memref.load %arg1[%c38] : memref<98xf32, #tpu.memory_space<smem>>
    %c0_220 = arith.constant 0 : index
    %c5_221 = arith.constant 5 : index
    %c3_222 = arith.constant 3 : index
    %327 = vector.load %arg4[%c0_220, %c5_221, %c3_222] : memref<4x22x22xf32, #tpu.memory_space<vmem>>, vector<2x16x16xf32>
    %328 = vector.broadcast %326 : f32 to vector<2x16x16xf32>
    %329 = arith.mulf %328, %327 : vector<2x16x16xf32>
    %330 = arith.addf %325, %329 : vector<2x16x16xf32>
    %c39 = arith.constant 39 : index
    %331 = memref.load %arg1[%c39] : memref<98xf32, #tpu.memory_space<smem>>
    %c0_223 = arith.constant 0 : index
    %c5_224 = arith.constant 5 : index
    %c4_225 = arith.constant 4 : index
    %332 = vector.load %arg4[%c0_223, %c5_224, %c4_225] : memref<4x22x22xf32, #tpu.memory_space<vmem>>, vector<2x16x16xf32>
    %333 = vector.broadcast %331 : f32 to vector<2x16x16xf32>
    %334 = arith.mulf %333, %332 : vector<2x16x16xf32>
    %335 = arith.addf %330, %334 : vector<2x16x16xf32>
    %c40 = arith.constant 40 : index
    %336 = memref.load %arg1[%c40] : memref<98xf32, #tpu.memory_space<smem>>
    %c0_226 = arith.constant 0 : index
    %c5_227 = arith.constant 5 : index
    %c5_228 = arith.constant 5 : index
    %337 = vector.load %arg4[%c0_226, %c5_227, %c5_228] : memref<4x22x22xf32, #tpu.memory_space<vmem>>, vector<2x16x16xf32>
    %338 = vector.broadcast %336 : f32 to vector<2x16x16xf32>
    %339 = arith.mulf %338, %337 : vector<2x16x16xf32>
    %340 = arith.addf %335, %339 : vector<2x16x16xf32>
    %c41 = arith.constant 41 : index
    %341 = memref.load %arg1[%c41] : memref<98xf32, #tpu.memory_space<smem>>
    %c0_229 = arith.constant 0 : index
    %c5_230 = arith.constant 5 : index
    %c6_231 = arith.constant 6 : index
    %342 = vector.load %arg4[%c0_229, %c5_230, %c6_231] : memref<4x22x22xf32, #tpu.memory_space<vmem>>, vector<2x16x16xf32>
    %343 = vector.broadcast %341 : f32 to vector<2x16x16xf32>
    %344 = arith.mulf %343, %342 : vector<2x16x16xf32>
    %345 = arith.addf %340, %344 : vector<2x16x16xf32>
    %c42 = arith.constant 42 : index
    %346 = memref.load %arg1[%c42] : memref<98xf32, #tpu.memory_space<smem>>
    %c0_232 = arith.constant 0 : index
    %c6_233 = arith.constant 6 : index
    %c0_234 = arith.constant 0 : index
    %347 = vector.load %arg4[%c0_232, %c6_233, %c0_234] : memref<4x22x22xf32, #tpu.memory_space<vmem>>, vector<2x16x16xf32>
    %348 = vector.broadcast %346 : f32 to vector<2x16x16xf32>
    %349 = arith.mulf %348, %347 : vector<2x16x16xf32>
    %350 = arith.addf %345, %349 : vector<2x16x16xf32>
    %c43 = arith.constant 43 : index
    %351 = memref.load %arg1[%c43] : memref<98xf32, #tpu.memory_space<smem>>
    %c0_235 = arith.constant 0 : index
    %c6_236 = arith.constant 6 : index
    %c1_237 = arith.constant 1 : index
    %352 = vector.load %arg4[%c0_235, %c6_236, %c1_237] : memref<4x22x22xf32, #tpu.memory_space<vmem>>, vector<2x16x16xf32>
    %353 = vector.broadcast %351 : f32 to vector<2x16x16xf32>
    %354 = arith.mulf %353, %352 : vector<2x16x16xf32>
    %355 = arith.addf %350, %354 : vector<2x16x16xf32>
    %c44 = arith.constant 44 : index
    %356 = memref.load %arg1[%c44] : memref<98xf32, #tpu.memory_space<smem>>
    %c0_238 = arith.constant 0 : index
    %c6_239 = arith.constant 6 : index
    %c2_240 = arith.constant 2 : index
    %357 = vector.load %arg4[%c0_238, %c6_239, %c2_240] : memref<4x22x22xf32, #tpu.memory_space<vmem>>, vector<2x16x16xf32>
    %358 = vector.broadcast %356 : f32 to vector<2x16x16xf32>
    %359 = arith.mulf %358, %357 : vector<2x16x16xf32>
    %360 = arith.addf %355, %359 : vector<2x16x16xf32>
    %c45 = arith.constant 45 : index
    %361 = memref.load %arg1[%c45] : memref<98xf32, #tpu.memory_space<smem>>
    %c0_241 = arith.constant 0 : index
    %c6_242 = arith.constant 6 : index
    %c3_243 = arith.constant 3 : index
    %362 = vector.load %arg4[%c0_241, %c6_242, %c3_243] : memref<4x22x22xf32, #tpu.memory_space<vmem>>, vector<2x16x16xf32>
    %363 = vector.broadcast %361 : f32 to vector<2x16x16xf32>
    %364 = arith.mulf %363, %362 : vector<2x16x16xf32>
    %365 = arith.addf %360, %364 : vector<2x16x16xf32>
    %c46 = arith.constant 46 : index
    %366 = memref.load %arg1[%c46] : memref<98xf32, #tpu.memory_space<smem>>
    %c0_244 = arith.constant 0 : index
    %c6_245 = arith.constant 6 : index
    %c4_246 = arith.constant 4 : index
    %367 = vector.load %arg4[%c0_244, %c6_245, %c4_246] : memref<4x22x22xf32, #tpu.memory_space<vmem>>, vector<2x16x16xf32>
    %368 = vector.broadcast %366 : f32 to vector<2x16x16xf32>
    %369 = arith.mulf %368, %367 : vector<2x16x16xf32>
    %370 = arith.addf %365, %369 : vector<2x16x16xf32>
    %c47 = arith.constant 47 : index
    %371 = memref.load %arg1[%c47] : memref<98xf32, #tpu.memory_space<smem>>
    %c0_247 = arith.constant 0 : index
    %c6_248 = arith.constant 6 : index
    %c5_249 = arith.constant 5 : index
    %372 = vector.load %arg4[%c0_247, %c6_248, %c5_249] : memref<4x22x22xf32, #tpu.memory_space<vmem>>, vector<2x16x16xf32>
    %373 = vector.broadcast %371 : f32 to vector<2x16x16xf32>
    %374 = arith.mulf %373, %372 : vector<2x16x16xf32>
    %375 = arith.addf %370, %374 : vector<2x16x16xf32>
    %c48 = arith.constant 48 : index
    %376 = memref.load %arg1[%c48] : memref<98xf32, #tpu.memory_space<smem>>
    %c0_250 = arith.constant 0 : index
    %c6_251 = arith.constant 6 : index
    %c6_252 = arith.constant 6 : index
    %377 = vector.load %arg4[%c0_250, %c6_251, %c6_252] : memref<4x22x22xf32, #tpu.memory_space<vmem>>, vector<2x16x16xf32>
    %378 = vector.broadcast %376 : f32 to vector<2x16x16xf32>
    %379 = arith.mulf %378, %377 : vector<2x16x16xf32>
    %380 = arith.addf %375, %379 : vector<2x16x16xf32>
    %c49 = arith.constant 49 : index
    %381 = memref.load %arg1[%c49] : memref<98xf32, #tpu.memory_space<smem>>
    %c2_253 = arith.constant 2 : index
    %c0_254 = arith.constant 0 : index
    %c0_255 = arith.constant 0 : index
    %382 = vector.load %arg4[%c2_253, %c0_254, %c0_255] : memref<4x22x22xf32, #tpu.memory_space<vmem>>, vector<2x16x16xf32>
    %383 = vector.broadcast %381 : f32 to vector<2x16x16xf32>
    %384 = arith.mulf %383, %382 : vector<2x16x16xf32>
    %385 = arith.addf %380, %384 : vector<2x16x16xf32>
    %c50 = arith.constant 50 : index
    %386 = memref.load %arg1[%c50] : memref<98xf32, #tpu.memory_space<smem>>
    %c2_256 = arith.constant 2 : index
    %c0_257 = arith.constant 0 : index
    %c1_258 = arith.constant 1 : index
    %387 = vector.load %arg4[%c2_256, %c0_257, %c1_258] : memref<4x22x22xf32, #tpu.memory_space<vmem>>, vector<2x16x16xf32>
    %388 = vector.broadcast %386 : f32 to vector<2x16x16xf32>
    %389 = arith.mulf %388, %387 : vector<2x16x16xf32>
    %390 = arith.addf %385, %389 : vector<2x16x16xf32>
    %c51 = arith.constant 51 : index
    %391 = memref.load %arg1[%c51] : memref<98xf32, #tpu.memory_space<smem>>
    %c2_259 = arith.constant 2 : index
    %c0_260 = arith.constant 0 : index
    %c2_261 = arith.constant 2 : index
    %392 = vector.load %arg4[%c2_259, %c0_260, %c2_261] : memref<4x22x22xf32, #tpu.memory_space<vmem>>, vector<2x16x16xf32>
    %393 = vector.broadcast %391 : f32 to vector<2x16x16xf32>
    %394 = arith.mulf %393, %392 : vector<2x16x16xf32>
    %395 = arith.addf %390, %394 : vector<2x16x16xf32>
    %c52 = arith.constant 52 : index
    %396 = memref.load %arg1[%c52] : memref<98xf32, #tpu.memory_space<smem>>
    %c2_262 = arith.constant 2 : index
    %c0_263 = arith.constant 0 : index
    %c3_264 = arith.constant 3 : index
    %397 = vector.load %arg4[%c2_262, %c0_263, %c3_264] : memref<4x22x22xf32, #tpu.memory_space<vmem>>, vector<2x16x16xf32>
    %398 = vector.broadcast %396 : f32 to vector<2x16x16xf32>
    %399 = arith.mulf %398, %397 : vector<2x16x16xf32>
    %400 = arith.addf %395, %399 : vector<2x16x16xf32>
    %c53 = arith.constant 53 : index
    %401 = memref.load %arg1[%c53] : memref<98xf32, #tpu.memory_space<smem>>
    %c2_265 = arith.constant 2 : index
    %c0_266 = arith.constant 0 : index
    %c4_267 = arith.constant 4 : index
    %402 = vector.load %arg4[%c2_265, %c0_266, %c4_267] : memref<4x22x22xf32, #tpu.memory_space<vmem>>, vector<2x16x16xf32>
    %403 = vector.broadcast %401 : f32 to vector<2x16x16xf32>
    %404 = arith.mulf %403, %402 : vector<2x16x16xf32>
    %405 = arith.addf %400, %404 : vector<2x16x16xf32>
    %c54 = arith.constant 54 : index
    %406 = memref.load %arg1[%c54] : memref<98xf32, #tpu.memory_space<smem>>
    %c2_268 = arith.constant 2 : index
    %c0_269 = arith.constant 0 : index
    %c5_270 = arith.constant 5 : index
    %407 = vector.load %arg4[%c2_268, %c0_269, %c5_270] : memref<4x22x22xf32, #tpu.memory_space<vmem>>, vector<2x16x16xf32>
    %408 = vector.broadcast %406 : f32 to vector<2x16x16xf32>
    %409 = arith.mulf %408, %407 : vector<2x16x16xf32>
    %410 = arith.addf %405, %409 : vector<2x16x16xf32>
    %c55 = arith.constant 55 : index
    %411 = memref.load %arg1[%c55] : memref<98xf32, #tpu.memory_space<smem>>
    %c2_271 = arith.constant 2 : index
    %c0_272 = arith.constant 0 : index
    %c6_273 = arith.constant 6 : index
    %412 = vector.load %arg4[%c2_271, %c0_272, %c6_273] : memref<4x22x22xf32, #tpu.memory_space<vmem>>, vector<2x16x16xf32>
    %413 = vector.broadcast %411 : f32 to vector<2x16x16xf32>
    %414 = arith.mulf %413, %412 : vector<2x16x16xf32>
    %415 = arith.addf %410, %414 : vector<2x16x16xf32>
    %c56 = arith.constant 56 : index
    %416 = memref.load %arg1[%c56] : memref<98xf32, #tpu.memory_space<smem>>
    %c2_274 = arith.constant 2 : index
    %c1_275 = arith.constant 1 : index
    %c0_276 = arith.constant 0 : index
    %417 = vector.load %arg4[%c2_274, %c1_275, %c0_276] : memref<4x22x22xf32, #tpu.memory_space<vmem>>, vector<2x16x16xf32>
    %418 = vector.broadcast %416 : f32 to vector<2x16x16xf32>
    %419 = arith.mulf %418, %417 : vector<2x16x16xf32>
    %420 = arith.addf %415, %419 : vector<2x16x16xf32>
    %c57 = arith.constant 57 : index
    %421 = memref.load %arg1[%c57] : memref<98xf32, #tpu.memory_space<smem>>
    %c2_277 = arith.constant 2 : index
    %c1_278 = arith.constant 1 : index
    %c1_279 = arith.constant 1 : index
    %422 = vector.load %arg4[%c2_277, %c1_278, %c1_279] : memref<4x22x22xf32, #tpu.memory_space<vmem>>, vector<2x16x16xf32>
    %423 = vector.broadcast %421 : f32 to vector<2x16x16xf32>
    %424 = arith.mulf %423, %422 : vector<2x16x16xf32>
    %425 = arith.addf %420, %424 : vector<2x16x16xf32>
    %c58 = arith.constant 58 : index
    %426 = memref.load %arg1[%c58] : memref<98xf32, #tpu.memory_space<smem>>
    %c2_280 = arith.constant 2 : index
    %c1_281 = arith.constant 1 : index
    %c2_282 = arith.constant 2 : index
    %427 = vector.load %arg4[%c2_280, %c1_281, %c2_282] : memref<4x22x22xf32, #tpu.memory_space<vmem>>, vector<2x16x16xf32>
    %428 = vector.broadcast %426 : f32 to vector<2x16x16xf32>
    %429 = arith.mulf %428, %427 : vector<2x16x16xf32>
    %430 = arith.addf %425, %429 : vector<2x16x16xf32>
    %c59 = arith.constant 59 : index
    %431 = memref.load %arg1[%c59] : memref<98xf32, #tpu.memory_space<smem>>
    %c2_283 = arith.constant 2 : index
    %c1_284 = arith.constant 1 : index
    %c3_285 = arith.constant 3 : index
    %432 = vector.load %arg4[%c2_283, %c1_284, %c3_285] : memref<4x22x22xf32, #tpu.memory_space<vmem>>, vector<2x16x16xf32>
    %433 = vector.broadcast %431 : f32 to vector<2x16x16xf32>
    %434 = arith.mulf %433, %432 : vector<2x16x16xf32>
    %435 = arith.addf %430, %434 : vector<2x16x16xf32>
    %c60 = arith.constant 60 : index
    %436 = memref.load %arg1[%c60] : memref<98xf32, #tpu.memory_space<smem>>
    %c2_286 = arith.constant 2 : index
    %c1_287 = arith.constant 1 : index
    %c4_288 = arith.constant 4 : index
    %437 = vector.load %arg4[%c2_286, %c1_287, %c4_288] : memref<4x22x22xf32, #tpu.memory_space<vmem>>, vector<2x16x16xf32>
    %438 = vector.broadcast %436 : f32 to vector<2x16x16xf32>
    %439 = arith.mulf %438, %437 : vector<2x16x16xf32>
    %440 = arith.addf %435, %439 : vector<2x16x16xf32>
    %c61 = arith.constant 61 : index
    %441 = memref.load %arg1[%c61] : memref<98xf32, #tpu.memory_space<smem>>
    %c2_289 = arith.constant 2 : index
    %c1_290 = arith.constant 1 : index
    %c5_291 = arith.constant 5 : index
    %442 = vector.load %arg4[%c2_289, %c1_290, %c5_291] : memref<4x22x22xf32, #tpu.memory_space<vmem>>, vector<2x16x16xf32>
    %443 = vector.broadcast %441 : f32 to vector<2x16x16xf32>
    %444 = arith.mulf %443, %442 : vector<2x16x16xf32>
    %445 = arith.addf %440, %444 : vector<2x16x16xf32>
    %c62 = arith.constant 62 : index
    %446 = memref.load %arg1[%c62] : memref<98xf32, #tpu.memory_space<smem>>
    %c2_292 = arith.constant 2 : index
    %c1_293 = arith.constant 1 : index
    %c6_294 = arith.constant 6 : index
    %447 = vector.load %arg4[%c2_292, %c1_293, %c6_294] : memref<4x22x22xf32, #tpu.memory_space<vmem>>, vector<2x16x16xf32>
    %448 = vector.broadcast %446 : f32 to vector<2x16x16xf32>
    %449 = arith.mulf %448, %447 : vector<2x16x16xf32>
    %450 = arith.addf %445, %449 : vector<2x16x16xf32>
    %c63 = arith.constant 63 : index
    %451 = memref.load %arg1[%c63] : memref<98xf32, #tpu.memory_space<smem>>
    %c2_295 = arith.constant 2 : index
    %c2_296 = arith.constant 2 : index
    %c0_297 = arith.constant 0 : index
    %452 = vector.load %arg4[%c2_295, %c2_296, %c0_297] : memref<4x22x22xf32, #tpu.memory_space<vmem>>, vector<2x16x16xf32>
    %453 = vector.broadcast %451 : f32 to vector<2x16x16xf32>
    %454 = arith.mulf %453, %452 : vector<2x16x16xf32>
    %455 = arith.addf %450, %454 : vector<2x16x16xf32>
    %c64 = arith.constant 64 : index
    %456 = memref.load %arg1[%c64] : memref<98xf32, #tpu.memory_space<smem>>
    %c2_298 = arith.constant 2 : index
    %c2_299 = arith.constant 2 : index
    %c1_300 = arith.constant 1 : index
    %457 = vector.load %arg4[%c2_298, %c2_299, %c1_300] : memref<4x22x22xf32, #tpu.memory_space<vmem>>, vector<2x16x16xf32>
    %458 = vector.broadcast %456 : f32 to vector<2x16x16xf32>
    %459 = arith.mulf %458, %457 : vector<2x16x16xf32>
    %460 = arith.addf %455, %459 : vector<2x16x16xf32>
    %c65 = arith.constant 65 : index
    %461 = memref.load %arg1[%c65] : memref<98xf32, #tpu.memory_space<smem>>
    %c2_301 = arith.constant 2 : index
    %c2_302 = arith.constant 2 : index
    %c2_303 = arith.constant 2 : index
    %462 = vector.load %arg4[%c2_301, %c2_302, %c2_303] : memref<4x22x22xf32, #tpu.memory_space<vmem>>, vector<2x16x16xf32>
    %463 = vector.broadcast %461 : f32 to vector<2x16x16xf32>
    %464 = arith.mulf %463, %462 : vector<2x16x16xf32>
    %465 = arith.addf %460, %464 : vector<2x16x16xf32>
    %c66 = arith.constant 66 : index
    %466 = memref.load %arg1[%c66] : memref<98xf32, #tpu.memory_space<smem>>
    %c2_304 = arith.constant 2 : index
    %c2_305 = arith.constant 2 : index
    %c3_306 = arith.constant 3 : index
    %467 = vector.load %arg4[%c2_304, %c2_305, %c3_306] : memref<4x22x22xf32, #tpu.memory_space<vmem>>, vector<2x16x16xf32>
    %468 = vector.broadcast %466 : f32 to vector<2x16x16xf32>
    %469 = arith.mulf %468, %467 : vector<2x16x16xf32>
    %470 = arith.addf %465, %469 : vector<2x16x16xf32>
    %c67 = arith.constant 67 : index
    %471 = memref.load %arg1[%c67] : memref<98xf32, #tpu.memory_space<smem>>
    %c2_307 = arith.constant 2 : index
    %c2_308 = arith.constant 2 : index
    %c4_309 = arith.constant 4 : index
    %472 = vector.load %arg4[%c2_307, %c2_308, %c4_309] : memref<4x22x22xf32, #tpu.memory_space<vmem>>, vector<2x16x16xf32>
    %473 = vector.broadcast %471 : f32 to vector<2x16x16xf32>
    %474 = arith.mulf %473, %472 : vector<2x16x16xf32>
    %475 = arith.addf %470, %474 : vector<2x16x16xf32>
    %c68 = arith.constant 68 : index
    %476 = memref.load %arg1[%c68] : memref<98xf32, #tpu.memory_space<smem>>
    %c2_310 = arith.constant 2 : index
    %c2_311 = arith.constant 2 : index
    %c5_312 = arith.constant 5 : index
    %477 = vector.load %arg4[%c2_310, %c2_311, %c5_312] : memref<4x22x22xf32, #tpu.memory_space<vmem>>, vector<2x16x16xf32>
    %478 = vector.broadcast %476 : f32 to vector<2x16x16xf32>
    %479 = arith.mulf %478, %477 : vector<2x16x16xf32>
    %480 = arith.addf %475, %479 : vector<2x16x16xf32>
    %c69 = arith.constant 69 : index
    %481 = memref.load %arg1[%c69] : memref<98xf32, #tpu.memory_space<smem>>
    %c2_313 = arith.constant 2 : index
    %c2_314 = arith.constant 2 : index
    %c6_315 = arith.constant 6 : index
    %482 = vector.load %arg4[%c2_313, %c2_314, %c6_315] : memref<4x22x22xf32, #tpu.memory_space<vmem>>, vector<2x16x16xf32>
    %483 = vector.broadcast %481 : f32 to vector<2x16x16xf32>
    %484 = arith.mulf %483, %482 : vector<2x16x16xf32>
    %485 = arith.addf %480, %484 : vector<2x16x16xf32>
    %c70 = arith.constant 70 : index
    %486 = memref.load %arg1[%c70] : memref<98xf32, #tpu.memory_space<smem>>
    %c2_316 = arith.constant 2 : index
    %c3_317 = arith.constant 3 : index
    %c0_318 = arith.constant 0 : index
    %487 = vector.load %arg4[%c2_316, %c3_317, %c0_318] : memref<4x22x22xf32, #tpu.memory_space<vmem>>, vector<2x16x16xf32>
    %488 = vector.broadcast %486 : f32 to vector<2x16x16xf32>
    %489 = arith.mulf %488, %487 : vector<2x16x16xf32>
    %490 = arith.addf %485, %489 : vector<2x16x16xf32>
    %c71 = arith.constant 71 : index
    %491 = memref.load %arg1[%c71] : memref<98xf32, #tpu.memory_space<smem>>
    %c2_319 = arith.constant 2 : index
    %c3_320 = arith.constant 3 : index
    %c1_321 = arith.constant 1 : index
    %492 = vector.load %arg4[%c2_319, %c3_320, %c1_321] : memref<4x22x22xf32, #tpu.memory_space<vmem>>, vector<2x16x16xf32>
    %493 = vector.broadcast %491 : f32 to vector<2x16x16xf32>
    %494 = arith.mulf %493, %492 : vector<2x16x16xf32>
    %495 = arith.addf %490, %494 : vector<2x16x16xf32>
    %c72 = arith.constant 72 : index
    %496 = memref.load %arg1[%c72] : memref<98xf32, #tpu.memory_space<smem>>
    %c2_322 = arith.constant 2 : index
    %c3_323 = arith.constant 3 : index
    %c2_324 = arith.constant 2 : index
    %497 = vector.load %arg4[%c2_322, %c3_323, %c2_324] : memref<4x22x22xf32, #tpu.memory_space<vmem>>, vector<2x16x16xf32>
    %498 = vector.broadcast %496 : f32 to vector<2x16x16xf32>
    %499 = arith.mulf %498, %497 : vector<2x16x16xf32>
    %500 = arith.addf %495, %499 : vector<2x16x16xf32>
    %c73 = arith.constant 73 : index
    %501 = memref.load %arg1[%c73] : memref<98xf32, #tpu.memory_space<smem>>
    %c2_325 = arith.constant 2 : index
    %c3_326 = arith.constant 3 : index
    %c3_327 = arith.constant 3 : index
    %502 = vector.load %arg4[%c2_325, %c3_326, %c3_327] : memref<4x22x22xf32, #tpu.memory_space<vmem>>, vector<2x16x16xf32>
    %503 = vector.broadcast %501 : f32 to vector<2x16x16xf32>
    %504 = arith.mulf %503, %502 : vector<2x16x16xf32>
    %505 = arith.addf %500, %504 : vector<2x16x16xf32>
    %c74 = arith.constant 74 : index
    %506 = memref.load %arg1[%c74] : memref<98xf32, #tpu.memory_space<smem>>
    %c2_328 = arith.constant 2 : index
    %c3_329 = arith.constant 3 : index
    %c4_330 = arith.constant 4 : index
    %507 = vector.load %arg4[%c2_328, %c3_329, %c4_330] : memref<4x22x22xf32, #tpu.memory_space<vmem>>, vector<2x16x16xf32>
    %508 = vector.broadcast %506 : f32 to vector<2x16x16xf32>
    %509 = arith.mulf %508, %507 : vector<2x16x16xf32>
    %510 = arith.addf %505, %509 : vector<2x16x16xf32>
    %c75 = arith.constant 75 : index
    %511 = memref.load %arg1[%c75] : memref<98xf32, #tpu.memory_space<smem>>
    %c2_331 = arith.constant 2 : index
    %c3_332 = arith.constant 3 : index
    %c5_333 = arith.constant 5 : index
    %512 = vector.load %arg4[%c2_331, %c3_332, %c5_333] : memref<4x22x22xf32, #tpu.memory_space<vmem>>, vector<2x16x16xf32>
    %513 = vector.broadcast %511 : f32 to vector<2x16x16xf32>
    %514 = arith.mulf %513, %512 : vector<2x16x16xf32>
    %515 = arith.addf %510, %514 : vector<2x16x16xf32>
    %c76 = arith.constant 76 : index
    %516 = memref.load %arg1[%c76] : memref<98xf32, #tpu.memory_space<smem>>
    %c2_334 = arith.constant 2 : index
    %c3_335 = arith.constant 3 : index
    %c6_336 = arith.constant 6 : index
    %517 = vector.load %arg4[%c2_334, %c3_335, %c6_336] : memref<4x22x22xf32, #tpu.memory_space<vmem>>, vector<2x16x16xf32>
    %518 = vector.broadcast %516 : f32 to vector<2x16x16xf32>
    %519 = arith.mulf %518, %517 : vector<2x16x16xf32>
    %520 = arith.addf %515, %519 : vector<2x16x16xf32>
    %c77 = arith.constant 77 : index
    %521 = memref.load %arg1[%c77] : memref<98xf32, #tpu.memory_space<smem>>
    %c2_337 = arith.constant 2 : index
    %c4_338 = arith.constant 4 : index
    %c0_339 = arith.constant 0 : index
    %522 = vector.load %arg4[%c2_337, %c4_338, %c0_339] : memref<4x22x22xf32, #tpu.memory_space<vmem>>, vector<2x16x16xf32>
    %523 = vector.broadcast %521 : f32 to vector<2x16x16xf32>
    %524 = arith.mulf %523, %522 : vector<2x16x16xf32>
    %525 = arith.addf %520, %524 : vector<2x16x16xf32>
    %c78 = arith.constant 78 : index
    %526 = memref.load %arg1[%c78] : memref<98xf32, #tpu.memory_space<smem>>
    %c2_340 = arith.constant 2 : index
    %c4_341 = arith.constant 4 : index
    %c1_342 = arith.constant 1 : index
    %527 = vector.load %arg4[%c2_340, %c4_341, %c1_342] : memref<4x22x22xf32, #tpu.memory_space<vmem>>, vector<2x16x16xf32>
    %528 = vector.broadcast %526 : f32 to vector<2x16x16xf32>
    %529 = arith.mulf %528, %527 : vector<2x16x16xf32>
    %530 = arith.addf %525, %529 : vector<2x16x16xf32>
    %c79 = arith.constant 79 : index
    %531 = memref.load %arg1[%c79] : memref<98xf32, #tpu.memory_space<smem>>
    %c2_343 = arith.constant 2 : index
    %c4_344 = arith.constant 4 : index
    %c2_345 = arith.constant 2 : index
    %532 = vector.load %arg4[%c2_343, %c4_344, %c2_345] : memref<4x22x22xf32, #tpu.memory_space<vmem>>, vector<2x16x16xf32>
    %533 = vector.broadcast %531 : f32 to vector<2x16x16xf32>
    %534 = arith.mulf %533, %532 : vector<2x16x16xf32>
    %535 = arith.addf %530, %534 : vector<2x16x16xf32>
    %c80 = arith.constant 80 : index
    %536 = memref.load %arg1[%c80] : memref<98xf32, #tpu.memory_space<smem>>
    %c2_346 = arith.constant 2 : index
    %c4_347 = arith.constant 4 : index
    %c3_348 = arith.constant 3 : index
    %537 = vector.load %arg4[%c2_346, %c4_347, %c3_348] : memref<4x22x22xf32, #tpu.memory_space<vmem>>, vector<2x16x16xf32>
    %538 = vector.broadcast %536 : f32 to vector<2x16x16xf32>
    %539 = arith.mulf %538, %537 : vector<2x16x16xf32>
    %540 = arith.addf %535, %539 : vector<2x16x16xf32>
    %c81 = arith.constant 81 : index
    %541 = memref.load %arg1[%c81] : memref<98xf32, #tpu.memory_space<smem>>
    %c2_349 = arith.constant 2 : index
    %c4_350 = arith.constant 4 : index
    %c4_351 = arith.constant 4 : index
    %542 = vector.load %arg4[%c2_349, %c4_350, %c4_351] : memref<4x22x22xf32, #tpu.memory_space<vmem>>, vector<2x16x16xf32>
    %543 = vector.broadcast %541 : f32 to vector<2x16x16xf32>
    %544 = arith.mulf %543, %542 : vector<2x16x16xf32>
    %545 = arith.addf %540, %544 : vector<2x16x16xf32>
    %c82 = arith.constant 82 : index
    %546 = memref.load %arg1[%c82] : memref<98xf32, #tpu.memory_space<smem>>
    %c2_352 = arith.constant 2 : index
    %c4_353 = arith.constant 4 : index
    %c5_354 = arith.constant 5 : index
    %547 = vector.load %arg4[%c2_352, %c4_353, %c5_354] : memref<4x22x22xf32, #tpu.memory_space<vmem>>, vector<2x16x16xf32>
    %548 = vector.broadcast %546 : f32 to vector<2x16x16xf32>
    %549 = arith.mulf %548, %547 : vector<2x16x16xf32>
    %550 = arith.addf %545, %549 : vector<2x16x16xf32>
    %c83 = arith.constant 83 : index
    %551 = memref.load %arg1[%c83] : memref<98xf32, #tpu.memory_space<smem>>
    %c2_355 = arith.constant 2 : index
    %c4_356 = arith.constant 4 : index
    %c6_357 = arith.constant 6 : index
    %552 = vector.load %arg4[%c2_355, %c4_356, %c6_357] : memref<4x22x22xf32, #tpu.memory_space<vmem>>, vector<2x16x16xf32>
    %553 = vector.broadcast %551 : f32 to vector<2x16x16xf32>
    %554 = arith.mulf %553, %552 : vector<2x16x16xf32>
    %555 = arith.addf %550, %554 : vector<2x16x16xf32>
    %c84 = arith.constant 84 : index
    %556 = memref.load %arg1[%c84] : memref<98xf32, #tpu.memory_space<smem>>
    %c2_358 = arith.constant 2 : index
    %c5_359 = arith.constant 5 : index
    %c0_360 = arith.constant 0 : index
    %557 = vector.load %arg4[%c2_358, %c5_359, %c0_360] : memref<4x22x22xf32, #tpu.memory_space<vmem>>, vector<2x16x16xf32>
    %558 = vector.broadcast %556 : f32 to vector<2x16x16xf32>
    %559 = arith.mulf %558, %557 : vector<2x16x16xf32>
    %560 = arith.addf %555, %559 : vector<2x16x16xf32>
    %c85 = arith.constant 85 : index
    %561 = memref.load %arg1[%c85] : memref<98xf32, #tpu.memory_space<smem>>
    %c2_361 = arith.constant 2 : index
    %c5_362 = arith.constant 5 : index
    %c1_363 = arith.constant 1 : index
    %562 = vector.load %arg4[%c2_361, %c5_362, %c1_363] : memref<4x22x22xf32, #tpu.memory_space<vmem>>, vector<2x16x16xf32>
    %563 = vector.broadcast %561 : f32 to vector<2x16x16xf32>
    %564 = arith.mulf %563, %562 : vector<2x16x16xf32>
    %565 = arith.addf %560, %564 : vector<2x16x16xf32>
    %c86 = arith.constant 86 : index
    %566 = memref.load %arg1[%c86] : memref<98xf32, #tpu.memory_space<smem>>
    %c2_364 = arith.constant 2 : index
    %c5_365 = arith.constant 5 : index
    %c2_366 = arith.constant 2 : index
    %567 = vector.load %arg4[%c2_364, %c5_365, %c2_366] : memref<4x22x22xf32, #tpu.memory_space<vmem>>, vector<2x16x16xf32>
    %568 = vector.broadcast %566 : f32 to vector<2x16x16xf32>
    %569 = arith.mulf %568, %567 : vector<2x16x16xf32>
    %570 = arith.addf %565, %569 : vector<2x16x16xf32>
    %c87 = arith.constant 87 : index
    %571 = memref.load %arg1[%c87] : memref<98xf32, #tpu.memory_space<smem>>
    %c2_367 = arith.constant 2 : index
    %c5_368 = arith.constant 5 : index
    %c3_369 = arith.constant 3 : index
    %572 = vector.load %arg4[%c2_367, %c5_368, %c3_369] : memref<4x22x22xf32, #tpu.memory_space<vmem>>, vector<2x16x16xf32>
    %573 = vector.broadcast %571 : f32 to vector<2x16x16xf32>
    %574 = arith.mulf %573, %572 : vector<2x16x16xf32>
    %575 = arith.addf %570, %574 : vector<2x16x16xf32>
    %c88 = arith.constant 88 : index
    %576 = memref.load %arg1[%c88] : memref<98xf32, #tpu.memory_space<smem>>
    %c2_370 = arith.constant 2 : index
    %c5_371 = arith.constant 5 : index
    %c4_372 = arith.constant 4 : index
    %577 = vector.load %arg4[%c2_370, %c5_371, %c4_372] : memref<4x22x22xf32, #tpu.memory_space<vmem>>, vector<2x16x16xf32>
    %578 = vector.broadcast %576 : f32 to vector<2x16x16xf32>
    %579 = arith.mulf %578, %577 : vector<2x16x16xf32>
    %580 = arith.addf %575, %579 : vector<2x16x16xf32>
    %c89 = arith.constant 89 : index
    %581 = memref.load %arg1[%c89] : memref<98xf32, #tpu.memory_space<smem>>
    %c2_373 = arith.constant 2 : index
    %c5_374 = arith.constant 5 : index
    %c5_375 = arith.constant 5 : index
    %582 = vector.load %arg4[%c2_373, %c5_374, %c5_375] : memref<4x22x22xf32, #tpu.memory_space<vmem>>, vector<2x16x16xf32>
    %583 = vector.broadcast %581 : f32 to vector<2x16x16xf32>
    %584 = arith.mulf %583, %582 : vector<2x16x16xf32>
    %585 = arith.addf %580, %584 : vector<2x16x16xf32>
    %c90 = arith.constant 90 : index
    %586 = memref.load %arg1[%c90] : memref<98xf32, #tpu.memory_space<smem>>
    %c2_376 = arith.constant 2 : index
    %c5_377 = arith.constant 5 : index
    %c6_378 = arith.constant 6 : index
    %587 = vector.load %arg4[%c2_376, %c5_377, %c6_378] : memref<4x22x22xf32, #tpu.memory_space<vmem>>, vector<2x16x16xf32>
    %588 = vector.broadcast %586 : f32 to vector<2x16x16xf32>
    %589 = arith.mulf %588, %587 : vector<2x16x16xf32>
    %590 = arith.addf %585, %589 : vector<2x16x16xf32>
    %c91 = arith.constant 91 : index
    %591 = memref.load %arg1[%c91] : memref<98xf32, #tpu.memory_space<smem>>
    %c2_379 = arith.constant 2 : index
    %c6_380 = arith.constant 6 : index
    %c0_381 = arith.constant 0 : index
    %592 = vector.load %arg4[%c2_379, %c6_380, %c0_381] : memref<4x22x22xf32, #tpu.memory_space<vmem>>, vector<2x16x16xf32>
    %593 = vector.broadcast %591 : f32 to vector<2x16x16xf32>
    %594 = arith.mulf %593, %592 : vector<2x16x16xf32>
    %595 = arith.addf %590, %594 : vector<2x16x16xf32>
    %c92 = arith.constant 92 : index
    %596 = memref.load %arg1[%c92] : memref<98xf32, #tpu.memory_space<smem>>
    %c2_382 = arith.constant 2 : index
    %c6_383 = arith.constant 6 : index
    %c1_384 = arith.constant 1 : index
    %597 = vector.load %arg4[%c2_382, %c6_383, %c1_384] : memref<4x22x22xf32, #tpu.memory_space<vmem>>, vector<2x16x16xf32>
    %598 = vector.broadcast %596 : f32 to vector<2x16x16xf32>
    %599 = arith.mulf %598, %597 : vector<2x16x16xf32>
    %600 = arith.addf %595, %599 : vector<2x16x16xf32>
    %c93 = arith.constant 93 : index
    %601 = memref.load %arg1[%c93] : memref<98xf32, #tpu.memory_space<smem>>
    %c2_385 = arith.constant 2 : index
    %c6_386 = arith.constant 6 : index
    %c2_387 = arith.constant 2 : index
    %602 = vector.load %arg4[%c2_385, %c6_386, %c2_387] : memref<4x22x22xf32, #tpu.memory_space<vmem>>, vector<2x16x16xf32>
    %603 = vector.broadcast %601 : f32 to vector<2x16x16xf32>
    %604 = arith.mulf %603, %602 : vector<2x16x16xf32>
    %605 = arith.addf %600, %604 : vector<2x16x16xf32>
    %c94 = arith.constant 94 : index
    %606 = memref.load %arg1[%c94] : memref<98xf32, #tpu.memory_space<smem>>
    %c2_388 = arith.constant 2 : index
    %c6_389 = arith.constant 6 : index
    %c3_390 = arith.constant 3 : index
    %607 = vector.load %arg4[%c2_388, %c6_389, %c3_390] : memref<4x22x22xf32, #tpu.memory_space<vmem>>, vector<2x16x16xf32>
    %608 = vector.broadcast %606 : f32 to vector<2x16x16xf32>
    %609 = arith.mulf %608, %607 : vector<2x16x16xf32>
    %610 = arith.addf %605, %609 : vector<2x16x16xf32>
    %c95 = arith.constant 95 : index
    %611 = memref.load %arg1[%c95] : memref<98xf32, #tpu.memory_space<smem>>
    %c2_391 = arith.constant 2 : index
    %c6_392 = arith.constant 6 : index
    %c4_393 = arith.constant 4 : index
    %612 = vector.load %arg4[%c2_391, %c6_392, %c4_393] : memref<4x22x22xf32, #tpu.memory_space<vmem>>, vector<2x16x16xf32>
    %613 = vector.broadcast %611 : f32 to vector<2x16x16xf32>
    %614 = arith.mulf %613, %612 : vector<2x16x16xf32>
    %615 = arith.addf %610, %614 : vector<2x16x16xf32>
    %c96 = arith.constant 96 : index
    %616 = memref.load %arg1[%c96] : memref<98xf32, #tpu.memory_space<smem>>
    %c2_394 = arith.constant 2 : index
    %c6_395 = arith.constant 6 : index
    %c5_396 = arith.constant 5 : index
    %617 = vector.load %arg4[%c2_394, %c6_395, %c5_396] : memref<4x22x22xf32, #tpu.memory_space<vmem>>, vector<2x16x16xf32>
    %618 = vector.broadcast %616 : f32 to vector<2x16x16xf32>
    %619 = arith.mulf %618, %617 : vector<2x16x16xf32>
    %620 = arith.addf %615, %619 : vector<2x16x16xf32>
    %c97 = arith.constant 97 : index
    %621 = memref.load %arg1[%c97] : memref<98xf32, #tpu.memory_space<smem>>
    %c2_397 = arith.constant 2 : index
    %c6_398 = arith.constant 6 : index
    %c6_399 = arith.constant 6 : index
    %622 = vector.load %arg4[%c2_397, %c6_398, %c6_399] : memref<4x22x22xf32, #tpu.memory_space<vmem>>, vector<2x16x16xf32>
    %623 = vector.broadcast %621 : f32 to vector<2x16x16xf32>
    %624 = arith.mulf %623, %622 : vector<2x16x16xf32>
    %625 = arith.addf %620, %624 : vector<2x16x16xf32>
    %626 = arith.negf %625 : vector<2x16x16xf32>
    %627 = math.exp %626 : vector<2x16x16xf32>
    %cst_400 = arith.constant 1.000000e+00 : f32
    %628 = vector.broadcast %cst_400 : f32 to vector<2x16x16xf32>
    %629 = arith.addf %628, %627 : vector<2x16x16xf32>
    %630 = arith.divf %628, %629 : vector<2x16x16xf32>
    %cst_401 = arith.constant 1.000000e+00 : f32
    %631 = vector.broadcast %cst_401 : f32 to vector<2x16x16xf32>
    %632 = arith.addf %631, %630 : vector<2x16x16xf32>
    %633 = vector.extract_strided_slice %632 {offsets = [0, 0, 0], sizes = [2, 1, 16], strides = [1, 1, 1]} : vector<2x16x16xf32> to vector<2x1x16xf32>
    %634 = vector.shape_cast %633 : vector<2x1x16xf32> to vector<2x16xf32>
    %c0_402 = arith.constant 0 : index
    %c0_403 = arith.constant 0 : index
    %c0_404 = arith.constant 0 : index
    %635 = vector.load %arg5[%c0_402, %c0_403, %c0_404] : memref<2x1x256xf32, #tpu.memory_space<vmem>>, vector<2x1x16xf32>
    %636 = vector.shape_cast %635 : vector<2x1x16xf32> to vector<2x16xf32>
    %637 = vector.shape_cast %634 : vector<2x16xf32> to vector<2x1x16xf32>
    tpu.vector_store %arg5[%c0_402, %c0_403, %c0_404], %637 {strides = array<i32>} : memref<2x1x256xf32, #tpu.memory_space<vmem>>, vector<2x1x16xf32>,
    %638 = vector.extract_strided_slice %632 {offsets = [0, 1, 0], sizes = [2, 1, 16], strides = [1, 1, 1]} : vector<2x16x16xf32> to vector<2x1x16xf32>
    %639 = vector.shape_cast %638 : vector<2x1x16xf32> to vector<2x16xf32>
    %c0_405 = arith.constant 0 : index
    %c0_406 = arith.constant 0 : index
    %c16_407 = arith.constant 16 : index
    %640 = vector.load %arg5[%c0_405, %c0_406, %c16_407] : memref<2x1x256xf32, #tpu.memory_space<vmem>>, vector<2x1x16xf32>
    %641 = vector.shape_cast %640 : vector<2x1x16xf32> to vector<2x16xf32>
    %642 = vector.shape_cast %639 : vector<2x16xf32> to vector<2x1x16xf32>
    tpu.vector_store %arg5[%c0_405, %c0_406, %c16_407], %642 {strides = array<i32>} : memref<2x1x256xf32, #tpu.memory_space<vmem>>, vector<2x1x16xf32>,
    %643 = vector.extract_strided_slice %632 {offsets = [0, 2, 0], sizes = [2, 1, 16], strides = [1, 1, 1]} : vector<2x16x16xf32> to vector<2x1x16xf32>
    %644 = vector.shape_cast %643 : vector<2x1x16xf32> to vector<2x16xf32>
    %c0_408 = arith.constant 0 : index
    %c0_409 = arith.constant 0 : index
    %c32_410 = arith.constant 32 : index
    %645 = vector.load %arg5[%c0_408, %c0_409, %c32_410] : memref<2x1x256xf32, #tpu.memory_space<vmem>>, vector<2x1x16xf32>
    %646 = vector.shape_cast %645 : vector<2x1x16xf32> to vector<2x16xf32>
    %647 = vector.shape_cast %644 : vector<2x16xf32> to vector<2x1x16xf32>
    tpu.vector_store %arg5[%c0_408, %c0_409, %c32_410], %647 {strides = array<i32>} : memref<2x1x256xf32, #tpu.memory_space<vmem>>, vector<2x1x16xf32>,
    %648 = vector.extract_strided_slice %632 {offsets = [0, 3, 0], sizes = [2, 1, 16], strides = [1, 1, 1]} : vector<2x16x16xf32> to vector<2x1x16xf32>
    %649 = vector.shape_cast %648 : vector<2x1x16xf32> to vector<2x16xf32>
    %c0_411 = arith.constant 0 : index
    %c0_412 = arith.constant 0 : index
    %c48_413 = arith.constant 48 : index
    %650 = vector.load %arg5[%c0_411, %c0_412, %c48_413] : memref<2x1x256xf32, #tpu.memory_space<vmem>>, vector<2x1x16xf32>
    %651 = vector.shape_cast %650 : vector<2x1x16xf32> to vector<2x16xf32>
    %652 = vector.shape_cast %649 : vector<2x16xf32> to vector<2x1x16xf32>
    tpu.vector_store %arg5[%c0_411, %c0_412, %c48_413], %652 {strides = array<i32>} : memref<2x1x256xf32, #tpu.memory_space<vmem>>, vector<2x1x16xf32>,
    %653 = vector.extract_strided_slice %632 {offsets = [0, 4, 0], sizes = [2, 1, 16], strides = [1, 1, 1]} : vector<2x16x16xf32> to vector<2x1x16xf32>
    %654 = vector.shape_cast %653 : vector<2x1x16xf32> to vector<2x16xf32>
    %c0_414 = arith.constant 0 : index
    %c0_415 = arith.constant 0 : index
    %c64_416 = arith.constant 64 : index
    %655 = vector.load %arg5[%c0_414, %c0_415, %c64_416] : memref<2x1x256xf32, #tpu.memory_space<vmem>>, vector<2x1x16xf32>
    %656 = vector.shape_cast %655 : vector<2x1x16xf32> to vector<2x16xf32>
    %657 = vector.shape_cast %654 : vector<2x16xf32> to vector<2x1x16xf32>
    tpu.vector_store %arg5[%c0_414, %c0_415, %c64_416], %657 {strides = array<i32>} : memref<2x1x256xf32, #tpu.memory_space<vmem>>, vector<2x1x16xf32>,
    %658 = vector.extract_strided_slice %632 {offsets = [0, 5, 0], sizes = [2, 1, 16], strides = [1, 1, 1]} : vector<2x16x16xf32> to vector<2x1x16xf32>
    %659 = vector.shape_cast %658 : vector<2x1x16xf32> to vector<2x16xf32>
    %c0_417 = arith.constant 0 : index
    %c0_418 = arith.constant 0 : index
    %c80_419 = arith.constant 80 : index
    %660 = vector.load %arg5[%c0_417, %c0_418, %c80_419] : memref<2x1x256xf32, #tpu.memory_space<vmem>>, vector<2x1x16xf32>
    %661 = vector.shape_cast %660 : vector<2x1x16xf32> to vector<2x16xf32>
    %662 = vector.shape_cast %659 : vector<2x16xf32> to vector<2x1x16xf32>
    tpu.vector_store %arg5[%c0_417, %c0_418, %c80_419], %662 {strides = array<i32>} : memref<2x1x256xf32, #tpu.memory_space<vmem>>, vector<2x1x16xf32>,
    %663 = vector.extract_strided_slice %632 {offsets = [0, 6, 0], sizes = [2, 1, 16], strides = [1, 1, 1]} : vector<2x16x16xf32> to vector<2x1x16xf32>
    %664 = vector.shape_cast %663 : vector<2x1x16xf32> to vector<2x16xf32>
    %c0_420 = arith.constant 0 : index
    %c0_421 = arith.constant 0 : index
    %c96_422 = arith.constant 96 : index
    %665 = vector.load %arg5[%c0_420, %c0_421, %c96_422] : memref<2x1x256xf32, #tpu.memory_space<vmem>>, vector<2x1x16xf32>
    %666 = vector.shape_cast %665 : vector<2x1x16xf32> to vector<2x16xf32>
    %667 = vector.shape_cast %664 : vector<2x16xf32> to vector<2x1x16xf32>
    tpu.vector_store %arg5[%c0_420, %c0_421, %c96_422], %667 {strides = array<i32>} : memref<2x1x256xf32, #tpu.memory_space<vmem>>, vector<2x1x16xf32>,
    %668 = vector.extract_strided_slice %632 {offsets = [0, 7, 0], sizes = [2, 1, 16], strides = [1, 1, 1]} : vector<2x16x16xf32> to vector<2x1x16xf32>
    %669 = vector.shape_cast %668 : vector<2x1x16xf32> to vector<2x16xf32>
    %c0_423 = arith.constant 0 : index
    %c0_424 = arith.constant 0 : index
    %c112 = arith.constant 112 : index
    %670 = vector.load %arg5[%c0_423, %c0_424, %c112] : memref<2x1x256xf32, #tpu.memory_space<vmem>>, vector<2x1x16xf32>
    %671 = vector.shape_cast %670 : vector<2x1x16xf32> to vector<2x16xf32>
    %672 = vector.shape_cast %669 : vector<2x16xf32> to vector<2x1x16xf32>
    tpu.vector_store %arg5[%c0_423, %c0_424, %c112], %672 {strides = array<i32>} : memref<2x1x256xf32, #tpu.memory_space<vmem>>, vector<2x1x16xf32>,
    %673 = vector.extract_strided_slice %632 {offsets = [0, 8, 0], sizes = [2, 1, 16], strides = [1, 1, 1]} : vector<2x16x16xf32> to vector<2x1x16xf32>
    %674 = vector.shape_cast %673 : vector<2x1x16xf32> to vector<2x16xf32>
    %c0_425 = arith.constant 0 : index
    %c0_426 = arith.constant 0 : index
    %c128 = arith.constant 128 : index
    %675 = vector.load %arg5[%c0_425, %c0_426, %c128] : memref<2x1x256xf32, #tpu.memory_space<vmem>>, vector<2x1x16xf32>
    %676 = vector.shape_cast %675 : vector<2x1x16xf32> to vector<2x16xf32>
    %677 = vector.shape_cast %674 : vector<2x16xf32> to vector<2x1x16xf32>
    tpu.vector_store %arg5[%c0_425, %c0_426, %c128], %677 {strides = array<i32>} : memref<2x1x256xf32, #tpu.memory_space<vmem>>, vector<2x1x16xf32>,
    %678 = vector.extract_strided_slice %632 {offsets = [0, 9, 0], sizes = [2, 1, 16], strides = [1, 1, 1]} : vector<2x16x16xf32> to vector<2x1x16xf32>
    %679 = vector.shape_cast %678 : vector<2x1x16xf32> to vector<2x16xf32>
    %c0_427 = arith.constant 0 : index
    %c0_428 = arith.constant 0 : index
    %c144 = arith.constant 144 : index
    %680 = vector.load %arg5[%c0_427, %c0_428, %c144] : memref<2x1x256xf32, #tpu.memory_space<vmem>>, vector<2x1x16xf32>
    %681 = vector.shape_cast %680 : vector<2x1x16xf32> to vector<2x16xf32>
    %682 = vector.shape_cast %679 : vector<2x16xf32> to vector<2x1x16xf32>
    tpu.vector_store %arg5[%c0_427, %c0_428, %c144], %682 {strides = array<i32>} : memref<2x1x256xf32, #tpu.memory_space<vmem>>, vector<2x1x16xf32>,
    %683 = vector.extract_strided_slice %632 {offsets = [0, 10, 0], sizes = [2, 1, 16], strides = [1, 1, 1]} : vector<2x16x16xf32> to vector<2x1x16xf32>
    %684 = vector.shape_cast %683 : vector<2x1x16xf32> to vector<2x16xf32>
    %c0_429 = arith.constant 0 : index
    %c0_430 = arith.constant 0 : index
    %c160 = arith.constant 160 : index
    %685 = vector.load %arg5[%c0_429, %c0_430, %c160] : memref<2x1x256xf32, #tpu.memory_space<vmem>>, vector<2x1x16xf32>
    %686 = vector.shape_cast %685 : vector<2x1x16xf32> to vector<2x16xf32>
    %687 = vector.shape_cast %684 : vector<2x16xf32> to vector<2x1x16xf32>
    tpu.vector_store %arg5[%c0_429, %c0_430, %c160], %687 {strides = array<i32>} : memref<2x1x256xf32, #tpu.memory_space<vmem>>, vector<2x1x16xf32>,
    %688 = vector.extract_strided_slice %632 {offsets = [0, 11, 0], sizes = [2, 1, 16], strides = [1, 1, 1]} : vector<2x16x16xf32> to vector<2x1x16xf32>
    %689 = vector.shape_cast %688 : vector<2x1x16xf32> to vector<2x16xf32>
    %c0_431 = arith.constant 0 : index
    %c0_432 = arith.constant 0 : index
    %c176 = arith.constant 176 : index
    %690 = vector.load %arg5[%c0_431, %c0_432, %c176] : memref<2x1x256xf32, #tpu.memory_space<vmem>>, vector<2x1x16xf32>
    %691 = vector.shape_cast %690 : vector<2x1x16xf32> to vector<2x16xf32>
    %692 = vector.shape_cast %689 : vector<2x16xf32> to vector<2x1x16xf32>
    tpu.vector_store %arg5[%c0_431, %c0_432, %c176], %692 {strides = array<i32>} : memref<2x1x256xf32, #tpu.memory_space<vmem>>, vector<2x1x16xf32>,
    %693 = vector.extract_strided_slice %632 {offsets = [0, 12, 0], sizes = [2, 1, 16], strides = [1, 1, 1]} : vector<2x16x16xf32> to vector<2x1x16xf32>
    %694 = vector.shape_cast %693 : vector<2x1x16xf32> to vector<2x16xf32>
    %c0_433 = arith.constant 0 : index
    %c0_434 = arith.constant 0 : index
    %c192 = arith.constant 192 : index
    %695 = vector.load %arg5[%c0_433, %c0_434, %c192] : memref<2x1x256xf32, #tpu.memory_space<vmem>>, vector<2x1x16xf32>
    %696 = vector.shape_cast %695 : vector<2x1x16xf32> to vector<2x16xf32>
    %697 = vector.shape_cast %694 : vector<2x16xf32> to vector<2x1x16xf32>
    tpu.vector_store %arg5[%c0_433, %c0_434, %c192], %697 {strides = array<i32>} : memref<2x1x256xf32, #tpu.memory_space<vmem>>, vector<2x1x16xf32>,
    %698 = vector.extract_strided_slice %632 {offsets = [0, 13, 0], sizes = [2, 1, 16], strides = [1, 1, 1]} : vector<2x16x16xf32> to vector<2x1x16xf32>
    %699 = vector.shape_cast %698 : vector<2x1x16xf32> to vector<2x16xf32>
    %c0_435 = arith.constant 0 : index
    %c0_436 = arith.constant 0 : index
    %c208 = arith.constant 208 : index
    %700 = vector.load %arg5[%c0_435, %c0_436, %c208] : memref<2x1x256xf32, #tpu.memory_space<vmem>>, vector<2x1x16xf32>
    %701 = vector.shape_cast %700 : vector<2x1x16xf32> to vector<2x16xf32>
    %702 = vector.shape_cast %699 : vector<2x16xf32> to vector<2x1x16xf32>
    tpu.vector_store %arg5[%c0_435, %c0_436, %c208], %702 {strides = array<i32>} : memref<2x1x256xf32, #tpu.memory_space<vmem>>, vector<2x1x16xf32>,
    %703 = vector.extract_strided_slice %632 {offsets = [0, 14, 0], sizes = [2, 1, 16], strides = [1, 1, 1]} : vector<2x16x16xf32> to vector<2x1x16xf32>
    %704 = vector.shape_cast %703 : vector<2x1x16xf32> to vector<2x16xf32>
    %c0_437 = arith.constant 0 : index
    %c0_438 = arith.constant 0 : index
    %c224 = arith.constant 224 : index
    %705 = vector.load %arg5[%c0_437, %c0_438, %c224] : memref<2x1x256xf32, #tpu.memory_space<vmem>>, vector<2x1x16xf32>
    %706 = vector.shape_cast %705 : vector<2x1x16xf32> to vector<2x16xf32>
    %707 = vector.shape_cast %704 : vector<2x16xf32> to vector<2x1x16xf32>
    tpu.vector_store %arg5[%c0_437, %c0_438, %c224], %707 {strides = array<i32>} : memref<2x1x256xf32, #tpu.memory_space<vmem>>, vector<2x1x16xf32>,
    %708 = vector.extract_strided_slice %632 {offsets = [0, 15, 0], sizes = [2, 1, 16], strides = [1, 1, 1]} : vector<2x16x16xf32> to vector<2x1x16xf32>
    %709 = vector.shape_cast %708 : vector<2x1x16xf32> to vector<2x16xf32>
    %c0_439 = arith.constant 0 : index
    %c0_440 = arith.constant 0 : index
    %c240 = arith.constant 240 : index
    %710 = vector.load %arg5[%c0_439, %c0_440, %c240] : memref<2x1x256xf32, #tpu.memory_space<vmem>>, vector<2x1x16xf32>
    %711 = vector.shape_cast %710 : vector<2x1x16xf32> to vector<2x16xf32>
    %712 = vector.shape_cast %709 : vector<2x16xf32> to vector<2x1x16xf32>
    tpu.vector_store %arg5[%c0_439, %c0_440, %c240], %712 {strides = array<i32>} : memref<2x1x256xf32, #tpu.memory_space<vmem>>, vector<2x1x16xf32>,
    %c0_441 = arith.constant 0 : index
    %c0_442 = arith.constant 0 : index
    %c0_443 = arith.constant 0 : index
    %713 = vector.load %arg2[%c0_441, %c0_442, %c0_443] : memref<2x4x256xf32, #tpu.memory_space<vmem>>, vector<2x4x256xf32>
    %c0_444 = arith.constant 0 : index
    %c0_445 = arith.constant 0 : index
    %c0_446 = arith.constant 0 : index
    %714 = vector.load %arg5[%c0_444, %c0_445, %c0_446] : memref<2x1x256xf32, #tpu.memory_space<vmem>>, vector<2x1x256xf32>
    %715 = vector.broadcast %714 : vector<2x1x256xf32> to vector<2x4x256xf32>
    %716 = arith.mulf %715, %713 : vector<2x4x256xf32>
    %c0_447 = arith.constant 0 : index
    %c0_448 = arith.constant 0 : index
    %c0_449 = arith.constant 0 : index
    %717 = vector.load %arg3[%c0_447, %c0_448, %c0_449] : memref<2x4x256xf32, #tpu.memory_space<vmem>>, vector<2x4x256xf32>
    tpu.vector_store %arg3[%c0_447, %c0_448, %c0_449], %716 {strides = array<i32>} : memref<2x4x256xf32, #tpu.memory_space<vmem>>, vector<2x4x256xf32>,
    return
  }
  func.func @transform_0(%arg0: i32) -> i32 {
    %c0_i32 = arith.constant 0 : i32
    %c0_i32_0 = arith.constant 0 : i32
    return %c0_i32 : i32
  }
  func.func @transform_1(%arg0: i32) -> (i32, i32, i32) {
    %c0_i32 = arith.constant 0 : i32
    %c0_i32_0 = arith.constant 0 : i32
    %c0_i32_1 = arith.constant 0 : i32
    return %arg0, %c0_i32, %c0_i32_0 : i32, i32, i32
  }
  func.func @transform_2(%arg0: i32) -> (i32, i32, i32) {
    %c0_i32 = arith.constant 0 : i32
    %c0_i32_0 = arith.constant 0 : i32
    %c0_i32_1 = arith.constant 0 : i32
    return %arg0, %c0_i32, %c0_i32_0 : i32, i32, i32
  }
}

</mosaic_0001>

<llo_original>
// kernel: tpu_custom_call.1
$region0: #{tpu_custom_call.1}
  #allocation0 [shape = 'u32[]', space=smem, size = 0x4, offset = 0x4, fixed_abs, tag = 'smem constant byte address 0x4 - core index']
  #allocation1 [shape = 'u32[144,128]{1,0:T(1,128)}', space=vmem, size = 0x12000, scoped, tag = 'internal scratch']
  #allocation2 [shape = 'f32[4,22,22]{2,1,0:T(8,128)}', space=vmem, size = 0xc000, scoped, tag = 'scratch operand']
  #allocation3 [shape = 'f32[2,1,256]{2,1,0:T(1,128)}', space=vmem, size = 0x800, scoped, tag = 'scratch operand']
  %s0 = inlined_call_operand.hbm [shape: f32[98], index: 0, kind: input, shape index: {}]
  %s1 = inlined_call_operand.hbm [shape: f32[2,4,256], index: 1, kind: input, shape index: {}]
  %s2 = inlined_call_operand.hbm [shape: f32[2,4,256], index: 2, kind: output, shape index: {}]
  %s3 = sld [smem:[#allocation0]]
  $region26: #{tpu_custom_call.1} parent=0
    _
  %s5 = ssub.s32 1, %s3
  %s6 = scalar_select 0, %s5, %s3
  $region1: #{tpu_custom_call.1} parent=0
    #allocation4 [shape = 'u8[512]{0}', space=smem, size = 0x200, scoped, tag = 'input window, operand 0, single buffered']
    #allocation5 [shape = 's32[1]{0}', space=sflag, size = 0x4, scoped, tag = 'scoped memory for tpu_custom_call.1']
    #allocation6 [shape = 's32[1]{0}', space=sflag, size = 0x4, scoped, tag = 'scoped memory for tpu_custom_call.1']
    #allocation7 [shape = 's32[1]{0}', space=sflag, size = 0x4, scoped, tag = 'scoped memory for tpu_custom_call.1']
    #allocation8 [shape = 'u8[8192]{0}', space=vmem, size = 0x2000, scoped, tag = 'input window, operand 1, single buffered']
    #allocation9 [shape = 'u8[8192]{0}', space=vmem, size = 0x2000, scoped, tag = 'output window, operand 0, single buffered']
    %7 = vsyncpa [#allocation7], 0
    %8 = vsyncpa [#allocation5], 0
    %9 = vsyncpa [#allocation6], 0
    // Predicated region
    $region2: #{tpu_custom_call.1} parent=1 // pred_check
      _
    $region3: #{tpu_custom_call.1} parent=1 // pred_check_branch
      %11 = sbr.rel (0) target = $region5
    $region4: #{tpu_custom_call.1} parent=1 // pred_region
      %s13 = ssub.s32 16, 16
      %14 = vsyncadd [#allocation7], %s13
      %17 = dma.hbm_to_smem %s0, 16, [#allocation4], [#allocation7]
    $region5: #{tpu_custom_call.1} parent=1 // pred_fallthru
      _
    // Predicated region
    $region6: #{tpu_custom_call.1} parent=1 // pred_check
      _
    $region7: #{tpu_custom_call.1} parent=1 // pred_check_branch
      %19 = sbr.rel (0) target = $region9
    $region8: #{tpu_custom_call.1} parent=1 // pred_region
      %s21 = ssub.s32 256, 256
      %22 = vsyncadd [#allocation5], %s21
      %s23 = sshll.u32 [#allocation8], 4
      %s24 = int_to_ptr.vmem [resolvable:$true] %s23
      %29 = dma.hbm_to_vmem [thread:$0]  %s1, 256, %s24, [#allocation5], 128, 128, 8
    $region9: #{tpu_custom_call.1} parent=1 // pred_fallthru
      _
    // Predicated region
    $region10: #{tpu_custom_call.1} parent=1 // pred_check
      _
    $region11: #{tpu_custom_call.1} parent=1 // pred_check_branch
      %31 = sbr.rel (0) target = $region13
    $region12: #{tpu_custom_call.1} parent=1 // pred_region
      %32 = dma.done [#allocation7], 16
    $region13: #{tpu_custom_call.1} parent=1 // pred_fallthru
      _
    // Predicated region
    $region14: #{tpu_custom_call.1} parent=1 // pred_check
      _
    $region15: #{tpu_custom_call.1} parent=1 // pred_check_branch
      %34 = sbr.rel (0) target = $region17
    $region16: #{tpu_custom_call.1} parent=1 // pred_region
      %35 = dma.done [#allocation5], 256
    $region17: #{tpu_custom_call.1} parent=1 // pred_fallthru
      _
    %36 = sfence
    %v37 = vld [vmem:[#allocation8] sm:$0xff]
    %v38 = vld [vmem:[#allocation8 + $0x8] sm:$0xff]
    %v41 = vcombine.high %v37, %v37
    %v42 = vcombine.high %v38, %v38
    %vm45 = vcmask 1043456
    %v46 = vsel %vm45, %v37, 0.0
    %v47 = vrot.slane %v46, 4
    %v48 = vadd.f32 %v46, %v47
    %v49 = vrot.slane %v48, 2
    %v50 = vadd.f32 %v48, %v49
    %v51 = vrot.slane %v50, 1
    %v52 = vadd.f32 %v50, %v51
    %v53 = vsel %vm45, %v41, 0.0
    %v54 = vrot.slane %v53, 4
    %v55 = vadd.f32 %v53, %v54
    %v56 = vrot.slane %v55, 2
    %v57 = vadd.f32 %v55, %v56
    %v58 = vrot.slane %v57, 1
    %v59 = vadd.f32 %v57, %v58
    %v60 = vsel %vm45, %v38, 0.0
    %v61 = vrot.slane %v60, 4
    %v62 = vadd.f32 %v60, %v61
    %v63 = vrot.slane %v62, 2
    %v64 = vadd.f32 %v62, %v63
    %v65 = vrot.slane %v64, 1
    %v66 = vadd.f32 %v64, %v65
    %v67 = vsel %vm45, %v42, 0.0
    %v68 = vrot.slane %v67, 4
    %v69 = vadd.f32 %v67, %v68
    %v70 = vrot.slane %v69, 2
    %v71 = vadd.f32 %v69, %v70
    %v72 = vrot.slane %v71, 1
    %v73 = vadd.f32 %v71, %v72
    %v74 = vrcp.pop 4.0
    %v75 = vmul.f32 %v52, %v74
    %v76 = vmul.f32 %v59, %v74
    %v77 = vmul.f32 %v66, %v74
    %v78 = vmul.f32 %v73, %v74
    %v79 = vsel %vm45, %v37, -inf
    %v80 = vrot.slane %v79, 4
    %v81 = vmax.f32 %v79, %v80
    %v82 = vrot.slane %v81, 2
    %v83 = vmax.f32 %v81, %v82
    %v84 = vrot.slane %v83, 1
    %v85 = vmax.f32 %v83, %v84
    %v86 = vsel %vm45, %v41, -inf
    %v87 = vrot.slane %v86, 4
    %v88 = vmax.f32 %v86, %v87
    %v89 = vrot.slane %v88, 2
    %v90 = vmax.f32 %v88, %v89
    %v91 = vrot.slane %v90, 1
    %v92 = vmax.f32 %v90, %v91
    %v93 = vsel %vm45, %v38, -inf
    %v94 = vrot.slane %v93, 4
    %v95 = vmax.f32 %v93, %v94
    %v96 = vrot.slane %v95, 2
    %v97 = vmax.f32 %v95, %v96
    %v98 = vrot.slane %v97, 1
    %v99 = vmax.f32 %v97, %v98
    %v100 = vsel %vm45, %v42, -inf
    %v101 = vrot.slane %v100, 4
    %v102 = vmax.f32 %v100, %v101
    %v103 = vrot.slane %v102, 2
    %v104 = vmax.f32 %v102, %v103
    %v105 = vrot.slane %v104, 1
    %v106 = vmax.f32 %v104, %v105
    %vm107 = vcmask 179200
    %108 = vst.msk [vmem:[#allocation2] sm:$0xff] %vm107, 0.0
    %109 = vst.msk [vmem:[#allocation2 + $0x8] sm:$0xff] %vm107, 0.0
    %vm110 = vcmask 177152
    %111 = vst.msk [vmem:[#allocation2 + $0x10] sm:$0x3f] %vm110, 0.0
    %112 = vst.msk [vmem:[#allocation2 + $0x18] sm:$0xff] %vm107, 0.0
    %113 = vst.msk [vmem:[#allocation2 + $0x20] sm:$0xff] %vm107, 0.0
    %114 = vst.msk [vmem:[#allocation2 + $0x28] sm:$0x3f] %vm110, 0.0
    %115 = vst.msk [vmem:[#allocation2 + $0x30] sm:$0xff] %vm107, 0.0
    %116 = vst.msk [vmem:[#allocation2 + $0x38] sm:$0xff] %vm107, 0.0
    %117 = vst.msk [vmem:[#allocation2 + $0x40] sm:$0x3f] %vm110, 0.0
    %118 = vst.msk [vmem:[#allocation2 + $0x48] sm:$0xff] %vm107, 0.0
    %119 = vst.msk [vmem:[#allocation2 + $0x50] sm:$0xff] %vm107, 0.0
    %120 = vst.msk [vmem:[#allocation2 + $0x58] sm:$0x3f] %vm110, 0.0
    %123 = vrot.lane.b32.xlu0 %v75, 3
    %v124 = vpop.permute.xlu0 %123
    %125 = vrot.lane.b32.xlu0 %v77, 3
    %v126 = vpop.permute.xlu0 %125
    %vm129 = vcmask 147480
    %130 = vst.msk [vmem:[#allocation2 + $0x3] sm:$0x1] %vm129, %v124
    %131 = vst.msk [vmem:[#allocation2 + $0x1b] sm:$0x1] %vm129, %v126
    %134 = vrot.lane.b32.xlu0 %v85, 3
    %v135 = vpop.permute.xlu0 %134
    %136 = vrot.lane.b32.xlu0 %v99, 3
    %v137 = vpop.permute.xlu0 %136
    %s140 = scalar_lea.vmem [#allocation2], 48
    %141 = vst.msk [vmem:[%s140 + $0x3] sm:$0x1] %vm129, %v135
    %142 = vst.msk [vmem:[%s140 + $0x1b] sm:$0x1] %vm129, %v137
    %143 = vrot.lane.b32.xlu0 %v75, 115
    %v144 = vpop.permute.xlu0 %143
    %145 = vrot.lane.b32.xlu0 %v77, 115
    %v146 = vpop.permute.xlu0 %145
    %149 = vst.msk [vmem:[#allocation2 + $0x4] sm:$0x1] %vm129, %v144
    %150 = vst.msk [vmem:[#allocation2 + $0x1c] sm:$0x1] %vm129, %v146
    %151 = vrot.lane.b32.xlu0 %v85, 115
    %v152 = vpop.permute.xlu0 %151
    %153 = vrot.lane.b32.xlu0 %v99, 115
    %v154 = vpop.permute.xlu0 %153
    %157 = vst.msk [vmem:[%s140 + $0x4] sm:$0x1] %vm129, %v152
    %158 = vst.msk [vmem:[%s140 + $0x1c] sm:$0x1] %vm129, %v154
    %159 = vrot.lane.b32.xlu0 %v75, 99
    %v160 = vpop.permute.xlu0 %159
    %161 = vrot.lane.b32.xlu0 %v77, 99
    %v162 = vpop.permute.xlu0 %161
    %165 = vst.msk [vmem:[#allocation2 + $0x5] sm:$0x1] %vm129, %v160
    %166 = vst.msk [vmem:[#allocation2 + $0x1d] sm:$0x1] %vm129, %v162
    %167 = vrot.lane.b32.xlu0 %v85, 99
    %v168 = vpop.permute.xlu0 %167
    %169 = vrot.lane.b32.xlu0 %v99, 99
    %v170 = vpop.permute.xlu0 %169
    %173 = vst.msk [vmem:[%s140 + $0x5] sm:$0x1] %vm129, %v168
    %174 = vst.msk [vmem:[%s140 + $0x1d] sm:$0x1] %vm129, %v170
    %175 = vrot.lane.b32.xlu0 %v75, 83
    %v176 = vpop.permute.xlu0 %175
    %177 = vrot.lane.b32.xlu0 %v77, 83
    %v178 = vpop.permute.xlu0 %177
    %181 = vst.msk [vmem:[#allocation2 + $0x6] sm:$0x1] %vm129, %v176
    %182 = vst.msk [vmem:[#allocation2 + $0x1e] sm:$0x1] %vm129, %v178
    %183 = vrot.lane.b32.xlu0 %v85, 83
    %v184 = vpop.permute.xlu0 %183
    %185 = vrot.lane.b32.xlu0 %v99, 83
    %v186 = vpop.permute.xlu0 %185
    %189 = vst.msk [vmem:[%s140 + $0x6] sm:$0x1] %vm129, %v184
    %190 = vst.msk [vmem:[%s140 + $0x1e] sm:$0x1] %vm129, %v186
    %191 = vrot.lane.b32.xlu0 %v75, 67
    %v192 = vpop.permute.xlu0 %191
    %193 = vrot.lane.b32.xlu0 %v77, 67
    %v194 = vpop.permute.xlu0 %193
    %197 = vst.msk [vmem:[#allocation2 + $0x7] sm:$0x1] %vm129, %v192
    %198 = vst.msk [vmem:[#allocation2 + $0x1f] sm:$0x1] %vm129, %v194
    %199 = vrot.lane.b32.xlu0 %v85, 67
    %v200 = vpop.permute.xlu0 %199
    %201 = vrot.lane.b32.xlu0 %v99, 67
    %v202 = vpop.permute.xlu0 %201
    %205 = vst.msk [vmem:[%s140 + $0x7] sm:$0x1] %vm129, %v200
    %206 = vst.msk [vmem:[%s140 + $0x1f] sm:$0x1] %vm129, %v202
    %207 = vrot.lane.b32.xlu0 %v75, 51
    %v208 = vpop.permute.xlu0 %207
    %209 = vrot.lane.b32.xlu0 %v77, 51
    %v210 = vpop.permute.xlu0 %209
    %213 = vst.msk [vmem:[#allocation2 + $0x8] sm:$0x1] %vm129, %v208
    %214 = vst.msk [vmem:[#allocation2 + $0x20] sm:$0x1] %vm129, %v210
    %215 = vrot.lane.b32.xlu0 %v85, 51
    %v216 = vpop.permute.xlu0 %215
    %217 = vrot.lane.b32.xlu0 %v99, 51
    %v218 = vpop.permute.xlu0 %217
    %221 = vst.msk [vmem:[%s140 + $0x8] sm:$0x1] %vm129, %v216
    %222 = vst.msk [vmem:[%s140 + $0x20] sm:$0x1] %vm129, %v218
    %223 = vrot.lane.b32.xlu0 %v75, 35
    %v224 = vpop.permute.xlu0 %223
    %225 = vrot.lane.b32.xlu0 %v77, 35
    %v226 = vpop.permute.xlu0 %225
    %229 = vst.msk [vmem:[#allocation2 + $0x9] sm:$0x1] %vm129, %v224
    %230 = vst.msk [vmem:[#allocation2 + $0x21] sm:$0x1] %vm129, %v226
    %231 = vrot.lane.b32.xlu0 %v85, 35
    %v232 = vpop.permute.xlu0 %231
    %233 = vrot.lane.b32.xlu0 %v99, 35
    %v234 = vpop.permute.xlu0 %233
    %237 = vst.msk [vmem:[%s140 + $0x9] sm:$0x1] %vm129, %v232
    %238 = vst.msk [vmem:[%s140 + $0x21] sm:$0x1] %vm129, %v234
    %239 = vrot.lane.b32.xlu0 %v75, 19
    %v240 = vpop.permute.xlu0 %239
    %241 = vrot.lane.b32.xlu0 %v77, 19
    %v242 = vpop.permute.xlu0 %241
    %245 = vst.msk [vmem:[#allocation2 + $0xa] sm:$0x1] %vm129, %v240
    %246 = vst.msk [vmem:[#allocation2 + $0x22] sm:$0x1] %vm129, %v242
    %247 = vrot.lane.b32.xlu0 %v85, 19
    %v248 = vpop.permute.xlu0 %247
    %249 = vrot.lane.b32.xlu0 %v99, 19
    %v250 = vpop.permute.xlu0 %249
    %253 = vst.msk [vmem:[%s140 + $0xa] sm:$0x1] %vm129, %v248
    %254 = vst.msk [vmem:[%s140 + $0x22] sm:$0x1] %vm129, %v250
    %257 = vrot.lane.b32.xlu0 %v76, 3
    %v258 = vpop.permute.xlu0 %257
    %259 = vrot.lane.b32.xlu0 %v78, 3
    %v260 = vpop.permute.xlu0 %259
    %263 = vst.msk [vmem:[#allocation2 + $0xb] sm:$0x1] %vm129, %v258
    %264 = vst.msk [vmem:[#allocation2 + $0x23] sm:$0x1] %vm129, %v260
    %267 = vrot.lane.b32.xlu0 %v92, 3
    %v268 = vpop.permute.xlu0 %267
    %269 = vrot.lane.b32.xlu0 %v106, 3
    %v270 = vpop.permute.xlu0 %269
    %273 = vst.msk [vmem:[%s140 + $0xb] sm:$0x1] %vm129, %v268
    %274 = vst.msk [vmem:[%s140 + $0x23] sm:$0x1] %vm129, %v270
    %275 = vrot.lane.b32.xlu0 %v76, 115
    %v276 = vpop.permute.xlu0 %275
    %277 = vrot.lane.b32.xlu0 %v78, 115
    %v278 = vpop.permute.xlu0 %277
    %281 = vst.msk [vmem:[#allocation2 + $0xc] sm:$0x1] %vm129, %v276
    %282 = vst.msk [vmem:[#allocation2 + $0x24] sm:$0x1] %vm129, %v278
    %283 = vrot.lane.b32.xlu0 %v92, 115
    %v284 = vpop.permute.xlu0 %283
    %285 = vrot.lane.b32.xlu0 %v106, 115
    %v286 = vpop.permute.xlu0 %285
    %289 = vst.msk [vmem:[%s140 + $0xc] sm:$0x1] %vm129, %v284
    %290 = vst.msk [vmem:[%s140 + $0x24] sm:$0x1] %vm129, %v286
    %291 = vrot.lane.b32.xlu0 %v76, 99
    %v292 = vpop.permute.xlu0 %291
    %293 = vrot.lane.b32.xlu0 %v78, 99
    %v294 = vpop.permute.xlu0 %293
    %297 = vst.msk [vmem:[#allocation2 + $0xd] sm:$0x1] %vm129, %v292
    %298 = vst.msk [vmem:[#allocation2 + $0x25] sm:$0x1] %vm129, %v294
    %299 = vrot.lane.b32.xlu0 %v92, 99
    %v300 = vpop.permute.xlu0 %299
    %301 = vrot.lane.b32.xlu0 %v106, 99
    %v302 = vpop.permute.xlu0 %301
    %305 = vst.msk [vmem:[%s140 + $0xd] sm:$0x1] %vm129, %v300
    %306 = vst.msk [vmem:[%s140 + $0x25] sm:$0x1] %vm129, %v302
    %307 = vrot.lane.b32.xlu0 %v76, 83
    %v308 = vpop.permute.xlu0 %307
    %309 = vrot.lane.b32.xlu0 %v78, 83
    %v310 = vpop.permute.xlu0 %309
    %313 = vst.msk [vmem:[#allocation2 + $0xe] sm:$0x1] %vm129, %v308
    %314 = vst.msk [vmem:[#allocation2 + $0x26] sm:$0x1] %vm129, %v310
    %315 = vrot.lane.b32.xlu0 %v92, 83
    %v316 = vpop.permute.xlu0 %315
    %317 = vrot.lane.b32.xlu0 %v106, 83
    %v318 = vpop.permute.xlu0 %317
    %321 = vst.msk [vmem:[%s140 + $0xe] sm:$0x1] %vm129, %v316
    %322 = vst.msk [vmem:[%s140 + $0x26] sm:$0x1] %vm129, %v318
    %323 = vrot.lane.b32.xlu0 %v76, 67
    %v324 = vpop.permute.xlu0 %323
    %325 = vrot.lane.b32.xlu0 %v78, 67
    %v326 = vpop.permute.xlu0 %325
    %329 = vst.msk [vmem:[#allocation2 + $0xf] sm:$0x1] %vm129, %v324
    %330 = vst.msk [vmem:[#allocation2 + $0x27] sm:$0x1] %vm129, %v326
    %331 = vrot.lane.b32.xlu0 %v92, 67
    %v332 = vpop.permute.xlu0 %331
    %333 = vrot.lane.b32.xlu0 %v106, 67
    %v334 = vpop.permute.xlu0 %333
    %337 = vst.msk [vmem:[%s140 + $0xf] sm:$0x1] %vm129, %v332
    %338 = vst.msk [vmem:[%s140 + $0x27] sm:$0x1] %vm129, %v334
    %339 = vrot.lane.b32.xlu0 %v76, 51
    %v340 = vpop.permute.xlu0 %339
    %341 = vrot.lane.b32.xlu0 %v78, 51
    %v342 = vpop.permute.xlu0 %341
    %345 = vst.msk [vmem:[#allocation2 + $0x10] sm:$0x1] %vm129, %v340
    %346 = vst.msk [vmem:[#allocation2 + $0x28] sm:$0x1] %vm129, %v342
    %347 = vrot.lane.b32.xlu0 %v92, 51
    %v348 = vpop.permute.xlu0 %347
    %349 = vrot.lane.b32.xlu0 %v106, 51
    %v350 = vpop.permute.xlu0 %349
    %353 = vst.msk [vmem:[%s140 + $0x10] sm:$0x1] %vm129, %v348
    %354 = vst.msk [vmem:[%s140 + $0x28] sm:$0x1] %vm129, %v350
    %355 = vrot.lane.b32.xlu0 %v76, 35
    %v356 = vpop.permute.xlu0 %355
    %357 = vrot.lane.b32.xlu0 %v78, 35
    %v358 = vpop.permute.xlu0 %357
    %361 = vst.msk [vmem:[#allocation2 + $0x11] sm:$0x1] %vm129, %v356
    %362 = vst.msk [vmem:[#allocation2 + $0x29] sm:$0x1] %vm129, %v358
    %363 = vrot.lane.b32.xlu0 %v92, 35
    %v364 = vpop.permute.xlu0 %363
    %365 = vrot.lane.b32.xlu0 %v106, 35
    %v366 = vpop.permute.xlu0 %365
    %369 = vst.msk [vmem:[%s140 + $0x11] sm:$0x1] %vm129, %v364
    %370 = vst.msk [vmem:[%s140 + $0x29] sm:$0x1] %vm129, %v366
    %371 = vrot.lane.b32.xlu0 %v76, 19
    %v372 = vpop.permute.xlu0 %371
    %373 = vrot.lane.b32.xlu0 %v78, 19
    %v374 = vpop.permute.xlu0 %373
    %377 = vst.msk [vmem:[#allocation2 + $0x12] sm:$0x1] %vm129, %v372
    %378 = vst.msk [vmem:[#allocation2 + $0x2a] sm:$0x1] %vm129, %v374
    %379 = vrot.lane.b32.xlu0 %v92, 19
    %v380 = vpop.permute.xlu0 %379
    %381 = vrot.lane.b32.xlu0 %v106, 19
    %v382 = vpop.permute.xlu0 %381
    %385 = vst.msk [vmem:[%s140 + $0x12] sm:$0x1] %vm129, %v380
    %386 = vst.msk [vmem:[%s140 + $0x2a] sm:$0x1] %vm129, %v382
    %s387 = sld [smem:[#allocation4]]
    %v388 = vld [vmem:[#allocation2] sm:$0xff]
    %v389 = vld [vmem:[#allocation2 + $0x8] sm:$0xff]
    %v390 = vld [vmem:[#allocation2 + $0x18] sm:$0xff]
    %v391 = vld [vmem:[#allocation2 + $0x20] sm:$0xff]
    %v392 = vstv %s387
    %v393 = vmul.f32 %v392, %v388
    %v394 = vmul.f32 %v392, %v389
    %v395 = vmul.f32 %v392, %v390
    %v396 = vmul.f32 %v392, %v391
    %v397 = vadd.f32 %v393, 0.0
    %v398 = vadd.f32 %v394, 0.0
    %v399 = vadd.f32 %v395, 0.0
    %v400 = vadd.f32 %v396, 0.0
    %s401 = sld [smem:[#allocation4 + $0x1]]
    %v402 = vstv %s401
    %v403 = vmul.f32 %v402, %v388
    %v404 = vmul.f32 %v402, %v389
    %v405 = vmul.f32 %v402, %v390
    %v406 = vmul.f32 %v402, %v391
    %411 = vrot.lane.b32.xlu0 %v403, 127
    %v412 = vpop.permute.xlu0 %411
    %413 = vrot.lane.b32.xlu0 %v404, 127
    %v414 = vpop.permute.xlu0 %413
    %415 = vrot.lane.b32.xlu0 %v405, 127
    %v416 = vpop.permute.xlu0 %415
    %417 = vrot.lane.b32.xlu0 %v406, 127
    %v418 = vpop.permute.xlu0 %417
    %v423 = vadd.f32 %v397, %v412
    %v424 = vadd.f32 %v398, %v414
    %v425 = vadd.f32 %v399, %v416
    %v426 = vadd.f32 %v400, %v418
    %s427 = sld [smem:[#allocation4 + $0x2]]
    %v428 = vstv %s427
    %v429 = vmul.f32 %v428, %v388
    %v430 = vmul.f32 %v428, %v389
    %v431 = vmul.f32 %v428, %v390
    %v432 = vmul.f32 %v428, %v391
    %437 = vrot.lane.b32.xlu0 %v429, 126
    %v438 = vpop.permute.xlu0 %437
    %439 = vrot.lane.b32.xlu0 %v430, 126
    %v440 = vpop.permute.xlu0 %439
    %441 = vrot.lane.b32.xlu0 %v431, 126
    %v442 = vpop.permute.xlu0 %441
    %443 = vrot.lane.b32.xlu0 %v432, 126
    %v444 = vpop.permute.xlu0 %443
    %v449 = vadd.f32 %v423, %v438
    %v450 = vadd.f32 %v424, %v440
    %v451 = vadd.f32 %v425, %v442
    %v452 = vadd.f32 %v426, %v444
    %s453 = sld [smem:[#allocation4 + $0x3]]
    %v454 = vstv %s453
    %v455 = vmul.f32 %v454, %v388
    %v456 = vmul.f32 %v454, %v389
    %v457 = vmul.f32 %v454, %v390
    %v458 = vmul.f32 %v454, %v391
    %463 = vrot.lane.b32.xlu0 %v455, 125
    %v464 = vpop.permute.xlu0 %463
    %465 = vrot.lane.b32.xlu0 %v456, 125
    %v466 = vpop.permute.xlu0 %465
    %467 = vrot.lane.b32.xlu0 %v457, 125
    %v468 = vpop.permute.xlu0 %467
    %469 = vrot.lane.b32.xlu0 %v458, 125
    %v470 = vpop.permute.xlu0 %469
    %v475 = vadd.f32 %v449, %v464
    %v476 = vadd.f32 %v450, %v466
    %v477 = vadd.f32 %v451, %v468
    %v478 = vadd.f32 %v452, %v470
    %s479 = sld [smem:[#allocation4 + $0x4]]
    %v480 = vstv %s479
    %v481 = vmul.f32 %v480, %v388
    %v482 = vmul.f32 %v480, %v389
    %v483 = vmul.f32 %v480, %v390
    %v484 = vmul.f32 %v480, %v391
    %489 = vrot.lane.b32.xlu0 %v481, 124
    %v490 = vpop.permute.xlu0 %489
    %491 = vrot.lane.b32.xlu0 %v482, 124
    %v492 = vpop.permute.xlu0 %491
    %493 = vrot.lane.b32.xlu0 %v483, 124
    %v494 = vpop.permute.xlu0 %493
    %495 = vrot.lane.b32.xlu0 %v484, 124
    %v496 = vpop.permute.xlu0 %495
    %v501 = vadd.f32 %v475, %v490
    %v502 = vadd.f32 %v476, %v492
    %v503 = vadd.f32 %v477, %v494
    %v504 = vadd.f32 %v478, %v496
    %s505 = sld [smem:[#allocation4 + $0x5]]
    %v506 = vstv %s505
    %v507 = vmul.f32 %v506, %v388
    %v508 = vmul.f32 %v506, %v389
    %v509 = vmul.f32 %v506, %v390
    %v510 = vmul.f32 %v506, %v391
    %515 = vrot.lane.b32.xlu0 %v507, 123
    %v516 = vpop.permute.xlu0 %515
    %517 = vrot.lane.b32.xlu0 %v508, 123
    %v518 = vpop.permute.xlu0 %517
    %519 = vrot.lane.b32.xlu0 %v509, 123
    %v520 = vpop.permute.xlu0 %519
    %521 = vrot.lane.b32.xlu0 %v510, 123
    %v522 = vpop.permute.xlu0 %521
    %v527 = vadd.f32 %v501, %v516
    %v528 = vadd.f32 %v502, %v518
    %v529 = vadd.f32 %v503, %v520
    %v530 = vadd.f32 %v504, %v522
    %s531 = sld [smem:[#allocation4 + $0x6]]
    %v532 = vstv %s531
    %v533 = vmul.f32 %v532, %v388
    %v534 = vmul.f32 %v532, %v389
    %v535 = vmul.f32 %v532, %v390
    %v536 = vmul.f32 %v532, %v391
    %541 = vrot.lane.b32.xlu0 %v533, 122
    %v542 = vpop.permute.xlu0 %541
    %543 = vrot.lane.b32.xlu0 %v534, 122
    %v544 = vpop.permute.xlu0 %543
    %545 = vrot.lane.b32.xlu0 %v535, 122
    %v546 = vpop.permute.xlu0 %545
    %547 = vrot.lane.b32.xlu0 %v536, 122
    %v548 = vpop.permute.xlu0 %547
    %v553 = vadd.f32 %v527, %v542
    %v554 = vadd.f32 %v528, %v544
    %v555 = vadd.f32 %v529, %v546
    %v556 = vadd.f32 %v530, %v548
    %s557 = sld [smem:[#allocation4 + $0x7]]
    %v558 = vld [vmem:[#allocation2 + $0x1] sm:$0xff]
    %v559 = vld [vmem:[#allocation2 + $0x9] sm:$0xff]
    %v560 = vld [vmem:[#allocation2 + $0x19] sm:$0xff]
    %v561 = vld [vmem:[#allocation2 + $0x21] sm:$0xff]
    %v562 = vstv %s557
    %v563 = vmul.f32 %v562, %v558
    %v564 = vmul.f32 %v562, %v559
    %v565 = vmul.f32 %v562, %v560
    %v566 = vmul.f32 %v562, %v561
    %v567 = vadd.f32 %v553, %v563
    %v568 = vadd.f32 %v554, %v564
    %v569 = vadd.f32 %v555, %v565
    %v570 = vadd.f32 %v556, %v566
    %s571 = sld [smem:[#allocation4 + $0x8]]
    %v572 = vstv %s571
    %v573 = vmul.f32 %v572, %v558
    %v574 = vmul.f32 %v572, %v559
    %v575 = vmul.f32 %v572, %v560
    %v576 = vmul.f32 %v572, %v561
    %581 = vrot.lane.b32.xlu0 %v573, 127
    %v582 = vpop.permute.xlu0 %581
    %583 = vrot.lane.b32.xlu0 %v574, 127
    %v584 = vpop.permute.xlu0 %583
    %585 = vrot.lane.b32.xlu0 %v575, 127
    %v586 = vpop.permute.xlu0 %585
    %587 = vrot.lane.b32.xlu0 %v576, 127
    %v588 = vpop.permute.xlu0 %587
    %v593 = vadd.f32 %v567, %v582
    %v594 = vadd.f32 %v568, %v584
    %v595 = vadd.f32 %v569, %v586
    %v596 = vadd.f32 %v570, %v588
    %s597 = sld [smem:[#allocation4 + $0x9]]
    %v598 = vstv %s597
    %v599 = vmul.f32 %v598, %v558
    %v600 = vmul.f32 %v598, %v559
    %v601 = vmul.f32 %v598, %v560
    %v602 = vmul.f32 %v598, %v561
    %607 = vrot.lane.b32.xlu0 %v599, 126
    %v608 = vpop.permute.xlu0 %607
    %609 = vrot.lane.b32.xlu0 %v600, 126
    %v610 = vpop.permute.xlu0 %609
    %611 = vrot.lane.b32.xlu0 %v601, 126
    %v612 = vpop.permute.xlu0 %611
    %613 = vrot.lane.b32.xlu0 %v602, 126
    %v614 = vpop.permute.xlu0 %613
    %v619 = vadd.f32 %v593, %v608
    %v620 = vadd.f32 %v594, %v610
    %v621 = vadd.f32 %v595, %v612
    %v622 = vadd.f32 %v596, %v614
    %s623 = sld [smem:[#allocation4 + $0xa]]
    %v624 = vstv %s623
    %v625 = vmul.f32 %v624, %v558
    %v626 = vmul.f32 %v624, %v559
    %v627 = vmul.f32 %v624, %v560
    %v628 = vmul.f32 %v624, %v561
    %633 = vrot.lane.b32.xlu0 %v625, 125
    %v634 = vpop.permute.xlu0 %633
    %635 = vrot.lane.b32.xlu0 %v626, 125
    %v636 = vpop.permute.xlu0 %635
    %637 = vrot.lane.b32.xlu0 %v627, 125
    %v638 = vpop.permute.xlu0 %637
    %639 = vrot.lane.b32.xlu0 %v628, 125
    %v640 = vpop.permute.xlu0 %639
    %v645 = vadd.f32 %v619, %v634
    %v646 = vadd.f32 %v620, %v636
    %v647 = vadd.f32 %v621, %v638
    %v648 = vadd.f32 %v622, %v640
    %s649 = sld [smem:[#allocation4 + $0xb]]
    %v650 = vstv %s649
    %v651 = vmul.f32 %v650, %v558
    %v652 = vmul.f32 %v650, %v559
    %v653 = vmul.f32 %v650, %v560
    %v654 = vmul.f32 %v650, %v561
    %659 = vrot.lane.b32.xlu0 %v651, 124
    %v660 = vpop.permute.xlu0 %659
    %661 = vrot.lane.b32.xlu0 %v652, 124
    %v662 = vpop.permute.xlu0 %661
    %663 = vrot.lane.b32.xlu0 %v653, 124
    %v664 = vpop.permute.xlu0 %663
    %665 = vrot.lane.b32.xlu0 %v654, 124
    %v666 = vpop.permute.xlu0 %665
    %v671 = vadd.f32 %v645, %v660
    %v672 = vadd.f32 %v646, %v662
    %v673 = vadd.f32 %v647, %v664
    %v674 = vadd.f32 %v648, %v666
    %s675 = sld [smem:[#allocation4 + $0xc]]
    %v676 = vstv %s675
    %v677 = vmul.f32 %v676, %v558
    %v678 = vmul.f32 %v676, %v559
    %v679 = vmul.f32 %v676, %v560
    %v680 = vmul.f32 %v676, %v561
    %685 = vrot.lane.b32.xlu0 %v677, 123
    %v686 = vpop.permute.xlu0 %685
    %687 = vrot.lane.b32.xlu0 %v678, 123
    %v688 = vpop.permute.xlu0 %687
    %689 = vrot.lane.b32.xlu0 %v679, 123
    %v690 = vpop.permute.xlu0 %689
    %691 = vrot.lane.b32.xlu0 %v680, 123
    %v692 = vpop.permute.xlu0 %691
    %v697 = vadd.f32 %v671, %v686
    %v698 = vadd.f32 %v672, %v688
    %v699 = vadd.f32 %v673, %v690
    %v700 = vadd.f32 %v674, %v692
    %s701 = sld [smem:[#allocation4 + $0xd]]
    %v702 = vstv %s701
    %v703 = vmul.f32 %v702, %v558
    %v704 = vmul.f32 %v702, %v559
    %v705 = vmul.f32 %v702, %v560
    %v706 = vmul.f32 %v702, %v561
    %711 = vrot.lane.b32.xlu0 %v703, 122
    %v712 = vpop.permute.xlu0 %711
    %713 = vrot.lane.b32.xlu0 %v704, 122
    %v714 = vpop.permute.xlu0 %713
    %715 = vrot.lane.b32.xlu0 %v705, 122
    %v716 = vpop.permute.xlu0 %715
    %717 = vrot.lane.b32.xlu0 %v706, 122
    %v718 = vpop.permute.xlu0 %717
    %v723 = vadd.f32 %v697, %v712
    %v724 = vadd.f32 %v698, %v714
    %v725 = vadd.f32 %v699, %v716
    %v726 = vadd.f32 %v700, %v718
    %s727 = sld [smem:[#allocation4 + $0xe]]
    %v728 = vld [vmem:[#allocation2 + $0x2] sm:$0xff]
    %v729 = vld [vmem:[#allocation2 + $0xa] sm:$0xff]
    %v730 = vld [vmem:[#allocation2 + $0x1a] sm:$0xff]
    %v731 = vld [vmem:[#allocation2 + $0x22] sm:$0xff]
    %v732 = vstv %s727
    %v733 = vmul.f32 %v732, %v728
    %v734 = vmul.f32 %v732, %v729
    %v735 = vmul.f32 %v732, %v730
    %v736 = vmul.f32 %v732, %v731
    %v737 = vadd.f32 %v723, %v733
    %v738 = vadd.f32 %v724, %v734
    %v739 = vadd.f32 %v725, %v735
    %v740 = vadd.f32 %v726, %v736
    %s741 = sld [smem:[#allocation4 + $0xf]]
    %v742 = vstv %s741
    %v743 = vmul.f32 %v742, %v728
    %v744 = vmul.f32 %v742, %v729
    %v745 = vmul.f32 %v742, %v730
    %v746 = vmul.f32 %v742, %v731
    %751 = vrot.lane.b32.xlu0 %v743, 127
    %v752 = vpop.permute.xlu0 %751
    %753 = vrot.lane.b32.xlu0 %v744, 127
    %v754 = vpop.permute.xlu0 %753
    %755 = vrot.lane.b32.xlu0 %v745, 127
    %v756 = vpop.permute.xlu0 %755
    %757 = vrot.lane.b32.xlu0 %v746, 127
    %v758 = vpop.permute.xlu0 %757
    %v763 = vadd.f32 %v737, %v752
    %v764 = vadd.f32 %v738, %v754
    %v765 = vadd.f32 %v739, %v756
    %v766 = vadd.f32 %v740, %v758
    %s767 = sld [smem:[#allocation4 + $0x10]]
    %v768 = vstv %s767
    %v769 = vmul.f32 %v768, %v728
    %v770 = vmul.f32 %v768, %v729
    %v771 = vmul.f32 %v768, %v730
    %v772 = vmul.f32 %v768, %v731
    %777 = vrot.lane.b32.xlu0 %v769, 126
    %v778 = vpop.permute.xlu0 %777
    %779 = vrot.lane.b32.xlu0 %v770, 126
    %v780 = vpop.permute.xlu0 %779
    %781 = vrot.lane.b32.xlu0 %v771, 126
    %v782 = vpop.permute.xlu0 %781
    %783 = vrot.lane.b32.xlu0 %v772, 126
    %v784 = vpop.permute.xlu0 %783
    %v789 = vadd.f32 %v763, %v778
    %v790 = vadd.f32 %v764, %v780
    %v791 = vadd.f32 %v765, %v782
    %v792 = vadd.f32 %v766, %v784
    %s793 = sld [smem:[#allocation4 + $0x11]]
    %v794 = vstv %s793
    %v795 = vmul.f32 %v794, %v728
    %v796 = vmul.f32 %v794, %v729
    %v797 = vmul.f32 %v794, %v730
    %v798 = vmul.f32 %v794, %v731
    %803 = vrot.lane.b32.xlu0 %v795, 125
    %v804 = vpop.permute.xlu0 %803
    %805 = vrot.lane.b32.xlu0 %v796, 125
    %v806 = vpop.permute.xlu0 %805
    %807 = vrot.lane.b32.xlu0 %v797, 125
    %v808 = vpop.permute.xlu0 %807
    %809 = vrot.lane.b32.xlu0 %v798, 125
    %v810 = vpop.permute.xlu0 %809
    %v815 = vadd.f32 %v789, %v804
    %v816 = vadd.f32 %v790, %v806
    %v817 = vadd.f32 %v791, %v808
    %v818 = vadd.f32 %v792, %v810
    %s819 = sld [smem:[#allocation4 + $0x12]]
    %v820 = vstv %s819
    %v821 = vmul.f32 %v820, %v728
    %v822 = vmul.f32 %v820, %v729
    %v823 = vmul.f32 %v820, %v730
    %v824 = vmul.f32 %v820, %v731
    %829 = vrot.lane.b32.xlu0 %v821, 124
    %v830 = vpop.permute.xlu0 %829
    %831 = vrot.lane.b32.xlu0 %v822, 124
    %v832 = vpop.permute.xlu0 %831
    %833 = vrot.lane.b32.xlu0 %v823, 124
    %v834 = vpop.permute.xlu0 %833
    %835 = vrot.lane.b32.xlu0 %v824, 124
    %v836 = vpop.permute.xlu0 %835
    %v841 = vadd.f32 %v815, %v830
    %v842 = vadd.f32 %v816, %v832
    %v843 = vadd.f32 %v817, %v834
    %v844 = vadd.f32 %v818, %v836
    %s845 = sld [smem:[#allocation4 + $0x13]]
    %v846 = vstv %s845
    %v847 = vmul.f32 %v846, %v728
    %v848 = vmul.f32 %v846, %v729
    %v849 = vmul.f32 %v846, %v730
    %v850 = vmul.f32 %v846, %v731
    %855 = vrot.lane.b32.xlu0 %v847, 123
    %v856 = vpop.permute.xlu0 %855
    %857 = vrot.lane.b32.xlu0 %v848, 123
    %v858 = vpop.permute.xlu0 %857
    %859 = vrot.lane.b32.xlu0 %v849, 123
    %v860 = vpop.permute.xlu0 %859
    %861 = vrot.lane.b32.xlu0 %v850, 123
    %v862 = vpop.permute.xlu0 %861
    %v867 = vadd.f32 %v841, %v856
    %v868 = vadd.f32 %v842, %v858
    %v869 = vadd.f32 %v843, %v860
    %v870 = vadd.f32 %v844, %v862
    %s871 = sld [smem:[#allocation4 + $0x14]]
    %v872 = vstv %s871
    %v873 = vmul.f32 %v872, %v728
    %v874 = vmul.f32 %v872, %v729
    %v875 = vmul.f32 %v872, %v730
    %v876 = vmul.f32 %v872, %v731
    %881 = vrot.lane.b32.xlu0 %v873, 122
    %v882 = vpop.permute.xlu0 %881
    %883 = vrot.lane.b32.xlu0 %v874, 122
    %v884 = vpop.permute.xlu0 %883
    %885 = vrot.lane.b32.xlu0 %v875, 122
    %v886 = vpop.permute.xlu0 %885
    %887 = vrot.lane.b32.xlu0 %v876, 122
    %v888 = vpop.permute.xlu0 %887
    %v893 = vadd.f32 %v867, %v882
    %v894 = vadd.f32 %v868, %v884
    %v895 = vadd.f32 %v869, %v886
    %v896 = vadd.f32 %v870, %v888
    %s897 = sld [smem:[#allocation4 + $0x15]]
    %v898 = vld [vmem:[#allocation2 + $0x3] sm:$0xff]
    %v899 = vld [vmem:[#allocation2 + $0xb] sm:$0xff]
    %v900 = vld [vmem:[#allocation2 + $0x1b] sm:$0xff]
    %v901 = vld [vmem:[#allocation2 + $0x23] sm:$0xff]
    %v902 = vstv %s897
    %v903 = vmul.f32 %v902, %v898
    %v904 = vmul.f32 %v902, %v899
    %v905 = vmul.f32 %v902, %v900
    %v906 = vmul.f32 %v902, %v901
    %v907 = vadd.f32 %v893, %v903
    %v908 = vadd.f32 %v894, %v904
    %v909 = vadd.f32 %v895, %v905
    %v910 = vadd.f32 %v896, %v906
    %s911 = sld [smem:[#allocation4 + $0x16]]
    %v912 = vstv %s911
    %v913 = vmul.f32 %v912, %v898
    %v914 = vmul.f32 %v912, %v899
    %v915 = vmul.f32 %v912, %v900
    %v916 = vmul.f32 %v912, %v901
    %921 = vrot.lane.b32.xlu0 %v913, 127
    %v922 = vpop.permute.xlu0 %921
    %923 = vrot.lane.b32.xlu0 %v914, 127
    %v924 = vpop.permute.xlu0 %923
    %925 = vrot.lane.b32.xlu0 %v915, 127
    %v926 = vpop.permute.xlu0 %925
    %927 = vrot.lane.b32.xlu0 %v916, 127
    %v928 = vpop.permute.xlu0 %927
    %v933 = vadd.f32 %v907, %v922
    %v934 = vadd.f32 %v908, %v924
    %v935 = vadd.f32 %v909, %v926
    %v936 = vadd.f32 %v910, %v928
    %s937 = sld [smem:[#allocation4 + $0x17]]
    %v938 = vstv %s937
    %v939 = vmul.f32 %v938, %v898
    %v940 = vmul.f32 %v938, %v899
    %v941 = vmul.f32 %v938, %v900
    %v942 = vmul.f32 %v938, %v901
    %947 = vrot.lane.b32.xlu0 %v939, 126
    %v948 = vpop.permute.xlu0 %947
    %949 = vrot.lane.b32.xlu0 %v940, 126
    %v950 = vpop.permute.xlu0 %949
    %951 = vrot.lane.b32.xlu0 %v941, 126
    %v952 = vpop.permute.xlu0 %951
    %953 = vrot.lane.b32.xlu0 %v942, 126
    %v954 = vpop.permute.xlu0 %953
    %v959 = vadd.f32 %v933, %v948
    %v960 = vadd.f32 %v934, %v950
    %v961 = vadd.f32 %v935, %v952
    %v962 = vadd.f32 %v936, %v954
    %s963 = sld [smem:[#allocation4 + $0x18]]
    %v964 = vstv %s963
    %v965 = vmul.f32 %v964, %v898
    %v966 = vmul.f32 %v964, %v899
    %v967 = vmul.f32 %v964, %v900
    %v968 = vmul.f32 %v964, %v901
    %973 = vrot.lane.b32.xlu0 %v965, 125
    %v974 = vpop.permute.xlu0 %973
    %975 = vrot.lane.b32.xlu0 %v966, 125
    %v976 = vpop.permute.xlu0 %975
    %977 = vrot.lane.b32.xlu0 %v967, 125
    %v978 = vpop.permute.xlu0 %977
    %979 = vrot.lane.b32.xlu0 %v968, 125
    %v980 = vpop.permute.xlu0 %979
    %v985 = vadd.f32 %v959, %v974
    %v986 = vadd.f32 %v960, %v976
    %v987 = vadd.f32 %v961, %v978
    %v988 = vadd.f32 %v962, %v980
    %s989 = sld [smem:[#allocation4 + $0x19]]
    %v990 = vstv %s989
    %v991 = vmul.f32 %v990, %v898
    %v992 = vmul.f32 %v990, %v899
    %v993 = vmul.f32 %v990, %v900
    %v994 = vmul.f32 %v990, %v901
    %999 = vrot.lane.b32.xlu0 %v991, 124
    %v1000 = vpop.permute.xlu0 %999
    %1001 = vrot.lane.b32.xlu0 %v992, 124
    %v1002 = vpop.permute.xlu0 %1001
    %1003 = vrot.lane.b32.xlu0 %v993, 124
    %v1004 = vpop.permute.xlu0 %1003
    %1005 = vrot.lane.b32.xlu0 %v994, 124
    %v1006 = vpop.permute.xlu0 %1005
    %v1011 = vadd.f32 %v985, %v1000
    %v1012 = vadd.f32 %v986, %v1002
    %v1013 = vadd.f32 %v987, %v1004
    %v1014 = vadd.f32 %v988, %v1006
    %s1015 = sld [smem:[#allocation4 + $0x1a]]
    %v1016 = vstv %s1015
    %v1017 = vmul.f32 %v1016, %v898
    %v1018 = vmul.f32 %v1016, %v899
    %v1019 = vmul.f32 %v1016, %v900
    %v1020 = vmul.f32 %v1016, %v901
    %1025 = vrot.lane.b32.xlu0 %v1017, 123
    %v1026 = vpop.permute.xlu0 %1025
    %1027 = vrot.lane.b32.xlu0 %v1018, 123
    %v1028 = vpop.permute.xlu0 %1027
    %1029 = vrot.lane.b32.xlu0 %v1019, 123
    %v1030 = vpop.permute.xlu0 %1029
    %1031 = vrot.lane.b32.xlu0 %v1020, 123
    %v1032 = vpop.permute.xlu0 %1031
    %v1037 = vadd.f32 %v1011, %v1026
    %v1038 = vadd.f32 %v1012, %v1028
    %v1039 = vadd.f32 %v1013, %v1030
    %v1040 = vadd.f32 %v1014, %v1032
    %s1041 = sld [smem:[#allocation4 + $0x1b]]
    %v1042 = vstv %s1041
    %v1043 = vmul.f32 %v1042, %v898
    %v1044 = vmul.f32 %v1042, %v899
    %v1045 = vmul.f32 %v1042, %v900
    %v1046 = vmul.f32 %v1042, %v901
    %1051 = vrot.lane.b32.xlu0 %v1043, 122
    %v1052 = vpop.permute.xlu0 %1051
    %1053 = vrot.lane.b32.xlu0 %v1044, 122
    %v1054 = vpop.permute.xlu0 %1053
    %1055 = vrot.lane.b32.xlu0 %v1045, 122
    %v1056 = vpop.permute.xlu0 %1055
    %1057 = vrot.lane.b32.xlu0 %v1046, 122
    %v1058 = vpop.permute.xlu0 %1057
    %v1063 = vadd.f32 %v1037, %v1052
    %v1064 = vadd.f32 %v1038, %v1054
    %v1065 = vadd.f32 %v1039, %v1056
    %v1066 = vadd.f32 %v1040, %v1058
    %s1067 = sld [smem:[#allocation4 + $0x1c]]
    %v1068 = vld [vmem:[#allocation2 + $0x4] sm:$0xff]
    %v1069 = vld [vmem:[#allocation2 + $0xc] sm:$0xff]
    %v1070 = vld [vmem:[#allocation2 + $0x1c] sm:$0xff]
    %v1071 = vld [vmem:[#allocation2 + $0x24] sm:$0xff]
    %v1072 = vstv %s1067
    %v1073 = vmul.f32 %v1072, %v1068
    %v1074 = vmul.f32 %v1072, %v1069
    %v1075 = vmul.f32 %v1072, %v1070
    %v1076 = vmul.f32 %v1072, %v1071
    %v1077 = vadd.f32 %v1063, %v1073
    %v1078 = vadd.f32 %v1064, %v1074
    %v1079 = vadd.f32 %v1065, %v1075
    %v1080 = vadd.f32 %v1066, %v1076
    %s1081 = sld [smem:[#allocation4 + $0x1d]]
    %v1082 = vstv %s1081
    %v1083 = vmul.f32 %v1082, %v1068
    %v1084 = vmul.f32 %v1082, %v1069
    %v1085 = vmul.f32 %v1082, %v1070
    %v1086 = vmul.f32 %v1082, %v1071
    %1091 = vrot.lane.b32.xlu0 %v1083, 127
    %v1092 = vpop.permute.xlu0 %1091
    %1093 = vrot.lane.b32.xlu0 %v1084, 127
    %v1094 = vpop.permute.xlu0 %1093
    %1095 = vrot.lane.b32.xlu0 %v1085, 127
    %v1096 = vpop.permute.xlu0 %1095
    %1097 = vrot.lane.b32.xlu0 %v1086, 127
    %v1098 = vpop.permute.xlu0 %1097
    %v1103 = vadd.f32 %v1077, %v1092
    %v1104 = vadd.f32 %v1078, %v1094
    %v1105 = vadd.f32 %v1079, %v1096
    %v1106 = vadd.f32 %v1080, %v1098
    %s1107 = sld [smem:[#allocation4 + $0x1e]]
    %v1108 = vstv %s1107
    %v1109 = vmul.f32 %v1108, %v1068
    %v1110 = vmul.f32 %v1108, %v1069
    %v1111 = vmul.f32 %v1108, %v1070
    %v1112 = vmul.f32 %v1108, %v1071
    %1117 = vrot.lane.b32.xlu0 %v1109, 126
    %v1118 = vpop.permute.xlu0 %1117
    %1119 = vrot.lane.b32.xlu0 %v1110, 126
    %v1120 = vpop.permute.xlu0 %1119
    %1121 = vrot.lane.b32.xlu0 %v1111, 126
    %v1122 = vpop.permute.xlu0 %1121
    %1123 = vrot.lane.b32.xlu0 %v1112, 126
    %v1124 = vpop.permute.xlu0 %1123
    %v1129 = vadd.f32 %v1103, %v1118
    %v1130 = vadd.f32 %v1104, %v1120
    %v1131 = vadd.f32 %v1105, %v1122
    %v1132 = vadd.f32 %v1106, %v1124
    %s1133 = sld [smem:[#allocation4 + $0x1f]]
    %v1134 = vstv %s1133
    %v1135 = vmul.f32 %v1134, %v1068
    %v1136 = vmul.f32 %v1134, %v1069
    %v1137 = vmul.f32 %v1134, %v1070
    %v1138 = vmul.f32 %v1134, %v1071
    %1143 = vrot.lane.b32.xlu0 %v1135, 125
    %v1144 = vpop.permute.xlu0 %1143
    %1145 = vrot.lane.b32.xlu0 %v1136, 125
    %v1146 = vpop.permute.xlu0 %1145
    %1147 = vrot.lane.b32.xlu0 %v1137, 125
    %v1148 = vpop.permute.xlu0 %1147
    %1149 = vrot.lane.b32.xlu0 %v1138, 125
    %v1150 = vpop.permute.xlu0 %1149
    %v1155 = vadd.f32 %v1129, %v1144
    %v1156 = vadd.f32 %v1130, %v1146
    %v1157 = vadd.f32 %v1131, %v1148
    %v1158 = vadd.f32 %v1132, %v1150
    %s1159 = sld [smem:[#allocation4 + $0x20]]
    %v1160 = vstv %s1159
    %v1161 = vmul.f32 %v1160, %v1068
    %v1162 = vmul.f32 %v1160, %v1069
    %v1163 = vmul.f32 %v1160, %v1070
    %v1164 = vmul.f32 %v1160, %v1071
    %1169 = vrot.lane.b32.xlu0 %v1161, 124
    %v1170 = vpop.permute.xlu0 %1169
    %1171 = vrot.lane.b32.xlu0 %v1162, 124
    %v1172 = vpop.permute.xlu0 %1171
    %1173 = vrot.lane.b32.xlu0 %v1163, 124
    %v1174 = vpop.permute.xlu0 %1173
    %1175 = vrot.lane.b32.xlu0 %v1164, 124
    %v1176 = vpop.permute.xlu0 %1175
    %v1181 = vadd.f32 %v1155, %v1170
    %v1182 = vadd.f32 %v1156, %v1172
    %v1183 = vadd.f32 %v1157, %v1174
    %v1184 = vadd.f32 %v1158, %v1176
    %s1185 = sld [smem:[#allocation4 + $0x21]]
    %v1186 = vstv %s1185
    %v1187 = vmul.f32 %v1186, %v1068
    %v1188 = vmul.f32 %v1186, %v1069
    %v1189 = vmul.f32 %v1186, %v1070
    %v1190 = vmul.f32 %v1186, %v1071
    %1195 = vrot.lane.b32.xlu0 %v1187, 123
    %v1196 = vpop.permute.xlu0 %1195
    %1197 = vrot.lane.b32.xlu0 %v1188, 123
    %v1198 = vpop.permute.xlu0 %1197
    %1199 = vrot.lane.b32.xlu0 %v1189, 123
    %v1200 = vpop.permute.xlu0 %1199
    %1201 = vrot.lane.b32.xlu0 %v1190, 123
    %v1202 = vpop.permute.xlu0 %1201
    %v1207 = vadd.f32 %v1181, %v1196
    %v1208 = vadd.f32 %v1182, %v1198
    %v1209 = vadd.f32 %v1183, %v1200
    %v1210 = vadd.f32 %v1184, %v1202
    %s1211 = sld [smem:[#allocation4 + $0x22]]
    %v1212 = vstv %s1211
    %v1213 = vmul.f32 %v1212, %v1068
    %v1214 = vmul.f32 %v1212, %v1069
    %v1215 = vmul.f32 %v1212, %v1070
    %v1216 = vmul.f32 %v1212, %v1071
    %1221 = vrot.lane.b32.xlu0 %v1213, 122
    %v1222 = vpop.permute.xlu0 %1221
    %1223 = vrot.lane.b32.xlu0 %v1214, 122
    %v1224 = vpop.permute.xlu0 %1223
    %1225 = vrot.lane.b32.xlu0 %v1215, 122
    %v1226 = vpop.permute.xlu0 %1225
    %1227 = vrot.lane.b32.xlu0 %v1216, 122
    %v1228 = vpop.permute.xlu0 %1227
    %v1233 = vadd.f32 %v1207, %v1222
    %v1234 = vadd.f32 %v1208, %v1224
    %v1235 = vadd.f32 %v1209, %v1226
    %v1236 = vadd.f32 %v1210, %v1228
    %s1237 = sld [smem:[#allocation4 + $0x23]]
    %v1238 = vld [vmem:[#allocation2 + $0x5] sm:$0xff]
    %v1239 = vld [vmem:[#allocation2 + $0xd] sm:$0xff]
    %v1240 = vld [vmem:[#allocation2 + $0x1d] sm:$0xff]
    %v1241 = vld [vmem:[#allocation2 + $0x25] sm:$0xff]
    %v1242 = vstv %s1237
    %v1243 = vmul.f32 %v1242, %v1238
    %v1244 = vmul.f32 %v1242, %v1239
    %v1245 = vmul.f32 %v1242, %v1240
    %v1246 = vmul.f32 %v1242, %v1241
    %v1247 = vadd.f32 %v1233, %v1243
    %v1248 = vadd.f32 %v1234, %v1244
    %v1249 = vadd.f32 %v1235, %v1245
    %v1250 = vadd.f32 %v1236, %v1246
    %s1251 = sld [smem:[#allocation4 + $0x24]]
    %v1252 = vstv %s1251
    %v1253 = vmul.f32 %v1252, %v1238
    %v1254 = vmul.f32 %v1252, %v1239
    %v1255 = vmul.f32 %v1252, %v1240
    %v1256 = vmul.f32 %v1252, %v1241
    %1261 = vrot.lane.b32.xlu0 %v1253, 127
    %v1262 = vpop.permute.xlu0 %1261
    %1263 = vrot.lane.b32.xlu0 %v1254, 127
    %v1264 = vpop.permute.xlu0 %1263
    %1265 = vrot.lane.b32.xlu0 %v1255, 127
    %v1266 = vpop.permute.xlu0 %1265
    %1267 = vrot.lane.b32.xlu0 %v1256, 127
    %v1268 = vpop.permute.xlu0 %1267
    %v1273 = vadd.f32 %v1247, %v1262
    %v1274 = vadd.f32 %v1248, %v1264
    %v1275 = vadd.f32 %v1249, %v1266
    %v1276 = vadd.f32 %v1250, %v1268
    %s1277 = sld [smem:[#allocation4 + $0x25]]
    %v1278 = vstv %s1277
    %v1279 = vmul.f32 %v1278, %v1238
    %v1280 = vmul.f32 %v1278, %v1239
    %v1281 = vmul.f32 %v1278, %v1240
    %v1282 = vmul.f32 %v1278, %v1241
    %1287 = vrot.lane.b32.xlu0 %v1279, 126
    %v1288 = vpop.permute.xlu0 %1287
    %1289 = vrot.lane.b32.xlu0 %v1280, 126
    %v1290 = vpop.permute.xlu0 %1289
    %1291 = vrot.lane.b32.xlu0 %v1281, 126
    %v1292 = vpop.permute.xlu0 %1291
    %1293 = vrot.lane.b32.xlu0 %v1282, 126
    %v1294 = vpop.permute.xlu0 %1293
    %v1299 = vadd.f32 %v1273, %v1288
    %v1300 = vadd.f32 %v1274, %v1290
    %v1301 = vadd.f32 %v1275, %v1292
    %v1302 = vadd.f32 %v1276, %v1294
    %s1303 = sld [smem:[#allocation4 + $0x26]]
    %v1304 = vstv %s1303
    %v1305 = vmul.f32 %v1304, %v1238
    %v1306 = vmul.f32 %v1304, %v1239
    %v1307 = vmul.f32 %v1304, %v1240
    %v1308 = vmul.f32 %v1304, %v1241
    %1313 = vrot.lane.b32.xlu0 %v1305, 125
    %v1314 = vpop.permute.xlu0 %1313
    %1315 = vrot.lane.b32.xlu0 %v1306, 125
    %v1316 = vpop.permute.xlu0 %1315
    %1317 = vrot.lane.b32.xlu0 %v1307, 125
    %v1318 = vpop.permute.xlu0 %1317
    %1319 = vrot.lane.b32.xlu0 %v1308, 125
    %v1320 = vpop.permute.xlu0 %1319
    %v1325 = vadd.f32 %v1299, %v1314
    %v1326 = vadd.f32 %v1300, %v1316
    %v1327 = vadd.f32 %v1301, %v1318
    %v1328 = vadd.f32 %v1302, %v1320
    %s1329 = sld [smem:[#allocation4 + $0x27]]
    %v1330 = vstv %s1329
    %v1331 = vmul.f32 %v1330, %v1238
    %v1332 = vmul.f32 %v1330, %v1239
    %v1333 = vmul.f32 %v1330, %v1240
    %v1334 = vmul.f32 %v1330, %v1241
    %1339 = vrot.lane.b32.xlu0 %v1331, 124
    %v1340 = vpop.permute.xlu0 %1339
    %1341 = vrot.lane.b32.xlu0 %v1332, 124
    %v1342 = vpop.permute.xlu0 %1341
    %1343 = vrot.lane.b32.xlu0 %v1333, 124
    %v1344 = vpop.permute.xlu0 %1343
    %1345 = vrot.lane.b32.xlu0 %v1334, 124
    %v1346 = vpop.permute.xlu0 %1345
    %v1351 = vadd.f32 %v1325, %v1340
    %v1352 = vadd.f32 %v1326, %v1342
    %v1353 = vadd.f32 %v1327, %v1344
    %v1354 = vadd.f32 %v1328, %v1346
    %s1355 = sld [smem:[#allocation4 + $0x28]]
    %v1356 = vstv %s1355
    %v1357 = vmul.f32 %v1356, %v1238
    %v1358 = vmul.f32 %v1356, %v1239
    %v1359 = vmul.f32 %v1356, %v1240
    %v1360 = vmul.f32 %v1356, %v1241
    %1365 = vrot.lane.b32.xlu0 %v1357, 123
    %v1366 = vpop.permute.xlu0 %1365
    %1367 = vrot.lane.b32.xlu0 %v1358, 123
    %v1368 = vpop.permute.xlu0 %1367
    %1369 = vrot.lane.b32.xlu0 %v1359, 123
    %v1370 = vpop.permute.xlu0 %1369
    %1371 = vrot.lane.b32.xlu0 %v1360, 123
    %v1372 = vpop.permute.xlu0 %1371
    %v1377 = vadd.f32 %v1351, %v1366
    %v1378 = vadd.f32 %v1352, %v1368
    %v1379 = vadd.f32 %v1353, %v1370
    %v1380 = vadd.f32 %v1354, %v1372
    %s1381 = sld [smem:[#allocation4 + $0x29]]
    %v1382 = vstv %s1381
    %v1383 = vmul.f32 %v1382, %v1238
    %v1384 = vmul.f32 %v1382, %v1239
    %v1385 = vmul.f32 %v1382, %v1240
    %v1386 = vmul.f32 %v1382, %v1241
    %1391 = vrot.lane.b32.xlu0 %v1383, 122
    %v1392 = vpop.permute.xlu0 %1391
    %1393 = vrot.lane.b32.xlu0 %v1384, 122
    %v1394 = vpop.permute.xlu0 %1393
    %1395 = vrot.lane.b32.xlu0 %v1385, 122
    %v1396 = vpop.permute.xlu0 %1395
    %1397 = vrot.lane.b32.xlu0 %v1386, 122
    %v1398 = vpop.permute.xlu0 %1397
    %v1403 = vadd.f32 %v1377, %v1392
    %v1404 = vadd.f32 %v1378, %v1394
    %v1405 = vadd.f32 %v1379, %v1396
    %v1406 = vadd.f32 %v1380, %v1398
    %s1407 = sld [smem:[#allocation4 + $0x2a]]
    %v1408 = vld [vmem:[#allocation2 + $0x6] sm:$0xff]
    %v1409 = vld [vmem:[#allocation2 + $0xe] sm:$0xff]
    %v1410 = vld [vmem:[#allocation2 + $0x1e] sm:$0xff]
    %v1411 = vld [vmem:[#allocation2 + $0x26] sm:$0xff]
    %v1412 = vstv %s1407
    %v1413 = vmul.f32 %v1412, %v1408
    %v1414 = vmul.f32 %v1412, %v1409
    %v1415 = vmul.f32 %v1412, %v1410
    %v1416 = vmul.f32 %v1412, %v1411
    %v1417 = vadd.f32 %v1403, %v1413
    %v1418 = vadd.f32 %v1404, %v1414
    %v1419 = vadd.f32 %v1405, %v1415
    %v1420 = vadd.f32 %v1406, %v1416
    %s1421 = sld [smem:[#allocation4 + $0x2b]]
    %v1422 = vstv %s1421
    %v1423 = vmul.f32 %v1422, %v1408
    %v1424 = vmul.f32 %v1422, %v1409
    %v1425 = vmul.f32 %v1422, %v1410
    %v1426 = vmul.f32 %v1422, %v1411
    %1431 = vrot.lane.b32.xlu0 %v1423, 127
    %v1432 = vpop.permute.xlu0 %1431
    %1433 = vrot.lane.b32.xlu0 %v1424, 127
    %v1434 = vpop.permute.xlu0 %1433
    %1435 = vrot.lane.b32.xlu0 %v1425, 127
    %v1436 = vpop.permute.xlu0 %1435
    %1437 = vrot.lane.b32.xlu0 %v1426, 127
    %v1438 = vpop.permute.xlu0 %1437
    %v1443 = vadd.f32 %v1417, %v1432
    %v1444 = vadd.f32 %v1418, %v1434
    %v1445 = vadd.f32 %v1419, %v1436
    %v1446 = vadd.f32 %v1420, %v1438
    %s1447 = sld [smem:[#allocation4 + $0x2c]]
    %v1448 = vstv %s1447
    %v1449 = vmul.f32 %v1448, %v1408
    %v1450 = vmul.f32 %v1448, %v1409
    %v1451 = vmul.f32 %v1448, %v1410
    %v1452 = vmul.f32 %v1448, %v1411
    %1457 = vrot.lane.b32.xlu0 %v1449, 126
    %v1458 = vpop.permute.xlu0 %1457
    %1459 = vrot.lane.b32.xlu0 %v1450, 126
    %v1460 = vpop.permute.xlu0 %1459
    %1461 = vrot.lane.b32.xlu0 %v1451, 126
    %v1462 = vpop.permute.xlu0 %1461
    %1463 = vrot.lane.b32.xlu0 %v1452, 126
    %v1464 = vpop.permute.xlu0 %1463
    %v1469 = vadd.f32 %v1443, %v1458
    %v1470 = vadd.f32 %v1444, %v1460
    %v1471 = vadd.f32 %v1445, %v1462
    %v1472 = vadd.f32 %v1446, %v1464
    %s1473 = sld [smem:[#allocation4 + $0x2d]]
    %v1474 = vstv %s1473
    %v1475 = vmul.f32 %v1474, %v1408
    %v1476 = vmul.f32 %v1474, %v1409
    %v1477 = vmul.f32 %v1474, %v1410
    %v1478 = vmul.f32 %v1474, %v1411
    %1483 = vrot.lane.b32.xlu0 %v1475, 125
    %v1484 = vpop.permute.xlu0 %1483
    %1485 = vrot.lane.b32.xlu0 %v1476, 125
    %v1486 = vpop.permute.xlu0 %1485
    %1487 = vrot.lane.b32.xlu0 %v1477, 125
    %v1488 = vpop.permute.xlu0 %1487
    %1489 = vrot.lane.b32.xlu0 %v1478, 125
    %v1490 = vpop.permute.xlu0 %1489
    %v1495 = vadd.f32 %v1469, %v1484
    %v1496 = vadd.f32 %v1470, %v1486
    %v1497 = vadd.f32 %v1471, %v1488
    %v1498 = vadd.f32 %v1472, %v1490
    %s1499 = sld [smem:[#allocation4 + $0x2e]]
    %v1500 = vstv %s1499
    %v1501 = vmul.f32 %v1500, %v1408
    %v1502 = vmul.f32 %v1500, %v1409
    %v1503 = vmul.f32 %v1500, %v1410
    %v1504 = vmul.f32 %v1500, %v1411
    %1509 = vrot.lane.b32.xlu0 %v1501, 124
    %v1510 = vpop.permute.xlu0 %1509
    %1511 = vrot.lane.b32.xlu0 %v1502, 124
    %v1512 = vpop.permute.xlu0 %1511
    %1513 = vrot.lane.b32.xlu0 %v1503, 124
    %v1514 = vpop.permute.xlu0 %1513
    %1515 = vrot.lane.b32.xlu0 %v1504, 124
    %v1516 = vpop.permute.xlu0 %1515
    %v1521 = vadd.f32 %v1495, %v1510
    %v1522 = vadd.f32 %v1496, %v1512
    %v1523 = vadd.f32 %v1497, %v1514
    %v1524 = vadd.f32 %v1498, %v1516
    %s1525 = sld [smem:[#allocation4 + $0x2f]]
    %v1526 = vstv %s1525
    %v1527 = vmul.f32 %v1526, %v1408
    %v1528 = vmul.f32 %v1526, %v1409
    %v1529 = vmul.f32 %v1526, %v1410
    %v1530 = vmul.f32 %v1526, %v1411
    %1535 = vrot.lane.b32.xlu0 %v1527, 123
    %v1536 = vpop.permute.xlu0 %1535
    %1537 = vrot.lane.b32.xlu0 %v1528, 123
    %v1538 = vpop.permute.xlu0 %1537
    %1539 = vrot.lane.b32.xlu0 %v1529, 123
    %v1540 = vpop.permute.xlu0 %1539
    %1541 = vrot.lane.b32.xlu0 %v1530, 123
    %v1542 = vpop.permute.xlu0 %1541
    %v1547 = vadd.f32 %v1521, %v1536
    %v1548 = vadd.f32 %v1522, %v1538
    %v1549 = vadd.f32 %v1523, %v1540
    %v1550 = vadd.f32 %v1524, %v1542
    %s1551 = sld [smem:[#allocation4 + $0x30]]
    %v1552 = vstv %s1551
    %v1553 = vmul.f32 %v1552, %v1408
    %v1554 = vmul.f32 %v1552, %v1409
    %v1555 = vmul.f32 %v1552, %v1410
    %v1556 = vmul.f32 %v1552, %v1411
    %1561 = vrot.lane.b32.xlu0 %v1553, 122
    %v1562 = vpop.permute.xlu0 %1561
    %1563 = vrot.lane.b32.xlu0 %v1554, 122
    %v1564 = vpop.permute.xlu0 %1563
    %1565 = vrot.lane.b32.xlu0 %v1555, 122
    %v1566 = vpop.permute.xlu0 %1565
    %1567 = vrot.lane.b32.xlu0 %v1556, 122
    %v1568 = vpop.permute.xlu0 %1567
    %v1573 = vadd.f32 %v1547, %v1562
    %v1574 = vadd.f32 %v1548, %v1564
    %v1575 = vadd.f32 %v1549, %v1566
    %v1576 = vadd.f32 %v1550, %v1568
    %s1577 = sld [smem:[#allocation4 + $0x31]]
    %v1578 = vld [vmem:[%s140] sm:$0xff]
    %v1579 = vld [vmem:[%s140 + $0x8] sm:$0xff]
    %v1580 = vld [vmem:[%s140 + $0x18] sm:$0xff]
    %v1581 = vld [vmem:[%s140 + $0x20] sm:$0xff]
    %v1582 = vstv %s1577
    %v1583 = vmul.f32 %v1582, %v1578
    %v1584 = vmul.f32 %v1582, %v1579
    %v1585 = vmul.f32 %v1582, %v1580
    %v1586 = vmul.f32 %v1582, %v1581
    %v1587 = vadd.f32 %v1573, %v1583
    %v1588 = vadd.f32 %v1574, %v1584
    %v1589 = vadd.f32 %v1575, %v1585
    %v1590 = vadd.f32 %v1576, %v1586
    %s1591 = sld [smem:[#allocation4 + $0x32]]
    %v1592 = vstv %s1591
    %v1593 = vmul.f32 %v1592, %v1578
    %v1594 = vmul.f32 %v1592, %v1579
    %v1595 = vmul.f32 %v1592, %v1580
    %v1596 = vmul.f32 %v1592, %v1581
    %1601 = vrot.lane.b32.xlu0 %v1593, 127
    %v1602 = vpop.permute.xlu0 %1601
    %1603 = vrot.lane.b32.xlu0 %v1594, 127
    %v1604 = vpop.permute.xlu0 %1603
    %1605 = vrot.lane.b32.xlu0 %v1595, 127
    %v1606 = vpop.permute.xlu0 %1605
    %1607 = vrot.lane.b32.xlu0 %v1596, 127
    %v1608 = vpop.permute.xlu0 %1607
    %v1613 = vadd.f32 %v1587, %v1602
    %v1614 = vadd.f32 %v1588, %v1604
    %v1615 = vadd.f32 %v1589, %v1606
    %v1616 = vadd.f32 %v1590, %v1608
    %s1617 = sld [smem:[#allocation4 + $0x33]]
    %v1618 = vstv %s1617
    %v1619 = vmul.f32 %v1618, %v1578
    %v1620 = vmul.f32 %v1618, %v1579
    %v1621 = vmul.f32 %v1618, %v1580
    %v1622 = vmul.f32 %v1618, %v1581
    %1627 = vrot.lane.b32.xlu0 %v1619, 126
    %v1628 = vpop.permute.xlu0 %1627
    %1629 = vrot.lane.b32.xlu0 %v1620, 126
    %v1630 = vpop.permute.xlu0 %1629
    %1631 = vrot.lane.b32.xlu0 %v1621, 126
    %v1632 = vpop.permute.xlu0 %1631
    %1633 = vrot.lane.b32.xlu0 %v1622, 126
    %v1634 = vpop.permute.xlu0 %1633
    %v1639 = vadd.f32 %v1613, %v1628
    %v1640 = vadd.f32 %v1614, %v1630
    %v1641 = vadd.f32 %v1615, %v1632
    %v1642 = vadd.f32 %v1616, %v1634
    %s1643 = sld [smem:[#allocation4 + $0x34]]
    %v1644 = vstv %s1643
    %v1645 = vmul.f32 %v1644, %v1578
    %v1646 = vmul.f32 %v1644, %v1579
    %v1647 = vmul.f32 %v1644, %v1580
    %v1648 = vmul.f32 %v1644, %v1581
    %1653 = vrot.lane.b32.xlu0 %v1645, 125
    %v1654 = vpop.permute.xlu0 %1653
    %1655 = vrot.lane.b32.xlu0 %v1646, 125
    %v1656 = vpop.permute.xlu0 %1655
    %1657 = vrot.lane.b32.xlu0 %v1647, 125
    %v1658 = vpop.permute.xlu0 %1657
    %1659 = vrot.lane.b32.xlu0 %v1648, 125
    %v1660 = vpop.permute.xlu0 %1659
    %v1665 = vadd.f32 %v1639, %v1654
    %v1666 = vadd.f32 %v1640, %v1656
    %v1667 = vadd.f32 %v1641, %v1658
    %v1668 = vadd.f32 %v1642, %v1660
    %s1669 = sld [smem:[#allocation4 + $0x35]]
    %v1670 = vstv %s1669
    %v1671 = vmul.f32 %v1670, %v1578
    %v1672 = vmul.f32 %v1670, %v1579
    %v1673 = vmul.f32 %v1670, %v1580
    %v1674 = vmul.f32 %v1670, %v1581
    %1679 = vrot.lane.b32.xlu0 %v1671, 124
    %v1680 = vpop.permute.xlu0 %1679
    %1681 = vrot.lane.b32.xlu0 %v1672, 124
    %v1682 = vpop.permute.xlu0 %1681
    %1683 = vrot.lane.b32.xlu0 %v1673, 124
    %v1684 = vpop.permute.xlu0 %1683
    %1685 = vrot.lane.b32.xlu0 %v1674, 124
    %v1686 = vpop.permute.xlu0 %1685
    %v1691 = vadd.f32 %v1665, %v1680
    %v1692 = vadd.f32 %v1666, %v1682
    %v1693 = vadd.f32 %v1667, %v1684
    %v1694 = vadd.f32 %v1668, %v1686
    %s1695 = sld [smem:[#allocation4 + $0x36]]
    %v1696 = vstv %s1695
    %v1697 = vmul.f32 %v1696, %v1578
    %v1698 = vmul.f32 %v1696, %v1579
    %v1699 = vmul.f32 %v1696, %v1580
    %v1700 = vmul.f32 %v1696, %v1581
    %1705 = vrot.lane.b32.xlu0 %v1697, 123
    %v1706 = vpop.permute.xlu0 %1705
    %1707 = vrot.lane.b32.xlu0 %v1698, 123
    %v1708 = vpop.permute.xlu0 %1707
    %1709 = vrot.lane.b32.xlu0 %v1699, 123
    %v1710 = vpop.permute.xlu0 %1709
    %1711 = vrot.lane.b32.xlu0 %v1700, 123
    %v1712 = vpop.permute.xlu0 %1711
    %v1717 = vadd.f32 %v1691, %v1706
    %v1718 = vadd.f32 %v1692, %v1708
    %v1719 = vadd.f32 %v1693, %v1710
    %v1720 = vadd.f32 %v1694, %v1712
    %s1721 = sld [smem:[#allocation4 + $0x37]]
    %v1722 = vstv %s1721
    %v1723 = vmul.f32 %v1722, %v1578
    %v1724 = vmul.f32 %v1722, %v1579
    %v1725 = vmul.f32 %v1722, %v1580
    %v1726 = vmul.f32 %v1722, %v1581
    %1731 = vrot.lane.b32.xlu0 %v1723, 122
    %v1732 = vpop.permute.xlu0 %1731
    %1733 = vrot.lane.b32.xlu0 %v1724, 122
    %v1734 = vpop.permute.xlu0 %1733
    %1735 = vrot.lane.b32.xlu0 %v1725, 122
    %v1736 = vpop.permute.xlu0 %1735
    %1737 = vrot.lane.b32.xlu0 %v1726, 122
    %v1738 = vpop.permute.xlu0 %1737
    %v1743 = vadd.f32 %v1717, %v1732
    %v1744 = vadd.f32 %v1718, %v1734
    %v1745 = vadd.f32 %v1719, %v1736
    %v1746 = vadd.f32 %v1720, %v1738
    %s1747 = sld [smem:[#allocation4 + $0x38]]
    %v1748 = vld [vmem:[%s140 + $0x1] sm:$0xff]
    %v1749 = vld [vmem:[%s140 + $0x9] sm:$0xff]
    %v1750 = vld [vmem:[%s140 + $0x19] sm:$0xff]
    %v1751 = vld [vmem:[%s140 + $0x21] sm:$0xff]
    %v1752 = vstv %s1747
    %v1753 = vmul.f32 %v1752, %v1748
    %v1754 = vmul.f32 %v1752, %v1749
    %v1755 = vmul.f32 %v1752, %v1750
    %v1756 = vmul.f32 %v1752, %v1751
    %v1757 = vadd.f32 %v1743, %v1753
    %v1758 = vadd.f32 %v1744, %v1754
    %v1759 = vadd.f32 %v1745, %v1755
    %v1760 = vadd.f32 %v1746, %v1756
    %s1761 = sld [smem:[#allocation4 + $0x39]]
    %v1762 = vstv %s1761
    %v1763 = vmul.f32 %v1762, %v1748
    %v1764 = vmul.f32 %v1762, %v1749
    %v1765 = vmul.f32 %v1762, %v1750
    %v1766 = vmul.f32 %v1762, %v1751
    %1771 = vrot.lane.b32.xlu0 %v1763, 127
    %v1772 = vpop.permute.xlu0 %1771
    %1773 = vrot.lane.b32.xlu0 %v1764, 127
    %v1774 = vpop.permute.xlu0 %1773
    %1775 = vrot.lane.b32.xlu0 %v1765, 127
    %v1776 = vpop.permute.xlu0 %1775
    %1777 = vrot.lane.b32.xlu0 %v1766, 127
    %v1778 = vpop.permute.xlu0 %1777
    %v1783 = vadd.f32 %v1757, %v1772
    %v1784 = vadd.f32 %v1758, %v1774
    %v1785 = vadd.f32 %v1759, %v1776
    %v1786 = vadd.f32 %v1760, %v1778
    %s1787 = sld [smem:[#allocation4 + $0x3a]]
    %v1788 = vstv %s1787
    %v1789 = vmul.f32 %v1788, %v1748
    %v1790 = vmul.f32 %v1788, %v1749
    %v1791 = vmul.f32 %v1788, %v1750
    %v1792 = vmul.f32 %v1788, %v1751
    %1797 = vrot.lane.b32.xlu0 %v1789, 126
    %v1798 = vpop.permute.xlu0 %1797
    %1799 = vrot.lane.b32.xlu0 %v1790, 126
    %v1800 = vpop.permute.xlu0 %1799
    %1801 = vrot.lane.b32.xlu0 %v1791, 126
    %v1802 = vpop.permute.xlu0 %1801
    %1803 = vrot.lane.b32.xlu0 %v1792, 126
    %v1804 = vpop.permute.xlu0 %1803
    %v1809 = vadd.f32 %v1783, %v1798
    %v1810 = vadd.f32 %v1784, %v1800
    %v1811 = vadd.f32 %v1785, %v1802
    %v1812 = vadd.f32 %v1786, %v1804
    %s1813 = sld [smem:[#allocation4 + $0x3b]]
    %v1814 = vstv %s1813
    %v1815 = vmul.f32 %v1814, %v1748
    %v1816 = vmul.f32 %v1814, %v1749
    %v1817 = vmul.f32 %v1814, %v1750
    %v1818 = vmul.f32 %v1814, %v1751
    %1823 = vrot.lane.b32.xlu0 %v1815, 125
    %v1824 = vpop.permute.xlu0 %1823
    %1825 = vrot.lane.b32.xlu0 %v1816, 125
    %v1826 = vpop.permute.xlu0 %1825
    %1827 = vrot.lane.b32.xlu0 %v1817, 125
    %v1828 = vpop.permute.xlu0 %1827
    %1829 = vrot.lane.b32.xlu0 %v1818, 125
    %v1830 = vpop.permute.xlu0 %1829
    %v1835 = vadd.f32 %v1809, %v1824
    %v1836 = vadd.f32 %v1810, %v1826
    %v1837 = vadd.f32 %v1811, %v1828
    %v1838 = vadd.f32 %v1812, %v1830
    %s1839 = sld [smem:[#allocation4 + $0x3c]]
    %v1840 = vstv %s1839
    %v1841 = vmul.f32 %v1840, %v1748
    %v1842 = vmul.f32 %v1840, %v1749
    %v1843 = vmul.f32 %v1840, %v1750
    %v1844 = vmul.f32 %v1840, %v1751
    %1849 = vrot.lane.b32.xlu0 %v1841, 124
    %v1850 = vpop.permute.xlu0 %1849
    %1851 = vrot.lane.b32.xlu0 %v1842, 124
    %v1852 = vpop.permute.xlu0 %1851
    %1853 = vrot.lane.b32.xlu0 %v1843, 124
    %v1854 = vpop.permute.xlu0 %1853
    %1855 = vrot.lane.b32.xlu0 %v1844, 124
    %v1856 = vpop.permute.xlu0 %1855
    %v1861 = vadd.f32 %v1835, %v1850
    %v1862 = vadd.f32 %v1836, %v1852
    %v1863 = vadd.f32 %v1837, %v1854
    %v1864 = vadd.f32 %v1838, %v1856
    %s1865 = sld [smem:[#allocation4 + $0x3d]]
    %v1866 = vstv %s1865
    %v1867 = vmul.f32 %v1866, %v1748
    %v1868 = vmul.f32 %v1866, %v1749
    %v1869 = vmul.f32 %v1866, %v1750
    %v1870 = vmul.f32 %v1866, %v1751
    %1875 = vrot.lane.b32.xlu0 %v1867, 123
    %v1876 = vpop.permute.xlu0 %1875
    %1877 = vrot.lane.b32.xlu0 %v1868, 123
    %v1878 = vpop.permute.xlu0 %1877
    %1879 = vrot.lane.b32.xlu0 %v1869, 123
    %v1880 = vpop.permute.xlu0 %1879
    %1881 = vrot.lane.b32.xlu0 %v1870, 123
    %v1882 = vpop.permute.xlu0 %1881
    %v1887 = vadd.f32 %v1861, %v1876
    %v1888 = vadd.f32 %v1862, %v1878
    %v1889 = vadd.f32 %v1863, %v1880
    %v1890 = vadd.f32 %v1864, %v1882
    %s1891 = sld [smem:[#allocation4 + $0x3e]]
    %v1892 = vstv %s1891
    %v1893 = vmul.f32 %v1892, %v1748
    %v1894 = vmul.f32 %v1892, %v1749
    %v1895 = vmul.f32 %v1892, %v1750
    %v1896 = vmul.f32 %v1892, %v1751
    %1901 = vrot.lane.b32.xlu0 %v1893, 122
    %v1902 = vpop.permute.xlu0 %1901
    %1903 = vrot.lane.b32.xlu0 %v1894, 122
    %v1904 = vpop.permute.xlu0 %1903
    %1905 = vrot.lane.b32.xlu0 %v1895, 122
    %v1906 = vpop.permute.xlu0 %1905
    %1907 = vrot.lane.b32.xlu0 %v1896, 122
    %v1908 = vpop.permute.xlu0 %1907
    %v1913 = vadd.f32 %v1887, %v1902
    %v1914 = vadd.f32 %v1888, %v1904
    %v1915 = vadd.f32 %v1889, %v1906
    %v1916 = vadd.f32 %v1890, %v1908
    %s1917 = sld [smem:[#allocation4 + $0x3f]]
    %v1918 = vld [vmem:[%s140 + $0x2] sm:$0xff]
    %v1919 = vld [vmem:[%s140 + $0xa] sm:$0xff]
    %v1920 = vld [vmem:[%s140 + $0x1a] sm:$0xff]
    %v1921 = vld [vmem:[%s140 + $0x22] sm:$0xff]
    %v1922 = vstv %s1917
    %v1923 = vmul.f32 %v1922, %v1918
    %v1924 = vmul.f32 %v1922, %v1919
    %v1925 = vmul.f32 %v1922, %v1920
    %v1926 = vmul.f32 %v1922, %v1921
    %v1927 = vadd.f32 %v1913, %v1923
    %v1928 = vadd.f32 %v1914, %v1924
    %v1929 = vadd.f32 %v1915, %v1925
    %v1930 = vadd.f32 %v1916, %v1926
    %s1931 = sld [smem:[#allocation4 + $0x40]]
    %v1932 = vstv %s1931
    %v1933 = vmul.f32 %v1932, %v1918
    %v1934 = vmul.f32 %v1932, %v1919
    %v1935 = vmul.f32 %v1932, %v1920
    %v1936 = vmul.f32 %v1932, %v1921
    %1941 = vrot.lane.b32.xlu0 %v1933, 127
    %v1942 = vpop.permute.xlu0 %1941
    %1943 = vrot.lane.b32.xlu0 %v1934, 127
    %v1944 = vpop.permute.xlu0 %1943
    %1945 = vrot.lane.b32.xlu0 %v1935, 127
    %v1946 = vpop.permute.xlu0 %1945
    %1947 = vrot.lane.b32.xlu0 %v1936, 127
    %v1948 = vpop.permute.xlu0 %1947
    %v1953 = vadd.f32 %v1927, %v1942
    %v1954 = vadd.f32 %v1928, %v1944
    %v1955 = vadd.f32 %v1929, %v1946
    %v1956 = vadd.f32 %v1930, %v1948
    %s1957 = sld [smem:[#allocation4 + $0x41]]
    %v1958 = vstv %s1957
    %v1959 = vmul.f32 %v1958, %v1918
    %v1960 = vmul.f32 %v1958, %v1919
    %v1961 = vmul.f32 %v1958, %v1920
    %v1962 = vmul.f32 %v1958, %v1921
    %1967 = vrot.lane.b32.xlu0 %v1959, 126
    %v1968 = vpop.permute.xlu0 %1967
    %1969 = vrot.lane.b32.xlu0 %v1960, 126
    %v1970 = vpop.permute.xlu0 %1969
    %1971 = vrot.lane.b32.xlu0 %v1961, 126
    %v1972 = vpop.permute.xlu0 %1971
    %1973 = vrot.lane.b32.xlu0 %v1962, 126
    %v1974 = vpop.permute.xlu0 %1973
    %v1979 = vadd.f32 %v1953, %v1968
    %v1980 = vadd.f32 %v1954, %v1970
    %v1981 = vadd.f32 %v1955, %v1972
    %v1982 = vadd.f32 %v1956, %v1974
    %s1983 = sld [smem:[#allocation4 + $0x42]]
    %v1984 = vstv %s1983
    %v1985 = vmul.f32 %v1984, %v1918
    %v1986 = vmul.f32 %v1984, %v1919
    %v1987 = vmul.f32 %v1984, %v1920
    %v1988 = vmul.f32 %v1984, %v1921
    %1993 = vrot.lane.b32.xlu0 %v1985, 125
    %v1994 = vpop.permute.xlu0 %1993
    %1995 = vrot.lane.b32.xlu0 %v1986, 125
    %v1996 = vpop.permute.xlu0 %1995
    %1997 = vrot.lane.b32.xlu0 %v1987, 125
    %v1998 = vpop.permute.xlu0 %1997
    %1999 = vrot.lane.b32.xlu0 %v1988, 125
    %v2000 = vpop.permute.xlu0 %1999
    %v2005 = vadd.f32 %v1979, %v1994
    %v2006 = vadd.f32 %v1980, %v1996
    %v2007 = vadd.f32 %v1981, %v1998
    %v2008 = vadd.f32 %v1982, %v2000
    %s2009 = sld [smem:[#allocation4 + $0x43]]
    %v2010 = vstv %s2009
    %v2011 = vmul.f32 %v2010, %v1918
    %v2012 = vmul.f32 %v2010, %v1919
    %v2013 = vmul.f32 %v2010, %v1920
    %v2014 = vmul.f32 %v2010, %v1921
    %2019 = vrot.lane.b32.xlu0 %v2011, 124
    %v2020 = vpop.permute.xlu0 %2019
    %2021 = vrot.lane.b32.xlu0 %v2012, 124
    %v2022 = vpop.permute.xlu0 %2021
    %2023 = vrot.lane.b32.xlu0 %v2013, 124
    %v2024 = vpop.permute.xlu0 %2023
    %2025 = vrot.lane.b32.xlu0 %v2014, 124
    %v2026 = vpop.permute.xlu0 %2025
    %v2031 = vadd.f32 %v2005, %v2020
    %v2032 = vadd.f32 %v2006, %v2022
    %v2033 = vadd.f32 %v2007, %v2024
    %v2034 = vadd.f32 %v2008, %v2026
    %s2035 = sld [smem:[#allocation4 + $0x44]]
    %v2036 = vstv %s2035
    %v2037 = vmul.f32 %v2036, %v1918
    %v2038 = vmul.f32 %v2036, %v1919
    %v2039 = vmul.f32 %v2036, %v1920
    %v2040 = vmul.f32 %v2036, %v1921
    %2045 = vrot.lane.b32.xlu0 %v2037, 123
    %v2046 = vpop.permute.xlu0 %2045
    %2047 = vrot.lane.b32.xlu0 %v2038, 123
    %v2048 = vpop.permute.xlu0 %2047
    %2049 = vrot.lane.b32.xlu0 %v2039, 123
    %v2050 = vpop.permute.xlu0 %2049
    %2051 = vrot.lane.b32.xlu0 %v2040, 123
    %v2052 = vpop.permute.xlu0 %2051
    %v2057 = vadd.f32 %v2031, %v2046
    %v2058 = vadd.f32 %v2032, %v2048
    %v2059 = vadd.f32 %v2033, %v2050
    %v2060 = vadd.f32 %v2034, %v2052
    %s2061 = sld [smem:[#allocation4 + $0x45]]
    %v2062 = vstv %s2061
    %v2063 = vmul.f32 %v2062, %v1918
    %v2064 = vmul.f32 %v2062, %v1919
    %v2065 = vmul.f32 %v2062, %v1920
    %v2066 = vmul.f32 %v2062, %v1921
    %2071 = vrot.lane.b32.xlu0 %v2063, 122
    %v2072 = vpop.permute.xlu0 %2071
    %2073 = vrot.lane.b32.xlu0 %v2064, 122
    %v2074 = vpop.permute.xlu0 %2073
    %2075 = vrot.lane.b32.xlu0 %v2065, 122
    %v2076 = vpop.permute.xlu0 %2075
    %2077 = vrot.lane.b32.xlu0 %v2066, 122
    %v2078 = vpop.permute.xlu0 %2077
    %v2083 = vadd.f32 %v2057, %v2072
    %v2084 = vadd.f32 %v2058, %v2074
    %v2085 = vadd.f32 %v2059, %v2076
    %v2086 = vadd.f32 %v2060, %v2078
    %s2087 = sld [smem:[#allocation4 + $0x46]]
    %v2088 = vld [vmem:[%s140 + $0x3] sm:$0xff]
    %v2089 = vld [vmem:[%s140 + $0xb] sm:$0xff]
    %v2090 = vld [vmem:[%s140 + $0x1b] sm:$0xff]
    %v2091 = vld [vmem:[%s140 + $0x23] sm:$0xff]
    %v2092 = vstv %s2087
    %v2093 = vmul.f32 %v2092, %v2088
    %v2094 = vmul.f32 %v2092, %v2089
    %v2095 = vmul.f32 %v2092, %v2090
    %v2096 = vmul.f32 %v2092, %v2091
    %v2097 = vadd.f32 %v2083, %v2093
    %v2098 = vadd.f32 %v2084, %v2094
    %v2099 = vadd.f32 %v2085, %v2095
    %v2100 = vadd.f32 %v2086, %v2096
    %s2101 = sld [smem:[#allocation4 + $0x47]]
    %v2102 = vstv %s2101
    %v2103 = vmul.f32 %v2102, %v2088
    %v2104 = vmul.f32 %v2102, %v2089
    %v2105 = vmul.f32 %v2102, %v2090
    %v2106 = vmul.f32 %v2102, %v2091
    %2111 = vrot.lane.b32.xlu0 %v2103, 127
    %v2112 = vpop.permute.xlu0 %2111
    %2113 = vrot.lane.b32.xlu0 %v2104, 127
    %v2114 = vpop.permute.xlu0 %2113
    %2115 = vrot.lane.b32.xlu0 %v2105, 127
    %v2116 = vpop.permute.xlu0 %2115
    %2117 = vrot.lane.b32.xlu0 %v2106, 127
    %v2118 = vpop.permute.xlu0 %2117
    %v2123 = vadd.f32 %v2097, %v2112
    %v2124 = vadd.f32 %v2098, %v2114
    %v2125 = vadd.f32 %v2099, %v2116
    %v2126 = vadd.f32 %v2100, %v2118
    %s2127 = sld [smem:[#allocation4 + $0x48]]
    %v2128 = vstv %s2127
    %v2129 = vmul.f32 %v2128, %v2088
    %v2130 = vmul.f32 %v2128, %v2089
    %v2131 = vmul.f32 %v2128, %v2090
    %v2132 = vmul.f32 %v2128, %v2091
    %2137 = vrot.lane.b32.xlu0 %v2129, 126
    %v2138 = vpop.permute.xlu0 %2137
    %2139 = vrot.lane.b32.xlu0 %v2130, 126
    %v2140 = vpop.permute.xlu0 %2139
    %2141 = vrot.lane.b32.xlu0 %v2131, 126
    %v2142 = vpop.permute.xlu0 %2141
    %2143 = vrot.lane.b32.xlu0 %v2132, 126
    %v2144 = vpop.permute.xlu0 %2143
    %v2149 = vadd.f32 %v2123, %v2138
    %v2150 = vadd.f32 %v2124, %v2140
    %v2151 = vadd.f32 %v2125, %v2142
    %v2152 = vadd.f32 %v2126, %v2144
    %s2153 = sld [smem:[#allocation4 + $0x49]]
    %v2154 = vstv %s2153
    %v2155 = vmul.f32 %v2154, %v2088
    %v2156 = vmul.f32 %v2154, %v2089
    %v2157 = vmul.f32 %v2154, %v2090
    %v2158 = vmul.f32 %v2154, %v2091
    %2163 = vrot.lane.b32.xlu0 %v2155, 125
    %v2164 = vpop.permute.xlu0 %2163
    %2165 = vrot.lane.b32.xlu0 %v2156, 125
    %v2166 = vpop.permute.xlu0 %2165
    %2167 = vrot.lane.b32.xlu0 %v2157, 125
    %v2168 = vpop.permute.xlu0 %2167
    %2169 = vrot.lane.b32.xlu0 %v2158, 125
    %v2170 = vpop.permute.xlu0 %2169
    %v2175 = vadd.f32 %v2149, %v2164
    %v2176 = vadd.f32 %v2150, %v2166
    %v2177 = vadd.f32 %v2151, %v2168
    %v2178 = vadd.f32 %v2152, %v2170
    %s2179 = sld [smem:[#allocation4 + $0x4a]]
    %v2180 = vstv %s2179
    %v2181 = vmul.f32 %v2180, %v2088
    %v2182 = vmul.f32 %v2180, %v2089
    %v2183 = vmul.f32 %v2180, %v2090
    %v2184 = vmul.f32 %v2180, %v2091
    %2189 = vrot.lane.b32.xlu0 %v2181, 124
    %v2190 = vpop.permute.xlu0 %2189
    %2191 = vrot.lane.b32.xlu0 %v2182, 124
    %v2192 = vpop.permute.xlu0 %2191
    %2193 = vrot.lane.b32.xlu0 %v2183, 124
    %v2194 = vpop.permute.xlu0 %2193
    %2195 = vrot.lane.b32.xlu0 %v2184, 124
    %v2196 = vpop.permute.xlu0 %2195
    %v2201 = vadd.f32 %v2175, %v2190
    %v2202 = vadd.f32 %v2176, %v2192
    %v2203 = vadd.f32 %v2177, %v2194
    %v2204 = vadd.f32 %v2178, %v2196
    %s2205 = sld [smem:[#allocation4 + $0x4b]]
    %v2206 = vstv %s2205
    %v2207 = vmul.f32 %v2206, %v2088
    %v2208 = vmul.f32 %v2206, %v2089
    %v2209 = vmul.f32 %v2206, %v2090
    %v2210 = vmul.f32 %v2206, %v2091
    %2215 = vrot.lane.b32.xlu0 %v2207, 123
    %v2216 = vpop.permute.xlu0 %2215
    %2217 = vrot.lane.b32.xlu0 %v2208, 123
    %v2218 = vpop.permute.xlu0 %2217
    %2219 = vrot.lane.b32.xlu0 %v2209, 123
    %v2220 = vpop.permute.xlu0 %2219
    %2221 = vrot.lane.b32.xlu0 %v2210, 123
    %v2222 = vpop.permute.xlu0 %2221
    %v2227 = vadd.f32 %v2201, %v2216
    %v2228 = vadd.f32 %v2202, %v2218
    %v2229 = vadd.f32 %v2203, %v2220
    %v2230 = vadd.f32 %v2204, %v2222
    %s2231 = sld [smem:[#allocation4 + $0x4c]]
    %v2232 = vstv %s2231
    %v2233 = vmul.f32 %v2232, %v2088
    %v2234 = vmul.f32 %v2232, %v2089
    %v2235 = vmul.f32 %v2232, %v2090
    %v2236 = vmul.f32 %v2232, %v2091
    %2241 = vrot.lane.b32.xlu0 %v2233, 122
    %v2242 = vpop.permute.xlu0 %2241
    %2243 = vrot.lane.b32.xlu0 %v2234, 122
    %v2244 = vpop.permute.xlu0 %2243
    %2245 = vrot.lane.b32.xlu0 %v2235, 122
    %v2246 = vpop.permute.xlu0 %2245
    %2247 = vrot.lane.b32.xlu0 %v2236, 122
    %v2248 = vpop.permute.xlu0 %2247
    %v2253 = vadd.f32 %v2227, %v2242
    %v2254 = vadd.f32 %v2228, %v2244
    %v2255 = vadd.f32 %v2229, %v2246
    %v2256 = vadd.f32 %v2230, %v2248
    %s2257 = sld [smem:[#allocation4 + $0x4d]]
    %v2258 = vld [vmem:[%s140 + $0x4] sm:$0xff]
    %v2259 = vld [vmem:[%s140 + $0xc] sm:$0xff]
    %v2260 = vld [vmem:[%s140 + $0x1c] sm:$0xff]
    %v2261 = vld [vmem:[%s140 + $0x24] sm:$0xff]
    %v2262 = vstv %s2257
    %v2263 = vmul.f32 %v2262, %v2258
    %v2264 = vmul.f32 %v2262, %v2259
    %v2265 = vmul.f32 %v2262, %v2260
    %v2266 = vmul.f32 %v2262, %v2261
    %v2267 = vadd.f32 %v2253, %v2263
    %v2268 = vadd.f32 %v2254, %v2264
    %v2269 = vadd.f32 %v2255, %v2265
    %v2270 = vadd.f32 %v2256, %v2266
    %s2271 = sld [smem:[#allocation4 + $0x4e]]
    %v2272 = vstv %s2271
    %v2273 = vmul.f32 %v2272, %v2258
    %v2274 = vmul.f32 %v2272, %v2259
    %v2275 = vmul.f32 %v2272, %v2260
    %v2276 = vmul.f32 %v2272, %v2261
    %2281 = vrot.lane.b32.xlu0 %v2273, 127
    %v2282 = vpop.permute.xlu0 %2281
    %2283 = vrot.lane.b32.xlu0 %v2274, 127
    %v2284 = vpop.permute.xlu0 %2283
    %2285 = vrot.lane.b32.xlu0 %v2275, 127
    %v2286 = vpop.permute.xlu0 %2285
    %2287 = vrot.lane.b32.xlu0 %v2276, 127
    %v2288 = vpop.permute.xlu0 %2287
    %v2293 = vadd.f32 %v2267, %v2282
    %v2294 = vadd.f32 %v2268, %v2284
    %v2295 = vadd.f32 %v2269, %v2286
    %v2296 = vadd.f32 %v2270, %v2288
    %s2297 = sld [smem:[#allocation4 + $0x4f]]
    %v2298 = vstv %s2297
    %v2299 = vmul.f32 %v2298, %v2258
    %v2300 = vmul.f32 %v2298, %v2259
    %v2301 = vmul.f32 %v2298, %v2260
    %v2302 = vmul.f32 %v2298, %v2261
    %2307 = vrot.lane.b32.xlu0 %v2299, 126
    %v2308 = vpop.permute.xlu0 %2307
    %2309 = vrot.lane.b32.xlu0 %v2300, 126
    %v2310 = vpop.permute.xlu0 %2309
    %2311 = vrot.lane.b32.xlu0 %v2301, 126
    %v2312 = vpop.permute.xlu0 %2311
    %2313 = vrot.lane.b32.xlu0 %v2302, 126
    %v2314 = vpop.permute.xlu0 %2313
    %v2319 = vadd.f32 %v2293, %v2308
    %v2320 = vadd.f32 %v2294, %v2310
    %v2321 = vadd.f32 %v2295, %v2312
    %v2322 = vadd.f32 %v2296, %v2314
    %s2323 = sld [smem:[#allocation4 + $0x50]]
    %v2324 = vstv %s2323
    %v2325 = vmul.f32 %v2324, %v2258
    %v2326 = vmul.f32 %v2324, %v2259
    %v2327 = vmul.f32 %v2324, %v2260
    %v2328 = vmul.f32 %v2324, %v2261
    %2333 = vrot.lane.b32.xlu0 %v2325, 125
    %v2334 = vpop.permute.xlu0 %2333
    %2335 = vrot.lane.b32.xlu0 %v2326, 125
    %v2336 = vpop.permute.xlu0 %2335
    %2337 = vrot.lane.b32.xlu0 %v2327, 125
    %v2338 = vpop.permute.xlu0 %2337
    %2339 = vrot.lane.b32.xlu0 %v2328, 125
    %v2340 = vpop.permute.xlu0 %2339
    %v2345 = vadd.f32 %v2319, %v2334
    %v2346 = vadd.f32 %v2320, %v2336
    %v2347 = vadd.f32 %v2321, %v2338
    %v2348 = vadd.f32 %v2322, %v2340
    %s2349 = sld [smem:[#allocation4 + $0x51]]
    %v2350 = vstv %s2349
    %v2351 = vmul.f32 %v2350, %v2258
    %v2352 = vmul.f32 %v2350, %v2259
    %v2353 = vmul.f32 %v2350, %v2260
    %v2354 = vmul.f32 %v2350, %v2261
    %2359 = vrot.lane.b32.xlu0 %v2351, 124
    %v2360 = vpop.permute.xlu0 %2359
    %2361 = vrot.lane.b32.xlu0 %v2352, 124
    %v2362 = vpop.permute.xlu0 %2361
    %2363 = vrot.lane.b32.xlu0 %v2353, 124
    %v2364 = vpop.permute.xlu0 %2363
    %2365 = vrot.lane.b32.xlu0 %v2354, 124
    %v2366 = vpop.permute.xlu0 %2365
    %v2371 = vadd.f32 %v2345, %v2360
    %v2372 = vadd.f32 %v2346, %v2362
    %v2373 = vadd.f32 %v2347, %v2364
    %v2374 = vadd.f32 %v2348, %v2366
    %s2375 = sld [smem:[#allocation4 + $0x52]]
    %v2376 = vstv %s2375
    %v2377 = vmul.f32 %v2376, %v2258
    %v2378 = vmul.f32 %v2376, %v2259
    %v2379 = vmul.f32 %v2376, %v2260
    %v2380 = vmul.f32 %v2376, %v2261
    %2385 = vrot.lane.b32.xlu0 %v2377, 123
    %v2386 = vpop.permute.xlu0 %2385
    %2387 = vrot.lane.b32.xlu0 %v2378, 123
    %v2388 = vpop.permute.xlu0 %2387
    %2389 = vrot.lane.b32.xlu0 %v2379, 123
    %v2390 = vpop.permute.xlu0 %2389
    %2391 = vrot.lane.b32.xlu0 %v2380, 123
    %v2392 = vpop.permute.xlu0 %2391
    %v2397 = vadd.f32 %v2371, %v2386
    %v2398 = vadd.f32 %v2372, %v2388
    %v2399 = vadd.f32 %v2373, %v2390
    %v2400 = vadd.f32 %v2374, %v2392
    %s2401 = sld [smem:[#allocation4 + $0x53]]
    %v2402 = vstv %s2401
    %v2403 = vmul.f32 %v2402, %v2258
    %v2404 = vmul.f32 %v2402, %v2259
    %v2405 = vmul.f32 %v2402, %v2260
    %v2406 = vmul.f32 %v2402, %v2261
    %2411 = vrot.lane.b32.xlu0 %v2403, 122
    %v2412 = vpop.permute.xlu0 %2411
    %2413 = vrot.lane.b32.xlu0 %v2404, 122
    %v2414 = vpop.permute.xlu0 %2413
    %2415 = vrot.lane.b32.xlu0 %v2405, 122
    %v2416 = vpop.permute.xlu0 %2415
    %2417 = vrot.lane.b32.xlu0 %v2406, 122
    %v2418 = vpop.permute.xlu0 %2417
    %v2423 = vadd.f32 %v2397, %v2412
    %v2424 = vadd.f32 %v2398, %v2414
    %v2425 = vadd.f32 %v2399, %v2416
    %v2426 = vadd.f32 %v2400, %v2418
    %s2427 = sld [smem:[#allocation4 + $0x54]]
    %v2428 = vld [vmem:[%s140 + $0x5] sm:$0xff]
    %v2429 = vld [vmem:[%s140 + $0xd] sm:$0xff]
    %v2430 = vld [vmem:[%s140 + $0x1d] sm:$0xff]
    %v2431 = vld [vmem:[%s140 + $0x25] sm:$0xff]
    %v2432 = vstv %s2427
    %v2433 = vmul.f32 %v2432, %v2428
    %v2434 = vmul.f32 %v2432, %v2429
    %v2435 = vmul.f32 %v2432, %v2430
    %v2436 = vmul.f32 %v2432, %v2431
    %v2437 = vadd.f32 %v2423, %v2433
    %v2438 = vadd.f32 %v2424, %v2434
    %v2439 = vadd.f32 %v2425, %v2435
    %v2440 = vadd.f32 %v2426, %v2436
    %s2441 = sld [smem:[#allocation4 + $0x55]]
    %v2442 = vstv %s2441
    %v2443 = vmul.f32 %v2442, %v2428
    %v2444 = vmul.f32 %v2442, %v2429
    %v2445 = vmul.f32 %v2442, %v2430
    %v2446 = vmul.f32 %v2442, %v2431
    %2451 = vrot.lane.b32.xlu0 %v2443, 127
    %v2452 = vpop.permute.xlu0 %2451
    %2453 = vrot.lane.b32.xlu0 %v2444, 127
    %v2454 = vpop.permute.xlu0 %2453
    %2455 = vrot.lane.b32.xlu0 %v2445, 127
    %v2456 = vpop.permute.xlu0 %2455
    %2457 = vrot.lane.b32.xlu0 %v2446, 127
    %v2458 = vpop.permute.xlu0 %2457
    %v2463 = vadd.f32 %v2437, %v2452
    %v2464 = vadd.f32 %v2438, %v2454
    %v2465 = vadd.f32 %v2439, %v2456
    %v2466 = vadd.f32 %v2440, %v2458
    %s2467 = sld [smem:[#allocation4 + $0x56]]
    %v2468 = vstv %s2467
    %v2469 = vmul.f32 %v2468, %v2428
    %v2470 = vmul.f32 %v2468, %v2429
    %v2471 = vmul.f32 %v2468, %v2430
    %v2472 = vmul.f32 %v2468, %v2431
    %2477 = vrot.lane.b32.xlu0 %v2469, 126
    %v2478 = vpop.permute.xlu0 %2477
    %2479 = vrot.lane.b32.xlu0 %v2470, 126
    %v2480 = vpop.permute.xlu0 %2479
    %2481 = vrot.lane.b32.xlu0 %v2471, 126
    %v2482 = vpop.permute.xlu0 %2481
    %2483 = vrot.lane.b32.xlu0 %v2472, 126
    %v2484 = vpop.permute.xlu0 %2483
    %v2489 = vadd.f32 %v2463, %v2478
    %v2490 = vadd.f32 %v2464, %v2480
    %v2491 = vadd.f32 %v2465, %v2482
    %v2492 = vadd.f32 %v2466, %v2484
    %s2493 = sld [smem:[#allocation4 + $0x57]]
    %v2494 = vstv %s2493
    %v2495 = vmul.f32 %v2494, %v2428
    %v2496 = vmul.f32 %v2494, %v2429
    %v2497 = vmul.f32 %v2494, %v2430
    %v2498 = vmul.f32 %v2494, %v2431
    %2503 = vrot.lane.b32.xlu0 %v2495, 125
    %v2504 = vpop.permute.xlu0 %2503
    %2505 = vrot.lane.b32.xlu0 %v2496, 125
    %v2506 = vpop.permute.xlu0 %2505
    %2507 = vrot.lane.b32.xlu0 %v2497, 125
    %v2508 = vpop.permute.xlu0 %2507
    %2509 = vrot.lane.b32.xlu0 %v2498, 125
    %v2510 = vpop.permute.xlu0 %2509
    %v2515 = vadd.f32 %v2489, %v2504
    %v2516 = vadd.f32 %v2490, %v2506
    %v2517 = vadd.f32 %v2491, %v2508
    %v2518 = vadd.f32 %v2492, %v2510
    %s2519 = sld [smem:[#allocation4 + $0x58]]
    %v2520 = vstv %s2519
    %v2521 = vmul.f32 %v2520, %v2428
    %v2522 = vmul.f32 %v2520, %v2429
    %v2523 = vmul.f32 %v2520, %v2430
    %v2524 = vmul.f32 %v2520, %v2431
    %2529 = vrot.lane.b32.xlu0 %v2521, 124
    %v2530 = vpop.permute.xlu0 %2529
    %2531 = vrot.lane.b32.xlu0 %v2522, 124
    %v2532 = vpop.permute.xlu0 %2531
    %2533 = vrot.lane.b32.xlu0 %v2523, 124
    %v2534 = vpop.permute.xlu0 %2533
    %2535 = vrot.lane.b32.xlu0 %v2524, 124
    %v2536 = vpop.permute.xlu0 %2535
    %v2541 = vadd.f32 %v2515, %v2530
    %v2542 = vadd.f32 %v2516, %v2532
    %v2543 = vadd.f32 %v2517, %v2534
    %v2544 = vadd.f32 %v2518, %v2536
    %s2545 = sld [smem:[#allocation4 + $0x59]]
    %v2546 = vstv %s2545
    %v2547 = vmul.f32 %v2546, %v2428
    %v2548 = vmul.f32 %v2546, %v2429
    %v2549 = vmul.f32 %v2546, %v2430
    %v2550 = vmul.f32 %v2546, %v2431
    %2555 = vrot.lane.b32.xlu0 %v2547, 123
    %v2556 = vpop.permute.xlu0 %2555
    %2557 = vrot.lane.b32.xlu0 %v2548, 123
    %v2558 = vpop.permute.xlu0 %2557
    %2559 = vrot.lane.b32.xlu0 %v2549, 123
    %v2560 = vpop.permute.xlu0 %2559
    %2561 = vrot.lane.b32.xlu0 %v2550, 123
    %v2562 = vpop.permute.xlu0 %2561
    %v2567 = vadd.f32 %v2541, %v2556
    %v2568 = vadd.f32 %v2542, %v2558
    %v2569 = vadd.f32 %v2543, %v2560
    %v2570 = vadd.f32 %v2544, %v2562
    %s2571 = sld [smem:[#allocation4 + $0x5a]]
    %v2572 = vstv %s2571
    %v2573 = vmul.f32 %v2572, %v2428
    %v2574 = vmul.f32 %v2572, %v2429
    %v2575 = vmul.f32 %v2572, %v2430
    %v2576 = vmul.f32 %v2572, %v2431
    %2581 = vrot.lane.b32.xlu0 %v2573, 122
    %v2582 = vpop.permute.xlu0 %2581
    %2583 = vrot.lane.b32.xlu0 %v2574, 122
    %v2584 = vpop.permute.xlu0 %2583
    %2585 = vrot.lane.b32.xlu0 %v2575, 122
    %v2586 = vpop.permute.xlu0 %2585
    %2587 = vrot.lane.b32.xlu0 %v2576, 122
    %v2588 = vpop.permute.xlu0 %2587
    %v2593 = vadd.f32 %v2567, %v2582
    %v2594 = vadd.f32 %v2568, %v2584
    %v2595 = vadd.f32 %v2569, %v2586
    %v2596 = vadd.f32 %v2570, %v2588
    %s2597 = sld [smem:[#allocation4 + $0x5b]]
    %v2598 = vld [vmem:[%s140 + $0x6] sm:$0xff]
    %v2599 = vld [vmem:[%s140 + $0xe] sm:$0xff]
    %v2600 = vld [vmem:[%s140 + $0x1e] sm:$0xff]
    %v2601 = vld [vmem:[%s140 + $0x26] sm:$0xff]
    %v2602 = vstv %s2597
    %v2603 = vmul.f32 %v2602, %v2598
    %v2604 = vmul.f32 %v2602, %v2599
    %v2605 = vmul.f32 %v2602, %v2600
    %v2606 = vmul.f32 %v2602, %v2601
    %v2607 = vadd.f32 %v2593, %v2603
    %v2608 = vadd.f32 %v2594, %v2604
    %v2609 = vadd.f32 %v2595, %v2605
    %v2610 = vadd.f32 %v2596, %v2606
    %s2611 = sld [smem:[#allocation4 + $0x5c]]
    %v2612 = vstv %s2611
    %v2613 = vmul.f32 %v2612, %v2598
    %v2614 = vmul.f32 %v2612, %v2599
    %v2615 = vmul.f32 %v2612, %v2600
    %v2616 = vmul.f32 %v2612, %v2601
    %2621 = vrot.lane.b32.xlu0 %v2613, 127
    %v2622 = vpop.permute.xlu0 %2621
    %2623 = vrot.lane.b32.xlu0 %v2614, 127
    %v2624 = vpop.permute.xlu0 %2623
    %2625 = vrot.lane.b32.xlu0 %v2615, 127
    %v2626 = vpop.permute.xlu0 %2625
    %2627 = vrot.lane.b32.xlu0 %v2616, 127
    %v2628 = vpop.permute.xlu0 %2627
    %v2633 = vadd.f32 %v2607, %v2622
    %v2634 = vadd.f32 %v2608, %v2624
    %v2635 = vadd.f32 %v2609, %v2626
    %v2636 = vadd.f32 %v2610, %v2628
    %s2637 = sld [smem:[#allocation4 + $0x5d]]
    %v2638 = vstv %s2637
    %v2639 = vmul.f32 %v2638, %v2598
    %v2640 = vmul.f32 %v2638, %v2599
    %v2641 = vmul.f32 %v2638, %v2600
    %v2642 = vmul.f32 %v2638, %v2601
    %2647 = vrot.lane.b32.xlu0 %v2639, 126
    %v2648 = vpop.permute.xlu0 %2647
    %2649 = vrot.lane.b32.xlu0 %v2640, 126
    %v2650 = vpop.permute.xlu0 %2649
    %2651 = vrot.lane.b32.xlu0 %v2641, 126
    %v2652 = vpop.permute.xlu0 %2651
    %2653 = vrot.lane.b32.xlu0 %v2642, 126
    %v2654 = vpop.permute.xlu0 %2653
    %v2659 = vadd.f32 %v2633, %v2648
    %v2660 = vadd.f32 %v2634, %v2650
    %v2661 = vadd.f32 %v2635, %v2652
    %v2662 = vadd.f32 %v2636, %v2654
    %s2663 = sld [smem:[#allocation4 + $0x5e]]
    %v2664 = vstv %s2663
    %v2665 = vmul.f32 %v2664, %v2598
    %v2666 = vmul.f32 %v2664, %v2599
    %v2667 = vmul.f32 %v2664, %v2600
    %v2668 = vmul.f32 %v2664, %v2601
    %2673 = vrot.lane.b32.xlu0 %v2665, 125
    %v2674 = vpop.permute.xlu0 %2673
    %2675 = vrot.lane.b32.xlu0 %v2666, 125
    %v2676 = vpop.permute.xlu0 %2675
    %2677 = vrot.lane.b32.xlu0 %v2667, 125
    %v2678 = vpop.permute.xlu0 %2677
    %2679 = vrot.lane.b32.xlu0 %v2668, 125
    %v2680 = vpop.permute.xlu0 %2679
    %v2685 = vadd.f32 %v2659, %v2674
    %v2686 = vadd.f32 %v2660, %v2676
    %v2687 = vadd.f32 %v2661, %v2678
    %v2688 = vadd.f32 %v2662, %v2680
    %s2689 = sld [smem:[#allocation4 + $0x5f]]
    %v2690 = vstv %s2689
    %v2691 = vmul.f32 %v2690, %v2598
    %v2692 = vmul.f32 %v2690, %v2599
    %v2693 = vmul.f32 %v2690, %v2600
    %v2694 = vmul.f32 %v2690, %v2601
    %2699 = vrot.lane.b32.xlu0 %v2691, 124
    %v2700 = vpop.permute.xlu0 %2699
    %2701 = vrot.lane.b32.xlu0 %v2692, 124
    %v2702 = vpop.permute.xlu0 %2701
    %2703 = vrot.lane.b32.xlu0 %v2693, 124
    %v2704 = vpop.permute.xlu0 %2703
    %2705 = vrot.lane.b32.xlu0 %v2694, 124
    %v2706 = vpop.permute.xlu0 %2705
    %v2711 = vadd.f32 %v2685, %v2700
    %v2712 = vadd.f32 %v2686, %v2702
    %v2713 = vadd.f32 %v2687, %v2704
    %v2714 = vadd.f32 %v2688, %v2706
    %s2715 = sld [smem:[#allocation4 + $0x60]]
    %v2716 = vstv %s2715
    %v2717 = vmul.f32 %v2716, %v2598
    %v2718 = vmul.f32 %v2716, %v2599
    %v2719 = vmul.f32 %v2716, %v2600
    %v2720 = vmul.f32 %v2716, %v2601
    %2725 = vrot.lane.b32.xlu0 %v2717, 123
    %v2726 = vpop.permute.xlu0 %2725
    %2727 = vrot.lane.b32.xlu0 %v2718, 123
    %v2728 = vpop.permute.xlu0 %2727
    %2729 = vrot.lane.b32.xlu0 %v2719, 123
    %v2730 = vpop.permute.xlu0 %2729
    %2731 = vrot.lane.b32.xlu0 %v2720, 123
    %v2732 = vpop.permute.xlu0 %2731
    %v2737 = vadd.f32 %v2711, %v2726
    %v2738 = vadd.f32 %v2712, %v2728
    %v2739 = vadd.f32 %v2713, %v2730
    %v2740 = vadd.f32 %v2714, %v2732
    %s2741 = sld [smem:[#allocation4 + $0x61]]
    %v2742 = vstv %s2741
    %v2743 = vmul.f32 %v2742, %v2598
    %v2744 = vmul.f32 %v2742, %v2599
    %v2745 = vmul.f32 %v2742, %v2600
    %v2746 = vmul.f32 %v2742, %v2601
    %2751 = vrot.lane.b32.xlu0 %v2743, 122
    %v2752 = vpop.permute.xlu0 %2751
    %2753 = vrot.lane.b32.xlu0 %v2744, 122
    %v2754 = vpop.permute.xlu0 %2753
    %2755 = vrot.lane.b32.xlu0 %v2745, 122
    %v2756 = vpop.permute.xlu0 %2755
    %2757 = vrot.lane.b32.xlu0 %v2746, 122
    %v2758 = vpop.permute.xlu0 %2757
    %v2763 = vadd.f32 %v2737, %v2752
    %v2764 = vadd.f32 %v2738, %v2754
    %v2765 = vadd.f32 %v2739, %v2756
    %v2766 = vadd.f32 %v2740, %v2758
    %v2767 = vxor.u32 %v2763, 2147483648
    %v2768 = vxor.u32 %v2764, 2147483648
    %v2769 = vxor.u32 %v2765, 2147483648
    %v2770 = vxor.u32 %v2766, 2147483648
    %v2771 = vmul.f32 %v2767, 1.442695
    %v2772 = vpow.pop %v2771
    %v2773 = vmul.f32 %v2768, 1.442695
    %v2774 = vpow.pop %v2773
    %v2775 = vmul.f32 %v2769, 1.442695
    %v2776 = vpow.pop %v2775
    %v2777 = vmul.f32 %v2770, 1.442695
    %v2778 = vpow.pop %v2777
    %v2779 = vadd.f32 %v2772, 1.0
    %v2780 = vadd.f32 %v2774, 1.0
    %v2781 = vadd.f32 %v2776, 1.0
    %v2782 = vadd.f32 %v2778, 1.0
    %v2783 = vrcp.pop %v2779
    %v2784 = vmul.f32 1.0, %v2783
    %v2785 = vrcp.pop %v2780
    %v2786 = vmul.f32 1.0, %v2785
    %v2787 = vrcp.pop %v2781
    %v2788 = vmul.f32 1.0, %v2787
    %v2789 = vrcp.pop %v2782
    %v2790 = vmul.f32 1.0, %v2789
    %v2791 = vadd.f32 %v2784, 1.0
    %v2792 = vadd.f32 %v2786, 1.0
    %v2793 = vadd.f32 %v2788, 1.0
    %v2794 = vadd.f32 %v2790, 1.0
    %v2795 = vlaneseq
    %vm2796 = vcmp.ge.s32.totalorder %v2795, 0
    %vm2797 = vcmp.lt.s32.totalorder %v2795, 16
    %vm2798 = vmand %vm2796, %vm2797
    %2799 = vst.msk [vmem:[#allocation3] sm:$0x1] %vm2798, %v2791
    %2800 = vst.msk [vmem:[#allocation3 + $0x2] sm:$0x1] %vm2798, %v2793
    %v2804 = vunpack.c.l.s4 1966171168
    %v2805 = vunpack.c.0.s8 %v2804
    %v2806 = vlaneseq
    %v2807 = vshrl.u32 %v2806, 7
    %v2808 = vsub.s32 %v2805, %v2807
    %v2809 = vrot.slane %v2791, %v2808
    %v2810 = vcombine.high %v2809, %v2809
    %v2812 = vunpack.c.l.s4 1966171168
    %v2813 = vunpack.c.0.s8 %v2812
    %v2814 = vlaneseq
    %v2815 = vshrl.u32 %v2814, 7
    %v2816 = vsub.s32 %v2813, %v2815
    %v2817 = vrot.slane %v2809, %v2816
    %v2819 = vunpack.c.l.s4 1966171168
    %v2820 = vunpack.c.0.s8 %v2819
    %v2821 = vlaneseq
    %v2822 = vshrl.u32 %v2821, 7
    %v2823 = vsub.s32 %v2820, %v2822
    %v2824 = vrot.slane %v2810, %v2823
    %v2826 = vunpack.c.l.s4 1966171168
    %v2827 = vunpack.c.0.s8 %v2826
    %v2828 = vlaneseq
    %v2829 = vshrl.u32 %v2828, 7
    %v2830 = vsub.s32 %v2827, %v2829
    %v2831 = vrot.slane %v2793, %v2830
    %v2832 = vcombine.high %v2831, %v2831
    %v2834 = vunpack.c.l.s4 1966171168
    %v2835 = vunpack.c.0.s8 %v2834
    %v2836 = vlaneseq
    %v2837 = vshrl.u32 %v2836, 7
    %v2838 = vsub.s32 %v2835, %v2837
    %v2839 = vrot.slane %v2831, %v2838
    %v2841 = vunpack.c.l.s4 1966171168
    %v2842 = vunpack.c.0.s8 %v2841
    %v2843 = vlaneseq
    %v2844 = vshrl.u32 %v2843, 7
    %v2845 = vsub.s32 %v2842, %v2844
    %v2846 = vrot.slane %v2832, %v2845
    %2847 = vrot.lane.b32.xlu0 %v2824, 16
    %v2848 = vpop.permute.xlu0 %2847
    %2849 = vrot.lane.b32.xlu0 %v2846, 16
    %v2850 = vpop.permute.xlu0 %2849
    %vm2853 = vcmp.ge.s32.totalorder %v2795, 16
    %vm2854 = vcmp.lt.s32.totalorder %v2795, 32
    %vm2855 = vmand %vm2853, %vm2854
    %2856 = vst.msk [vmem:[#allocation3] sm:$0x1] %vm2855, %v2848
    %2857 = vst.msk [vmem:[#allocation3 + $0x2] sm:$0x1] %vm2855, %v2850
    %v2858 = vcombine.high %v2817, %v2817
    %v2859 = vcombine.high %v2839, %v2839
    %2860 = vrot.lane.b32.xlu0 %v2858, 32
    %v2861 = vpop.permute.xlu0 %2860
    %2862 = vrot.lane.b32.xlu0 %v2859, 32
    %v2863 = vpop.permute.xlu0 %2862
    %vm2866 = vcmp.ge.s32.totalorder %v2795, 32
    %vm2867 = vcmp.lt.s32.totalorder %v2795, 48
    %vm2868 = vmand %vm2866, %vm2867
    %2869 = vst.msk [vmem:[#allocation3] sm:$0x1] %vm2868, %v2861
    %2870 = vst.msk [vmem:[#allocation3 + $0x2] sm:$0x1] %vm2868, %v2863
    %v2871 = vcombine.high %v2824, %v2824
    %v2872 = vcombine.high %v2846, %v2846
    %2873 = vrot.lane.b32.xlu0 %v2871, 48
    %v2874 = vpop.permute.xlu0 %2873
    %2875 = vrot.lane.b32.xlu0 %v2872, 48
    %v2876 = vpop.permute.xlu0 %2875
    %vm2879 = vcmp.ge.s32.totalorder %v2795, 48
    %vm2880 = vcmp.lt.s32.totalorder %v2795, 64
    %vm2881 = vmand %vm2879, %vm2880
    %2882 = vst.msk [vmem:[#allocation3] sm:$0x1] %vm2881, %v2874
    %2883 = vst.msk [vmem:[#allocation3 + $0x2] sm:$0x1] %vm2881, %v2876
    %v2884 = vcombine.high %v2791, %v2791
    %v2886 = vunpack.c.l.s4 1966171168
    %v2887 = vunpack.c.0.s8 %v2886
    %v2888 = vlaneseq
    %v2889 = vshrl.u32 %v2888, 7
    %v2890 = vsub.s32 %v2887, %v2889
    %v2891 = vrot.slane %v2884, %v2890
    %v2893 = vunpack.c.l.s4 1966171168
    %v2894 = vunpack.c.0.s8 %v2893
    %v2895 = vlaneseq
    %v2896 = vshrl.u32 %v2895, 7
    %v2897 = vsub.s32 %v2894, %v2896
    %v2898 = vrot.slane %v2891, %v2897
    %v2899 = vcombine.high %v2793, %v2793
    %v2901 = vunpack.c.l.s4 1966171168
    %v2902 = vunpack.c.0.s8 %v2901
    %v2903 = vlaneseq
    %v2904 = vshrl.u32 %v2903, 7
    %v2905 = vsub.s32 %v2902, %v2904
    %v2906 = vrot.slane %v2899, %v2905
    %v2908 = vunpack.c.l.s4 1966171168
    %v2909 = vunpack.c.0.s8 %v2908
    %v2910 = vlaneseq
    %v2911 = vshrl.u32 %v2910, 7
    %v2912 = vsub.s32 %v2909, %v2911
    %v2913 = vrot.slane %v2906, %v2912
    %2914 = vrot.lane.b32.xlu0 %v2898, 64
    %v2915 = vpop.permute.xlu0 %2914
    %2916 = vrot.lane.b32.xlu0 %v2913, 64
    %v2917 = vpop.permute.xlu0 %2916
    %vm2920 = vcmp.ge.s32.totalorder %v2795, 64
    %vm2921 = vcmp.lt.s32.totalorder %v2795, 80
    %vm2922 = vmand %vm2920, %vm2921
    %2923 = vst.msk [vmem:[#allocation3] sm:$0x1] %vm2922, %v2915
    %2924 = vst.msk [vmem:[#allocation3 + $0x2] sm:$0x1] %vm2922, %v2917
    %v2925 = vcombine.high %v2891, %v2891
    %v2927 = vunpack.c.l.s4 1966171168
    %v2928 = vunpack.c.0.s8 %v2927
    %v2929 = vlaneseq
    %v2930 = vshrl.u32 %v2929, 7
    %v2931 = vsub.s32 %v2928, %v2930
    %v2932 = vrot.slane %v2925, %v2931
    %v2933 = vcombine.high %v2906, %v2906
    %v2935 = vunpack.c.l.s4 1966171168
    %v2936 = vunpack.c.0.s8 %v2935
    %v2937 = vlaneseq
    %v2938 = vshrl.u32 %v2937, 7
    %v2939 = vsub.s32 %v2936, %v2938
    %v2940 = vrot.slane %v2933, %v2939
    %2941 = vrot.lane.b32.xlu0 %v2932, 80
    %v2942 = vpop.permute.xlu0 %2941
    %2943 = vrot.lane.b32.xlu0 %v2940, 80
    %v2944 = vpop.permute.xlu0 %2943
    %vm2947 = vcmp.ge.s32.totalorder %v2795, 80
    %vm2948 = vcmp.lt.s32.totalorder %v2795, 96
    %vm2949 = vmand %vm2947, %vm2948
    %2950 = vst.msk [vmem:[#allocation3] sm:$0x1] %vm2949, %v2942
    %2951 = vst.msk [vmem:[#allocation3 + $0x2] sm:$0x1] %vm2949, %v2944
    %v2952 = vcombine.high %v2898, %v2898
    %v2953 = vcombine.high %v2913, %v2913
    %2954 = vrot.lane.b32.xlu0 %v2952, 96
    %v2955 = vpop.permute.xlu0 %2954
    %2956 = vrot.lane.b32.xlu0 %v2953, 96
    %v2957 = vpop.permute.xlu0 %2956
    %vm2960 = vcmp.ge.s32.totalorder %v2795, 96
    %vm2961 = vcmp.lt.s32.totalorder %v2795, 112
    %vm2962 = vmand %vm2960, %vm2961
    %2963 = vst.msk [vmem:[#allocation3] sm:$0x1] %vm2962, %v2955
    %2964 = vst.msk [vmem:[#allocation3 + $0x2] sm:$0x1] %vm2962, %v2957
    %v2965 = vcombine.high %v2932, %v2932
    %v2966 = vcombine.high %v2940, %v2940
    %2967 = vrot.lane.b32.xlu0 %v2965, 112
    %v2968 = vpop.permute.xlu0 %2967
    %2969 = vrot.lane.b32.xlu0 %v2966, 112
    %v2970 = vpop.permute.xlu0 %2969
    %vm2973 = vcmp.ge.s32.totalorder %v2795, 112
    %vm2974 = vcmp.lt.s32.totalorder %v2795, 128
    %vm2975 = vmand %vm2973, %vm2974
    %2976 = vst.msk [vmem:[#allocation3] sm:$0x1] %vm2975, %v2968
    %2977 = vst.msk [vmem:[#allocation3 + $0x2] sm:$0x1] %vm2975, %v2970
    %2978 = vst.msk [vmem:[#allocation3 + $0x1] sm:$0x1] %vm2798, %v2792
    %2979 = vst.msk [vmem:[#allocation3 + $0x3] sm:$0x1] %vm2798, %v2794
    %v2983 = vunpack.c.l.s4 1966171168
    %v2984 = vunpack.c.0.s8 %v2983
    %v2985 = vlaneseq
    %v2986 = vshrl.u32 %v2985, 7
    %v2987 = vsub.s32 %v2984, %v2986
    %v2988 = vrot.slane %v2792, %v2987
    %v2989 = vcombine.high %v2988, %v2988
    %v2991 = vunpack.c.l.s4 1966171168
    %v2992 = vunpack.c.0.s8 %v2991
    %v2993 = vlaneseq
    %v2994 = vshrl.u32 %v2993, 7
    %v2995 = vsub.s32 %v2992, %v2994
    %v2996 = vrot.slane %v2988, %v2995
    %v2998 = vunpack.c.l.s4 1966171168
    %v2999 = vunpack.c.0.s8 %v2998
    %v3000 = vlaneseq
    %v3001 = vshrl.u32 %v3000, 7
    %v3002 = vsub.s32 %v2999, %v3001
    %v3003 = vrot.slane %v2989, %v3002
    %v3005 = vunpack.c.l.s4 1966171168
    %v3006 = vunpack.c.0.s8 %v3005
    %v3007 = vlaneseq
    %v3008 = vshrl.u32 %v3007, 7
    %v3009 = vsub.s32 %v3006, %v3008
    %v3010 = vrot.slane %v2794, %v3009
    %v3011 = vcombine.high %v3010, %v3010
    %v3013 = vunpack.c.l.s4 1966171168
    %v3014 = vunpack.c.0.s8 %v3013
    %v3015 = vlaneseq
    %v3016 = vshrl.u32 %v3015, 7
    %v3017 = vsub.s32 %v3014, %v3016
    %v3018 = vrot.slane %v3010, %v3017
    %v3020 = vunpack.c.l.s4 1966171168
    %v3021 = vunpack.c.0.s8 %v3020
    %v3022 = vlaneseq
    %v3023 = vshrl.u32 %v3022, 7
    %v3024 = vsub.s32 %v3021, %v3023
    %v3025 = vrot.slane %v3011, %v3024
    %3026 = vrot.lane.b32.xlu0 %v3003, 16
    %v3027 = vpop.permute.xlu0 %3026
    %3028 = vrot.lane.b32.xlu0 %v3025, 16
    %v3029 = vpop.permute.xlu0 %3028
    %3032 = vst.msk [vmem:[#allocation3 + $0x1] sm:$0x1] %vm2855, %v3027
    %3033 = vst.msk [vmem:[#allocation3 + $0x3] sm:$0x1] %vm2855, %v3029
    %v3034 = vcombine.high %v2996, %v2996
    %v3035 = vcombine.high %v3018, %v3018
    %3036 = vrot.lane.b32.xlu0 %v3034, 32
    %v3037 = vpop.permute.xlu0 %3036
    %3038 = vrot.lane.b32.xlu0 %v3035, 32
    %v3039 = vpop.permute.xlu0 %3038
    %3042 = vst.msk [vmem:[#allocation3 + $0x1] sm:$0x1] %vm2868, %v3037
    %3043 = vst.msk [vmem:[#allocation3 + $0x3] sm:$0x1] %vm2868, %v3039
    %v3044 = vcombine.high %v3003, %v3003
    %v3045 = vcombine.high %v3025, %v3025
    %3046 = vrot.lane.b32.xlu0 %v3044, 48
    %v3047 = vpop.permute.xlu0 %3046
    %3048 = vrot.lane.b32.xlu0 %v3045, 48
    %v3049 = vpop.permute.xlu0 %3048
    %3052 = vst.msk [vmem:[#allocation3 + $0x1] sm:$0x1] %vm2881, %v3047
    %3053 = vst.msk [vmem:[#allocation3 + $0x3] sm:$0x1] %vm2881, %v3049
    %v3054 = vcombine.high %v2792, %v2792
    %v3056 = vunpack.c.l.s4 1966171168
    %v3057 = vunpack.c.0.s8 %v3056
    %v3058 = vlaneseq
    %v3059 = vshrl.u32 %v3058, 7
    %v3060 = vsub.s32 %v3057, %v3059
    %v3061 = vrot.slane %v3054, %v3060
    %v3063 = vunpack.c.l.s4 1966171168
    %v3064 = vunpack.c.0.s8 %v3063
    %v3065 = vlaneseq
    %v3066 = vshrl.u32 %v3065, 7
    %v3067 = vsub.s32 %v3064, %v3066
    %v3068 = vrot.slane %v3061, %v3067
    %v3069 = vcombine.high %v2794, %v2794
    %v3071 = vunpack.c.l.s4 1966171168
    %v3072 = vunpack.c.0.s8 %v3071
    %v3073 = vlaneseq
    %v3074 = vshrl.u32 %v3073, 7
    %v3075 = vsub.s32 %v3072, %v3074
    %v3076 = vrot.slane %v3069, %v3075
    %v3078 = vunpack.c.l.s4 1966171168
    %v3079 = vunpack.c.0.s8 %v3078
    %v3080 = vlaneseq
    %v3081 = vshrl.u32 %v3080, 7
    %v3082 = vsub.s32 %v3079, %v3081
    %v3083 = vrot.slane %v3076, %v3082
    %3084 = vrot.lane.b32.xlu0 %v3068, 64
    %v3085 = vpop.permute.xlu0 %3084
    %3086 = vrot.lane.b32.xlu0 %v3083, 64
    %v3087 = vpop.permute.xlu0 %3086
    %3090 = vst.msk [vmem:[#allocation3 + $0x1] sm:$0x1] %vm2922, %v3085
    %3091 = vst.msk [vmem:[#allocation3 + $0x3] sm:$0x1] %vm2922, %v3087
    %v3092 = vcombine.high %v3061, %v3061
    %v3094 = vunpack.c.l.s4 1966171168
    %v3095 = vunpack.c.0.s8 %v3094
    %v3096 = vlaneseq
    %v3097 = vshrl.u32 %v3096, 7
    %v3098 = vsub.s32 %v3095, %v3097
    %v3099 = vrot.slane %v3092, %v3098
    %v3100 = vcombine.high %v3076, %v3076
    %v3102 = vunpack.c.l.s4 1966171168
    %v3103 = vunpack.c.0.s8 %v3102
    %v3104 = vlaneseq
    %v3105 = vshrl.u32 %v3104, 7
    %v3106 = vsub.s32 %v3103, %v3105
    %v3107 = vrot.slane %v3100, %v3106
    %3108 = vrot.lane.b32.xlu0 %v3099, 80
    %v3109 = vpop.permute.xlu0 %3108
    %3110 = vrot.lane.b32.xlu0 %v3107, 80
    %v3111 = vpop.permute.xlu0 %3110
    %3114 = vst.msk [vmem:[#allocation3 + $0x1] sm:$0x1] %vm2949, %v3109
    %3115 = vst.msk [vmem:[#allocation3 + $0x3] sm:$0x1] %vm2949, %v3111
    %v3116 = vcombine.high %v3068, %v3068
    %v3117 = vcombine.high %v3083, %v3083
    %3118 = vrot.lane.b32.xlu0 %v3116, 96
    %v3119 = vpop.permute.xlu0 %3118
    %3120 = vrot.lane.b32.xlu0 %v3117, 96
    %v3121 = vpop.permute.xlu0 %3120
    %3124 = vst.msk [vmem:[#allocation3 + $0x1] sm:$0x1] %vm2962, %v3119
    %3125 = vst.msk [vmem:[#allocation3 + $0x3] sm:$0x1] %vm2962, %v3121
    %v3126 = vcombine.high %v3099, %v3099
    %v3127 = vcombine.high %v3107, %v3107
    %3128 = vrot.lane.b32.xlu0 %v3126, 112
    %v3129 = vpop.permute.xlu0 %3128
    %3130 = vrot.lane.b32.xlu0 %v3127, 112
    %v3131 = vpop.permute.xlu0 %3130
    %3134 = vst.msk [vmem:[#allocation3 + $0x1] sm:$0x1] %vm2975, %v3129
    %3135 = vst.msk [vmem:[#allocation3 + $0x3] sm:$0x1] %vm2975, %v3131
    %v3136 = vld [vmem:[#allocation8] sm:$0xff]
    %v3137 = vld [vmem:[#allocation8 + $0x8] sm:$0xff]
    %v3138 = vld [vmem:[#allocation3] sm:$0x3]
    %v3139 = vld [vmem:[#allocation3 + $0x2] sm:$0x3]
    %v3142 = vlaneseq
    %v3143 = vshrl.u32 %v3142, 7
    %v3144 = vsub.s32 0, %v3143
    %v3145 = vrot.slane %v3138, %v3144
    %v3146 = vlaneseq
    %v3147 = vshrl.u32 %v3146, 7
    %v3148 = vsub.s32 1, %v3147
    %v3149 = vrot.slane %v3138, %v3148
    %v3150 = vlaneseq
    %v3151 = vshrl.u32 %v3150, 7
    %v3152 = vsub.s32 0, %v3151
    %v3153 = vrot.slane %v3139, %v3152
    %v3154 = vlaneseq
    %v3155 = vshrl.u32 %v3154, 7
    %v3156 = vsub.s32 1, %v3155
    %v3157 = vrot.slane %v3139, %v3156
    %v3164 = vcombine.high %v3136, %v3136
    %v3165 = vcombine.high %v3137, %v3137
    %v3168 = vmul.f32 %v3145, %v3136
    %v3169 = vmul.f32 %v3149, %v3164
    %v3170 = vmul.f32 %v3153, %v3137
    %v3171 = vmul.f32 %v3157, %v3165
    %v3176 = vcombine.low %v3168, %v3169
    %v3177 = vcombine.low %v3170, %v3171
    %3180 = vst [vmem:[#allocation9] sm:$0xff] %v3176
    %3181 = vst [vmem:[#allocation9 + $0x8] sm:$0xff] %v3177
    // Predicated region
    $region18: #{tpu_custom_call.1} parent=1 // pred_check
      _
    $region19: #{tpu_custom_call.1} parent=1 // pred_check_branch
      %3183 = sbr.rel (0) target = $region21
    $region20: #{tpu_custom_call.1} parent=1 // pred_region
      %s3185 = ssub.s32 256, 256
      %3186 = vsyncadd [#allocation6], %s3185
      %s3187 = sshll.u32 [#allocation9], 4
      %s3188 = int_to_ptr.vmem [resolvable:$true] %s3187
      %3193 = dma.vmem_to_hbm [thread:$0]  %s3188, 256, %s2, [#allocation6], 128, 128, 8
    $region21: #{tpu_custom_call.1} parent=1 // pred_fallthru
      _
    // Predicated region
    $region22: #{tpu_custom_call.1} parent=1 // pred_check
      _
    $region23: #{tpu_custom_call.1} parent=1 // pred_check_branch
      %3195 = sbr.rel (0) target = $region25
    $region24: #{tpu_custom_call.1} parent=1 // pred_region
      %3196 = dma.done [#allocation6], 256
    $region25: #{tpu_custom_call.1} parent=1 // pred_fallthru
      _
    %3197 = vsyncpa [#allocation5], 1
    %3198 = vsyncpa [#allocation6], 1
    %3199 = vsyncpa [#allocation7], 1

</llo_original>
